<compile_context>
chip_gen: v6e
topology: v6e:2x2x1
jax: 0.10.0
libtpu: 0.0.40
codegen_flags: <defaults>
</compile_context>

<pallas_src>
import jax
import jax.numpy as jnp
from jax.experimental import pallas as pl
from jax.experimental.pallas import tpu as pltpu

N_COEFFS = 16        # small n_coeffs for the example
N_BASE = 160000      # hard-coded in the module (fc2 output size)
TILE_N = 80000       # 625 * 128 lanes; 160000 / 80000 = 2 grid steps


def outer_kernel(x_ref, w1_ref, w2_ref, o_ref):
    # x_ref:  (1, 1) in SMEM  — the scalar input
    # w1_ref: (n_rows, 1)     — fc1 weight (resident across grid steps)
    # w2_ref: (1, TILE_N)     — current tile of fc2 weight (lane-dense row)
    # o_ref:  (n_rows, TILE_N)
    x = x_ref[0, 0]
    # Same multiply order as torch (bit-exact for f32 output):
    #   coeffs_i = w1_i * x ; base_j = w2_j * x ; out_ij = coeffs_i * base_j
    coeffs = w1_ref[...] * x            # (n_rows, 1)   — fc1(x)
    base = w2_ref[...] * x              # (1, tile_n)   — fc2(x) tile (~625 vmuls, free)
    # K=1 outer product => the broadcast multiply IS the matmul.  Both operands
    # broadcast via replicated layouts; each output vreg is one vmul -> one vst.
    o_ref[...] = (coeffs * base).astype(o_ref.dtype)


def prepare_params(w1, w2):
    """One-time parameter layout prep (do at load time, not per call).

    w1: (n_coeffs, 1) fc1.weight  -> f32, unchanged
    w2: (160000, 1)   fc2.weight  -> lane-dense row (1, 160000), f32
    """
    return w1.astype(jnp.float32), w2.reshape(1, -1).astype(jnp.float32)


def net_forward(x, w1, w2_row, *, out_dtype=jnp.float32, tile_n=TILE_N):
    """x: (1,) f32; w1: (n_coeffs, 1) f32; w2_row: (1, N_BASE) f32 (pre-laid-out).

    out_dtype=jnp.bfloat16 halves the HBM write traffic (use it if the consumer
    can take bf16); default f32 matches the torch module exactly.
    """
    n_coeffs = w1.shape[0]
    n_base = w2_row.shape[1]
    assert n_base % tile_n == 0 and tile_n % 128 == 0
    out_dtype = jnp.dtype(out_dtype)

    # Pad rows to the sublane multiple so stores stay unmasked full-width vst.
    # (No-op for n_coeffs=16 with either dtype.)
    sublane = 16 if out_dtype.itemsize == 2 else 8
    n_pad = (-n_coeffs) % sublane
    if n_pad:
        w1 = jnp.pad(w1, ((0, n_pad), (0, 0)))
    n_rows = n_coeffs + n_pad

    x_smem = x.reshape(1, 1).astype(jnp.float32)
    grid = (n_base // tile_n,)

    # VMEM sized from the actual buffers: double-buffered (out tile + W2 tile)
    # plus one out-tile of slack (covers any compiler temporaries) + 2 MiB.
    out_tile_bytes = n_rows * tile_n * out_dtype.itemsize
    w2_tile_bytes = tile_n * 4
    vmem_bytes = int(2 * (out_tile_bytes + w2_tile_bytes) + out_tile_bytes + (2 << 20))

    out_bytes = n_rows * n_base * out_dtype.itemsize
    cost = pl.CostEstimate(
        flops=2 * n_rows * n_base,
        transcendentals=0,
        bytes_accessed=out_bytes + n_base * 4 + n_rows * 4 + 4,
    )

    out = pl.pallas_call(
        outer_kernel,
        out_shape=jax.ShapeDtypeStruct((n_rows, n_base), out_dtype),
        grid_spec=pltpu.PrefetchScalarGridSpec(
            num_scalar_prefetch=0,
            grid=grid,
            in_specs=[
                pl.BlockSpec(memory_space=pltpu.MemorySpace.SMEM),   # x (scalar)
                pl.BlockSpec((n_rows, 1), lambda j: (0, 0)),         # W1 (resident)
                pl.BlockSpec((1, tile_n), lambda j: (0, j)),         # W2 tile
            ],
            out_specs=pl.BlockSpec((n_rows, tile_n), lambda j: (0, j)),
        ),
        compiler_params=pltpu.CompilerParams(
            # 2 grid steps, independent -> megacore-shardable on v7x.
            dimension_semantics=("parallel",),
            vmem_limit_bytes=vmem_bytes,
        ),
        cost_estimate=cost,
    )(x_smem, w1, w2_row)

    # Padding only ever added for n_coeffs not a sublane multiple; slice it off
    # outside the hot path (does not trigger for the default config).
    return out[:n_coeffs] if n_pad else out


if __name__ == "__main__":
    key = jax.random.PRNGKey(0)
    kx, k1, k2 = jax.random.split(key, 3)

    # Deterministic parameter init (shapes match nn.Linear weights):
    #   fc1.weight: (n_coeffs, 1), fc2.weight: (160000, 1)
    w1 = jax.random.uniform(k1, (N_COEFFS, 1), jnp.float32, -1.0, 1.0)
    w2 = jax.random.uniform(k2, (N_BASE, 1), jnp.float32, -1.0, 1.0)

    # Input: a single scalar feature, shape (1,) — what Linear(1, ...) expects.
    x = jax.random.normal(kx, (1,), jnp.float32)

    # One-time layout prep (W2 -> lane-dense row), outside the hot path.
    w1_p, w2_row = prepare_params(w1, w2)
    w1_p, w2_row = jax.block_until_ready((w1_p, w2_row))

    # f32 path (matches the torch module exactly).
    out = jax.block_until_ready(net_forward(x, w1_p, w2_row))

    # Pure-JAX reference of the torch forward pass, written elementwise
    # (K=1 matmul == these products; avoids TPU default matmul precision).
    coeffs_ref = w1[:, 0] * x[0]                     # (n_coeffs,)
    base_ref = w2[:, 0] * x[0]                       # (160000,)
    ref = coeffs_ref[:, None] * base_ref[None, :]    # (n_coeffs, 160000)

    assert out.shape == (N_COEFFS, N_BASE)
    assert out.dtype == jnp.float32
    assert jnp.allclose(out, ref, rtol=1e-6, atol=1e-6)

    # bf16 output path: halves the 10.24 MB HBM write (use when the consumer
    # tolerates bf16).  Loose tolerance = bf16 rounding only.
    out_bf16 = jax.block_until_ready(
        net_forward(x, w1_p, w2_row, out_dtype=jnp.bfloat16))
    assert out_bf16.shape == (N_COEFFS, N_BASE)
    assert out_bf16.dtype == jnp.bfloat16
    assert jnp.allclose(out_bf16.astype(jnp.float32), ref, rtol=2e-2, atol=1e-2)

    print("KERNEL_OK")
</pallas_src>

<mosaic_0001>
module attributes {stable_mosaic.version = 11 : i64} {
  func.func @outer_kernel(%arg0: i32, %arg1: memref<1x1xf32, #tpu.memory_space<smem>>, %arg2: memref<16x1xf32, #tpu.memory_space<vmem>>, %arg3: memref<1x80000xf32, #tpu.memory_space<vmem>>, %arg4: memref<16x80000xf32, #tpu.memory_space<vmem>>) attributes {dimension_semantics = [#tpu.dimension_semantics<parallel>], iteration_bounds = array<i64: 2>, scalar_prefetch = 0 : i64, scratch_operands = 0 : i64, tpu.core_type = #tpu.core_type<tc>, window_params = [{transform_indices = @transform_0, window_bounds = array<i64: 1, 1>}, {pipeline_mode = #tpu.pipeline_mode<synchronous>, transform_indices = @transform_1, window_bounds = array<i64: 16, 1>}, {transform_indices = @transform_2, window_bounds = array<i64: 1, 80000>}, {transform_indices = @transform_3, window_bounds = array<i64: 16, 80000>}]} {
    %c0 = arith.constant 0 : index
    %c0_0 = arith.constant 0 : index
    %0 = memref.load %arg1[%c0, %c0_0] : memref<1x1xf32, #tpu.memory_space<smem>>
    %c0_1 = arith.constant 0 : index
    %c0_2 = arith.constant 0 : index
    %1 = vector.load %arg2[%c0_1, %c0_2] : memref<16x1xf32, #tpu.memory_space<vmem>>, vector<16x1xf32>
    %2 = vector.broadcast %0 : f32 to vector<16x1xf32>
    %3 = arith.mulf %1, %2 : vector<16x1xf32>
    %c0_3 = arith.constant 0 : index
    %c0_4 = arith.constant 0 : index
    %4 = vector.load %arg3[%c0_3, %c0_4] : memref<1x80000xf32, #tpu.memory_space<vmem>>, vector<1x80000xf32>
    %5 = vector.broadcast %0 : f32 to vector<1x80000xf32>
    %6 = arith.mulf %4, %5 : vector<1x80000xf32>
    %7 = vector.broadcast %3 : vector<16x1xf32> to vector<16x80000xf32>
    %8 = vector.broadcast %6 : vector<1x80000xf32> to vector<16x80000xf32>
    %9 = arith.mulf %7, %8 : vector<16x80000xf32>
    %c0_5 = arith.constant 0 : index
    %c0_6 = arith.constant 0 : index
    %10 = vector.load %arg4[%c0_5, %c0_6] : memref<16x80000xf32, #tpu.memory_space<vmem>>, vector<16x80000xf32>
    tpu.vector_store %arg4[%c0_5, %c0_6], %9 {strides = array<i32>} : memref<16x80000xf32, #tpu.memory_space<vmem>>, vector<16x80000xf32>,
    return
  }
  func.func @transform_0(%arg0: i32) -> (i32, i32) {
    %c0_i32 = arith.constant 0 : i32
    %c0_i32_0 = arith.constant 0 : i32
    %c0_i32_1 = arith.constant 0 : i32
    return %c0_i32, %c0_i32_0 : i32, i32
  }
  func.func @transform_1(%arg0: i32) -> (i32, i32) {
    %c0_i32 = arith.constant 0 : i32
    %c0_i32_0 = arith.constant 0 : i32
    %c0_i32_1 = arith.constant 0 : i32
    return %c0_i32, %c0_i32_0 : i32, i32
  }
  func.func @transform_2(%arg0: i32) -> (i32, i32) {
    %c0_i32 = arith.constant 0 : i32
    %c0_i32_0 = arith.constant 0 : i32
    return %c0_i32, %arg0 : i32, i32
  }
  func.func @transform_3(%arg0: i32) -> (i32, i32) {
    %c0_i32 = arith.constant 0 : i32
    %c0_i32_0 = arith.constant 0 : i32
    return %c0_i32, %arg0 : i32, i32
  }
}

</mosaic_0001>

<llo_original>
// kernel: tpu_custom_call.1
$region0: #{tpu_custom_call.1}
  #allocation0 [shape = 'u32[]', space=smem, size = 0x4, offset = 0x4, fixed_abs, tag = 'smem constant byte address 0x4 - core index']
  #allocation1 [shape = 'u32[144,128]{1,0:T(1,128)}', space=vmem, size = 0x12000, scoped, tag = 'internal scratch']
  #allocation2 [shape = 'f32[1,1]{1,0:T(1,128)S(6)}', space=smem, size = 0x200, scoped, tag = 'scoped memory for tpu_custom_call.1']
  %s0 = inlined_call_operand.<no memory space> [shape: f32[1,1], index: 0, kind: input, shape index: {}]
  %s1 = inlined_call_operand.vmem [shape: f32[16,1], index: 1, kind: input, shape index: {}]
  %s2 = inlined_call_operand.hbm [shape: f32[1,160000], index: 2, kind: input, shape index: {}]
  %s3 = inlined_call_operand.hbm [shape: f32[16,160000], index: 3, kind: output, shape index: {}]
  %s4 = sld [smem:[#allocation0]]
  $region49: #{tpu_custom_call.1} parent=0
    _
  %s6 = ssub.s32 1, %s4
  %s7 = scalar_select 0, %s6, %s4
  %8 = sst [smem:[#allocation2]] %s0
  $region1: #{tpu_custom_call.1} parent=0
    #allocation3 [shape = 'u8[640000]{0}', space=vmem, size = 0x9c400, scoped, tag = 'input window, operand 2']
    #allocation4 [shape = 's32[2]{0}', space=sflag, size = 0x8, scoped, tag = 'scoped memory for tpu_custom_call.1']
    #allocation5 [shape = 's32[2]{0}', space=sflag, size = 0x8, scoped, tag = 'scoped memory for tpu_custom_call.1']
    #allocation6 [shape = 'u8[10240000]{0}', space=vmem, size = 0x9c4000, scoped, tag = 'output window, operand 0']
    %9 = vsyncpa [#allocation4], 0
    %s10 = scalar_lea.sflag [#allocation4], 1
    %11 = vsyncpa %s10, 0
    %12 = vsyncpa [#allocation5], 0
    %s13 = scalar_lea.sflag [#allocation5], 1
    %14 = vsyncpa %s13, 0
    loop: start=0, step=1, limit=4
    $region2: #{tpu_custom_call.1} parent=1 // loop_pre_header
      _
    $region3: #{tpu_custom_call.1} parent=1 // loop_header
      %s16 = sphi 0, %s20
      %p17 = scmp.ge.s32.totalorder %s16, 4
      %s24 = sphi 0, %s24
      %s26 = sphi 0, %s24
      %s27 = sphi 0, %s26
      %s41 = sphi 0, %s27
      %s45 = sphi 0, %s45
      %s47 = sphi 0, %s45
      %s48 = sphi 0, %s47
      %s62 = sphi 0, %s48
      %s68 = sphi 0, %s70
      %s71 = sphi 0, %s68
      %s72 = sphi 0, %s71
      %s88 = sphi 0, %s72
      %s94 = sphi 0, %s96
      %s97 = sphi 0, %s94
      %s98 = sphi 0, %s97
      %s114 = sphi 0, %s98
    $region4: #{tpu_custom_call.1} parent=1 // loop_header_branch
      %19 = sbr.rel (%p17) target = $region8
    $region5: #{tpu_custom_call.1} parent=1 // loop_body
      %s21 = ssub.s32 %s16, 1
      %s22 = ssub.s32 %s16, 2
      %s23 = sadd.s32 %s16, 1
      %s25 = sadd.s32 %s24, 1
      %p28 = scmp.eq.s32.totalorder %s16, 1
      %p29 = scmp.ne.s32.totalorder %s24, %s26
      %p30 = scmp.eq.s32.totalorder %s16, 0
      %p31 = por %p29, %p30
      %p32 = scmp.ne.s32.totalorder %s24, %s26
      %p33 = scmp.eq.s32.totalorder %s21, 1
      %p34 = por %p32, %p33
      %p35 = scmp.ne.s32.totalorder %s26, %s27
      %p36 = scmp.eq.s32.totalorder %s21, 0
      %p37 = por %p35, %p36
      %p38 = scmp.ne.s32.totalorder %s26, %s27
      %p39 = scmp.eq.s32.totalorder %s22, 1
      %p40 = por %p38, %p39
      %p42 = scmp.ne.s32.totalorder %s27, %s41
      %p43 = scmp.eq.s32.totalorder %s22, 0
      %p44 = por %p42, %p43
      %s46 = sadd.s32 %s45, 1
      %p49 = scmp.eq.s32.totalorder %s16, 1
      %p50 = scmp.ne.s32.totalorder %s45, %s47
      %p51 = scmp.eq.s32.totalorder %s16, 0
      %p52 = por %p50, %p51
      %p53 = scmp.ne.s32.totalorder %s45, %s47
      %p54 = scmp.eq.s32.totalorder %s21, 1
      %p55 = por %p53, %p54
      %p56 = scmp.ne.s32.totalorder %s47, %s48
      %p57 = scmp.eq.s32.totalorder %s21, 0
      %p58 = por %p56, %p57
      %p59 = scmp.ne.s32.totalorder %s47, %s48
      %p60 = scmp.eq.s32.totalorder %s22, 1
      %p61 = por %p59, %p60
      %p63 = scmp.ne.s32.totalorder %s48, %s62
      %p64 = scmp.eq.s32.totalorder %s22, 0
      %p65 = por %p63, %p64
      %s66 = ssub.s32 %s16, %s23
      %p67 = scmp.eq.s32.totalorder %s66, 0
      %s69 = sadd.s32 %s68, 1
      %s70 = scalar_select %p67, %s68, %s69
      %p73 = pneg %p67
      %p74 = scmp.eq.s32.totalorder %s16, 1
      %p75 = por %p73, %p74
      %p76 = scmp.ne.s32.totalorder %s68, %s71
      %p77 = scmp.eq.s32.totalorder %s16, 0
      %p78 = por %p76, %p77
      %p79 = scmp.ne.s32.totalorder %s68, %s71
      %p80 = scmp.eq.s32.totalorder %s21, 1
      %p81 = por %p79, %p80
      %p82 = scmp.ne.s32.totalorder %s71, %s72
      %p83 = scmp.eq.s32.totalorder %s21, 0
      %p84 = por %p82, %p83
      %p85 = scmp.ne.s32.totalorder %s71, %s72
      %p86 = scmp.eq.s32.totalorder %s22, 1
      %p87 = por %p85, %p86
      %p89 = scmp.ne.s32.totalorder %s72, %s88
      %p90 = scmp.eq.s32.totalorder %s22, 0
      %p91 = por %p89, %p90
      %s92 = ssub.s32 %s16, %s23
      %p93 = scmp.eq.s32.totalorder %s92, 0
      %s95 = sadd.s32 %s94, 1
      %s96 = scalar_select %p93, %s94, %s95
      %p99 = pneg %p93
      %p100 = scmp.eq.s32.totalorder %s16, 1
      %p101 = por %p99, %p100
      %p102 = scmp.ne.s32.totalorder %s94, %s97
      %p103 = scmp.eq.s32.totalorder %s16, 0
      %p104 = por %p102, %p103
      %p105 = scmp.ne.s32.totalorder %s94, %s97
      %p106 = scmp.eq.s32.totalorder %s21, 1
      %p107 = por %p105, %p106
      %p108 = scmp.ne.s32.totalorder %s97, %s98
      %p109 = scmp.eq.s32.totalorder %s21, 0
      %p110 = por %p108, %p109
      %p111 = scmp.ne.s32.totalorder %s97, %s98
      %p112 = scmp.eq.s32.totalorder %s22, 1
      %p113 = por %p111, %p112
      %p115 = scmp.ne.s32.totalorder %s98, %s114
      %p116 = scmp.eq.s32.totalorder %s22, 0
      %p117 = por %p115, %p116
      %p118 = scmp.le.s32.totalorder 1, %s16
      %p119 = scmp.lt.s32.totalorder %s16, 3
      %p120 = pnand %p118, %p119
      %p121 = pneg %p120
      // Predicated region
      $region9: #{tpu_custom_call.1} parent=5 // pred_check
        _
      $region10: #{tpu_custom_call.1} parent=5 // pred_check_branch
        %123 = sbr.rel (%p120) target = $region12
      $region11: #{tpu_custom_call.1} parent=5 // pred_region
        %s124 = ssub.s32 %s16, 1
        // Predicated region
        $region13: #{tpu_custom_call.1} parent=11 // pred_check
          %p125 = pneg %p37
        $region14: #{tpu_custom_call.1} parent=11 // pred_check_branch
          %127 = sbr.rel (%p125) target = $region16
        $region15: #{tpu_custom_call.1} parent=11 // pred_region
          _
        $region16: #{tpu_custom_call.1} parent=11 // pred_fallthru
          _
        // Predicated region
        $region17: #{tpu_custom_call.1} parent=11 // pred_check
          %p128 = pneg %p58
        $region18: #{tpu_custom_call.1} parent=11 // pred_check_branch
          %130 = sbr.rel (%p128) target = $region20
        $region19: #{tpu_custom_call.1} parent=11 // pred_region
          _
        $region20: #{tpu_custom_call.1} parent=11 // pred_fallthru
          _
      $region12: #{tpu_custom_call.1} parent=5 // pred_fallthru
        _
      %p131 = scmp.lt.s32.totalorder %s16, 2
      // Predicated region
      $region21: #{tpu_custom_call.1} parent=5 // pred_check
        %p132 = pneg %p131
      $region22: #{tpu_custom_call.1} parent=5 // pred_check_branch
        %134 = sbr.rel (%p132) target = $region24
      $region23: #{tpu_custom_call.1} parent=5 // pred_region
        // Predicated region
        $region25: #{tpu_custom_call.1} parent=23 // pred_check
          %p135 = pneg %p78
        $region26: #{tpu_custom_call.1} parent=23 // pred_check_branch
          %137 = sbr.rel (%p135) target = $region28
        $region27: #{tpu_custom_call.1} parent=23 // pred_region
          %s138 = sand.u32 %s68, 1
          %s139 = scalar_lea.sflag [#allocation4], %s138
          %s140 = sand.u32 %s68, 1
          %s141 = smul.addr %s140, 625
          %s142 = scalar_lea.vmem [#allocation3], %s141
          %s143 = smul.u32 625, %s16
          %s145 = ssub.s32 10000, 10000
          %146 = vsyncadd %s139, %s145
          %s147 = smul.addr %s143, 16
          %s148 = scalar_lea.hbm %s2, %s147
          %s150 = sshll.u32 %s142, 4
          %s151 = int_to_ptr.vmem [resolvable:$true] %s150
          %153 = dma.hbm_to_vmem [thread:$0]  %s148, 10000, %s151, %s139
        $region28: #{tpu_custom_call.1} parent=23 // pred_fallthru
          _
      $region24: #{tpu_custom_call.1} parent=5 // pred_fallthru
        _
      %p154 = scmp.le.s32.totalorder 1, %s16
      %p155 = scmp.lt.s32.totalorder %s16, 3
      %p156 = pnand %p154, %p155
      %p157 = pneg %p156
      // Predicated region
      $region29: #{tpu_custom_call.1} parent=5 // pred_check
        _
      $region30: #{tpu_custom_call.1} parent=5 // pred_check_branch
        %159 = sbr.rel (%p156) target = $region32
      $region31: #{tpu_custom_call.1} parent=5 // pred_region
        %s160 = ssub.s32 %s16, 1
        %s161 = sand.u32 %s71, 1
        %s162 = scalar_lea.sflag [#allocation4], %s161
        %s163 = sand.u32 %s71, 1
        %s164 = smul.addr %s163, 625
        %s165 = scalar_lea.vmem [#allocation3], %s164
        // Predicated region
        $region33: #{tpu_custom_call.1} parent=31 // pred_check
          %p166 = pneg %p84
        $region34: #{tpu_custom_call.1} parent=31 // pred_check_branch
          %168 = sbr.rel (%p166) target = $region36
        $region35: #{tpu_custom_call.1} parent=31 // pred_region
          %169 = dma.done %s162, 10000
        $region36: #{tpu_custom_call.1} parent=31 // pred_fallthru
          _
        %p170 = pneg %p37
        %p171 = pneg %p34
        %p172 = pneg %p58
        %p173 = pneg %p55
        %s174 = sand.u32 %s71, 1
        %s175 = scalar_lea.sflag [#allocation4], %s174
        %s176 = sand.u32 %s71, 1
        %s177 = smul.addr %s176, 625
        %s178 = scalar_lea.vmem [#allocation3], %s177
        %p179 = pneg %p84
        %p180 = pneg %p81
        %p181 = pneg %p110
        %p182 = pneg %p107
        %s183 = sand.u32 %s97, 1
        %s184 = scalar_lea.sflag [#allocation5], %s183
        %s185 = sand.u32 %s97, 1
        %s186 = smul.addr %s185, 10000
        %s187 = scalar_lea.vmem [#allocation6], %s186
        %s188 = smul.u32 625, %s21
        %s189 = smul.u32 625, %s21
        %s190 = sld [smem:[#allocation2]]
        %v191 = vld [vmem:[%s1] sm:$0xff]
        %v192 = vld [vmem:[%s1 + $0x8] sm:$0xff]
        %v193 = vstv %s190
        %v194 = vmul.f32 %v191, %v193
        %v195 = vmul.f32 %v192, %v193
        %v196 = vld [vmem:[%s165] sm:$0xff]
        %v197 = vld [vmem:[%s165 + $0x8] sm:$0xff]
        %v198 = vld [vmem:[%s165 + $0x10] sm:$0xff]
        %v199 = vld [vmem:[%s165 + $0x18] sm:$0xff]
        %v200 = vld [vmem:[%s165 + $0x20] sm:$0xff]
        %v201 = vld [vmem:[%s165 + $0x28] sm:$0xff]
        %v202 = vld [vmem:[%s165 + $0x30] sm:$0xff]
        %v203 = vld [vmem:[%s165 + $0x38] sm:$0xff]
        %v204 = vld [vmem:[%s165 + $0x40] sm:$0xff]
        %v205 = vld [vmem:[%s165 + $0x48] sm:$0xff]
        %v206 = vld [vmem:[%s165 + $0x50] sm:$0xff]
        %v207 = vld [vmem:[%s165 + $0x58] sm:$0xff]
        %v208 = vld [vmem:[%s165 + $0x60] sm:$0xff]
        %v209 = vld [vmem:[%s165 + $0x68] sm:$0xff]
        %v210 = vld [vmem:[%s165 + $0x70] sm:$0xff]
        %v211 = vld [vmem:[%s165 + $0x78] sm:$0xff]
        %v212 = vld [vmem:[%s165 + $0x80] sm:$0xff]
        %v213 = vld [vmem:[%s165 + $0x88] sm:$0xff]
        %v214 = vld [vmem:[%s165 + $0x90] sm:$0xff]
        %v215 = vld [vmem:[%s165 + $0x98] sm:$0xff]
        %v216 = vld [vmem:[%s165 + $0xa0] sm:$0xff]
        %v217 = vld [vmem:[%s165 + $0xa8] sm:$0xff]
        %v218 = vld [vmem:[%s165 + $0xb0] sm:$0xff]
        %v219 = vld [vmem:[%s165 + $0xb8] sm:$0xff]
        %v220 = vld [vmem:[%s165 + $0xc0] sm:$0xff]
        %v221 = vld [vmem:[%s165 + $0xc8] sm:$0xff]
        %v222 = vld [vmem:[%s165 + $0xd0] sm:$0xff]
        %v223 = vld [vmem:[%s165 + $0xd8] sm:$0xff]
        %v224 = vld [vmem:[%s165 + $0xe0] sm:$0xff]
        %v225 = vld [vmem:[%s165 + $0xe8] sm:$0xff]
        %v226 = vld [vmem:[%s165 + $0xf0] sm:$0xff]
        %v227 = vld [vmem:[%s165 + $0xf8] sm:$0xff]
        %v228 = vld [vmem:[%s165 + $0x100] sm:$0xff]
        %v229 = vld [vmem:[%s165 + $0x108] sm:$0xff]
        %v230 = vld [vmem:[%s165 + $0x110] sm:$0xff]
        %v231 = vld [vmem:[%s165 + $0x118] sm:$0xff]
        %v232 = vld [vmem:[%s165 + $0x120] sm:$0xff]
        %v233 = vld [vmem:[%s165 + $0x128] sm:$0xff]
        %v234 = vld [vmem:[%s165 + $0x130] sm:$0xff]
        %v235 = vld [vmem:[%s165 + $0x138] sm:$0xff]
        %v236 = vld [vmem:[%s165 + $0x140] sm:$0xff]
        %v237 = vld [vmem:[%s165 + $0x148] sm:$0xff]
        %v238 = vld [vmem:[%s165 + $0x150] sm:$0xff]
        %v239 = vld [vmem:[%s165 + $0x158] sm:$0xff]
        %v240 = vld [vmem:[%s165 + $0x160] sm:$0xff]
        %v241 = vld [vmem:[%s165 + $0x168] sm:$0xff]
        %v242 = vld [vmem:[%s165 + $0x170] sm:$0xff]
        %v243 = vld [vmem:[%s165 + $0x178] sm:$0xff]
        %v244 = vld [vmem:[%s165 + $0x180] sm:$0xff]
        %v245 = vld [vmem:[%s165 + $0x188] sm:$0xff]
        %v246 = vld [vmem:[%s165 + $0x190] sm:$0xff]
        %v247 = vld [vmem:[%s165 + $0x198] sm:$0xff]
        %v248 = vld [vmem:[%s165 + $0x1a0] sm:$0xff]
        %v249 = vld [vmem:[%s165 + $0x1a8] sm:$0xff]
        %v250 = vld [vmem:[%s165 + $0x1b0] sm:$0xff]
        %v251 = vld [vmem:[%s165 + $0x1b8] sm:$0xff]
        %v252 = vld [vmem:[%s165 + $0x1c0] sm:$0xff]
        %v253 = vld [vmem:[%s165 + $0x1c8] sm:$0xff]
        %v254 = vld [vmem:[%s165 + $0x1d0] sm:$0xff]
        %v255 = vld [vmem:[%s165 + $0x1d8] sm:$0xff]
        %v256 = vld [vmem:[%s165 + $0x1e0] sm:$0xff]
        %v257 = vld [vmem:[%s165 + $0x1e8] sm:$0xff]
        %v258 = vld [vmem:[%s165 + $0x1f0] sm:$0xff]
        %v259 = vld [vmem:[%s165 + $0x1f8] sm:$0xff]
        %v260 = vld [vmem:[%s165 + $0x200] sm:$0xff]
        %v261 = vld [vmem:[%s165 + $0x208] sm:$0xff]
        %v262 = vld [vmem:[%s165 + $0x210] sm:$0xff]
        %v263 = vld [vmem:[%s165 + $0x218] sm:$0xff]
        %v264 = vld [vmem:[%s165 + $0x220] sm:$0xff]
        %v265 = vld [vmem:[%s165 + $0x228] sm:$0xff]
        %v266 = vld [vmem:[%s165 + $0x230] sm:$0xff]
        %v267 = vld [vmem:[%s165 + $0x238] sm:$0xff]
        %v268 = vld [vmem:[%s165 + $0x240] sm:$0xff]
        %v269 = vld [vmem:[%s165 + $0x248] sm:$0xff]
        %v270 = vld [vmem:[%s165 + $0x250] sm:$0xff]
        %v271 = vld [vmem:[%s165 + $0x258] sm:$0xff]
        %v272 = vld [vmem:[%s165 + $0x260] sm:$0xff]
        %v273 = vld [vmem:[%s165 + $0x268] sm:$0xff]
        %v274 = vld [vmem:[%s165 + $0x270] sm:$0x1]
        %v275 = vmul.f32 %v196, %v193
        %v276 = vmul.f32 %v197, %v193
        %v277 = vmul.f32 %v198, %v193
        %v278 = vmul.f32 %v199, %v193
        %v279 = vmul.f32 %v200, %v193
        %v280 = vmul.f32 %v201, %v193
        %v281 = vmul.f32 %v202, %v193
        %v282 = vmul.f32 %v203, %v193
        %v283 = vmul.f32 %v204, %v193
        %v284 = vmul.f32 %v205, %v193
        %v285 = vmul.f32 %v206, %v193
        %v286 = vmul.f32 %v207, %v193
        %v287 = vmul.f32 %v208, %v193
        %v288 = vmul.f32 %v209, %v193
        %v289 = vmul.f32 %v210, %v193
        %v290 = vmul.f32 %v211, %v193
        %v291 = vmul.f32 %v212, %v193
        %v292 = vmul.f32 %v213, %v193
        %v293 = vmul.f32 %v214, %v193
        %v294 = vmul.f32 %v215, %v193
        %v295 = vmul.f32 %v216, %v193
        %v296 = vmul.f32 %v217, %v193
        %v297 = vmul.f32 %v218, %v193
        %v298 = vmul.f32 %v219, %v193
        %v299 = vmul.f32 %v220, %v193
        %v300 = vmul.f32 %v221, %v193
        %v301 = vmul.f32 %v222, %v193
        %v302 = vmul.f32 %v223, %v193
        %v303 = vmul.f32 %v224, %v193
        %v304 = vmul.f32 %v225, %v193
        %v305 = vmul.f32 %v226, %v193
        %v306 = vmul.f32 %v227, %v193
        %v307 = vmul.f32 %v228, %v193
        %v308 = vmul.f32 %v229, %v193
        %v309 = vmul.f32 %v230, %v193
        %v310 = vmul.f32 %v231, %v193
        %v311 = vmul.f32 %v232, %v193
        %v312 = vmul.f32 %v233, %v193
        %v313 = vmul.f32 %v234, %v193
        %v314 = vmul.f32 %v235, %v193
        %v315 = vmul.f32 %v236, %v193
        %v316 = vmul.f32 %v237, %v193
        %v317 = vmul.f32 %v238, %v193
        %v318 = vmul.f32 %v239, %v193
        %v319 = vmul.f32 %v240, %v193
        %v320 = vmul.f32 %v241, %v193
        %v321 = vmul.f32 %v242, %v193
        %v322 = vmul.f32 %v243, %v193
        %v323 = vmul.f32 %v244, %v193
        %v324 = vmul.f32 %v245, %v193
        %v325 = vmul.f32 %v246, %v193
        %v326 = vmul.f32 %v247, %v193
        %v327 = vmul.f32 %v248, %v193
        %v328 = vmul.f32 %v249, %v193
        %v329 = vmul.f32 %v250, %v193
        %v330 = vmul.f32 %v251, %v193
        %v331 = vmul.f32 %v252, %v193
        %v332 = vmul.f32 %v253, %v193
        %v333 = vmul.f32 %v254, %v193
        %v334 = vmul.f32 %v255, %v193
        %v335 = vmul.f32 %v256, %v193
        %v336 = vmul.f32 %v257, %v193
        %v337 = vmul.f32 %v258, %v193
        %v338 = vmul.f32 %v259, %v193
        %v339 = vmul.f32 %v260, %v193
        %v340 = vmul.f32 %v261, %v193
        %v341 = vmul.f32 %v262, %v193
        %v342 = vmul.f32 %v263, %v193
        %v343 = vmul.f32 %v264, %v193
        %v344 = vmul.f32 %v265, %v193
        %v345 = vmul.f32 %v266, %v193
        %v346 = vmul.f32 %v267, %v193
        %v347 = vmul.f32 %v268, %v193
        %v348 = vmul.f32 %v269, %v193
        %v349 = vmul.f32 %v270, %v193
        %v350 = vmul.f32 %v271, %v193
        %v351 = vmul.f32 %v272, %v193
        %v352 = vmul.f32 %v273, %v193
        %v353 = vmul.f32 %v274, %v193
        %355 = vset.pattern.permute.xlu0 0
        %356 = vperm.xlu0 %355, %v194
        %v357 = vpop.permute.xlu0 %356
        %360 = vset.pattern.permute.xlu0 0
        %361 = vperm.xlu0 %360, %v195
        %v362 = vpop.permute.xlu0 %361
        %v443 = vlaneseq
        %v444 = vshrl.u32 %v443, 7
        %v445 = vsub.s32 0, %v444
        %v446 = vrot.slane %v275, %v445
        %v447 = vlaneseq
        %v448 = vshrl.u32 %v447, 7
        %v449 = vsub.s32 1, %v448
        %v450 = vrot.slane %v275, %v449
        %v451 = vlaneseq
        %v452 = vshrl.u32 %v451, 7
        %v453 = vsub.s32 2, %v452
        %v454 = vrot.slane %v275, %v453
        %v455 = vlaneseq
        %v456 = vshrl.u32 %v455, 7
        %v457 = vsub.s32 3, %v456
        %v458 = vrot.slane %v275, %v457
        %v459 = vlaneseq
        %v460 = vshrl.u32 %v459, 7
        %v461 = vsub.s32 4, %v460
        %v462 = vrot.slane %v275, %v461
        %v463 = vlaneseq
        %v464 = vshrl.u32 %v463, 7
        %v465 = vsub.s32 5, %v464
        %v466 = vrot.slane %v275, %v465
        %v467 = vlaneseq
        %v468 = vshrl.u32 %v467, 7
        %v469 = vsub.s32 6, %v468
        %v470 = vrot.slane %v275, %v469
        %v471 = vlaneseq
        %v472 = vshrl.u32 %v471, 7
        %v473 = vsub.s32 7, %v472
        %v474 = vrot.slane %v275, %v473
        %v475 = vlaneseq
        %v476 = vshrl.u32 %v475, 7
        %v477 = vsub.s32 0, %v476
        %v478 = vrot.slane %v276, %v477
        %v479 = vlaneseq
        %v480 = vshrl.u32 %v479, 7
        %v481 = vsub.s32 1, %v480
        %v482 = vrot.slane %v276, %v481
        %v483 = vlaneseq
        %v484 = vshrl.u32 %v483, 7
        %v485 = vsub.s32 2, %v484
        %v486 = vrot.slane %v276, %v485
        %v487 = vlaneseq
        %v488 = vshrl.u32 %v487, 7
        %v489 = vsub.s32 3, %v488
        %v490 = vrot.slane %v276, %v489
        %v491 = vlaneseq
        %v492 = vshrl.u32 %v491, 7
        %v493 = vsub.s32 4, %v492
        %v494 = vrot.slane %v276, %v493
        %v495 = vlaneseq
        %v496 = vshrl.u32 %v495, 7
        %v497 = vsub.s32 5, %v496
        %v498 = vrot.slane %v276, %v497
        %v499 = vlaneseq
        %v500 = vshrl.u32 %v499, 7
        %v501 = vsub.s32 6, %v500
        %v502 = vrot.slane %v276, %v501
        %v503 = vlaneseq
        %v504 = vshrl.u32 %v503, 7
        %v505 = vsub.s32 7, %v504
        %v506 = vrot.slane %v276, %v505
        %v507 = vlaneseq
        %v508 = vshrl.u32 %v507, 7
        %v509 = vsub.s32 0, %v508
        %v510 = vrot.slane %v277, %v509
        %v511 = vlaneseq
        %v512 = vshrl.u32 %v511, 7
        %v513 = vsub.s32 1, %v512
        %v514 = vrot.slane %v277, %v513
        %v515 = vlaneseq
        %v516 = vshrl.u32 %v515, 7
        %v517 = vsub.s32 2, %v516
        %v518 = vrot.slane %v277, %v517
        %v519 = vlaneseq
        %v520 = vshrl.u32 %v519, 7
        %v521 = vsub.s32 3, %v520
        %v522 = vrot.slane %v277, %v521
        %v523 = vlaneseq
        %v524 = vshrl.u32 %v523, 7
        %v525 = vsub.s32 4, %v524
        %v526 = vrot.slane %v277, %v525
        %v527 = vlaneseq
        %v528 = vshrl.u32 %v527, 7
        %v529 = vsub.s32 5, %v528
        %v530 = vrot.slane %v277, %v529
        %v531 = vlaneseq
        %v532 = vshrl.u32 %v531, 7
        %v533 = vsub.s32 6, %v532
        %v534 = vrot.slane %v277, %v533
        %v535 = vlaneseq
        %v536 = vshrl.u32 %v535, 7
        %v537 = vsub.s32 7, %v536
        %v538 = vrot.slane %v277, %v537
        %v539 = vlaneseq
        %v540 = vshrl.u32 %v539, 7
        %v541 = vsub.s32 0, %v540
        %v542 = vrot.slane %v278, %v541
        %v543 = vlaneseq
        %v544 = vshrl.u32 %v543, 7
        %v545 = vsub.s32 1, %v544
        %v546 = vrot.slane %v278, %v545
        %v547 = vlaneseq
        %v548 = vshrl.u32 %v547, 7
        %v549 = vsub.s32 2, %v548
        %v550 = vrot.slane %v278, %v549
        %v551 = vlaneseq
        %v552 = vshrl.u32 %v551, 7
        %v553 = vsub.s32 3, %v552
        %v554 = vrot.slane %v278, %v553
        %v555 = vlaneseq
        %v556 = vshrl.u32 %v555, 7
        %v557 = vsub.s32 4, %v556
        %v558 = vrot.slane %v278, %v557
        %v559 = vlaneseq
        %v560 = vshrl.u32 %v559, 7
        %v561 = vsub.s32 5, %v560
        %v562 = vrot.slane %v278, %v561
        %v563 = vlaneseq
        %v564 = vshrl.u32 %v563, 7
        %v565 = vsub.s32 6, %v564
        %v566 = vrot.slane %v278, %v565
        %v567 = vlaneseq
        %v568 = vshrl.u32 %v567, 7
        %v569 = vsub.s32 7, %v568
        %v570 = vrot.slane %v278, %v569
        %v571 = vlaneseq
        %v572 = vshrl.u32 %v571, 7
        %v573 = vsub.s32 0, %v572
        %v574 = vrot.slane %v279, %v573
        %v575 = vlaneseq
        %v576 = vshrl.u32 %v575, 7
        %v577 = vsub.s32 1, %v576
        %v578 = vrot.slane %v279, %v577
        %v579 = vlaneseq
        %v580 = vshrl.u32 %v579, 7
        %v581 = vsub.s32 2, %v580
        %v582 = vrot.slane %v279, %v581
        %v583 = vlaneseq
        %v584 = vshrl.u32 %v583, 7
        %v585 = vsub.s32 3, %v584
        %v586 = vrot.slane %v279, %v585
        %v587 = vlaneseq
        %v588 = vshrl.u32 %v587, 7
        %v589 = vsub.s32 4, %v588
        %v590 = vrot.slane %v279, %v589
        %v591 = vlaneseq
        %v592 = vshrl.u32 %v591, 7
        %v593 = vsub.s32 5, %v592
        %v594 = vrot.slane %v279, %v593
        %v595 = vlaneseq
        %v596 = vshrl.u32 %v595, 7
        %v597 = vsub.s32 6, %v596
        %v598 = vrot.slane %v279, %v597
        %v599 = vlaneseq
        %v600 = vshrl.u32 %v599, 7
        %v601 = vsub.s32 7, %v600
        %v602 = vrot.slane %v279, %v601
        %v603 = vlaneseq
        %v604 = vshrl.u32 %v603, 7
        %v605 = vsub.s32 0, %v604
        %v606 = vrot.slane %v280, %v605
        %v607 = vlaneseq
        %v608 = vshrl.u32 %v607, 7
        %v609 = vsub.s32 1, %v608
        %v610 = vrot.slane %v280, %v609
        %v611 = vlaneseq
        %v612 = vshrl.u32 %v611, 7
        %v613 = vsub.s32 2, %v612
        %v614 = vrot.slane %v280, %v613
        %v615 = vlaneseq
        %v616 = vshrl.u32 %v615, 7
        %v617 = vsub.s32 3, %v616
        %v618 = vrot.slane %v280, %v617
        %v619 = vlaneseq
        %v620 = vshrl.u32 %v619, 7
        %v621 = vsub.s32 4, %v620
        %v622 = vrot.slane %v280, %v621
        %v623 = vlaneseq
        %v624 = vshrl.u32 %v623, 7
        %v625 = vsub.s32 5, %v624
        %v626 = vrot.slane %v280, %v625
        %v627 = vlaneseq
        %v628 = vshrl.u32 %v627, 7
        %v629 = vsub.s32 6, %v628
        %v630 = vrot.slane %v280, %v629
        %v631 = vlaneseq
        %v632 = vshrl.u32 %v631, 7
        %v633 = vsub.s32 7, %v632
        %v634 = vrot.slane %v280, %v633
        %v635 = vlaneseq
        %v636 = vshrl.u32 %v635, 7
        %v637 = vsub.s32 0, %v636
        %v638 = vrot.slane %v281, %v637
        %v639 = vlaneseq
        %v640 = vshrl.u32 %v639, 7
        %v641 = vsub.s32 1, %v640
        %v642 = vrot.slane %v281, %v641
        %v643 = vlaneseq
        %v644 = vshrl.u32 %v643, 7
        %v645 = vsub.s32 2, %v644
        %v646 = vrot.slane %v281, %v645
        %v647 = vlaneseq
        %v648 = vshrl.u32 %v647, 7
        %v649 = vsub.s32 3, %v648
        %v650 = vrot.slane %v281, %v649
        %v651 = vlaneseq
        %v652 = vshrl.u32 %v651, 7
        %v653 = vsub.s32 4, %v652
        %v654 = vrot.slane %v281, %v653
        %v655 = vlaneseq
        %v656 = vshrl.u32 %v655, 7
        %v657 = vsub.s32 5, %v656
        %v658 = vrot.slane %v281, %v657
        %v659 = vlaneseq
        %v660 = vshrl.u32 %v659, 7
        %v661 = vsub.s32 6, %v660
        %v662 = vrot.slane %v281, %v661
        %v663 = vlaneseq
        %v664 = vshrl.u32 %v663, 7
        %v665 = vsub.s32 7, %v664
        %v666 = vrot.slane %v281, %v665
        %v667 = vlaneseq
        %v668 = vshrl.u32 %v667, 7
        %v669 = vsub.s32 0, %v668
        %v670 = vrot.slane %v282, %v669
        %v671 = vlaneseq
        %v672 = vshrl.u32 %v671, 7
        %v673 = vsub.s32 1, %v672
        %v674 = vrot.slane %v282, %v673
        %v675 = vlaneseq
        %v676 = vshrl.u32 %v675, 7
        %v677 = vsub.s32 2, %v676
        %v678 = vrot.slane %v282, %v677
        %v679 = vlaneseq
        %v680 = vshrl.u32 %v679, 7
        %v681 = vsub.s32 3, %v680
        %v682 = vrot.slane %v282, %v681
        %v683 = vlaneseq
        %v684 = vshrl.u32 %v683, 7
        %v685 = vsub.s32 4, %v684
        %v686 = vrot.slane %v282, %v685
        %v687 = vlaneseq
        %v688 = vshrl.u32 %v687, 7
        %v689 = vsub.s32 5, %v688
        %v690 = vrot.slane %v282, %v689
        %v691 = vlaneseq
        %v692 = vshrl.u32 %v691, 7
        %v693 = vsub.s32 6, %v692
        %v694 = vrot.slane %v282, %v693
        %v695 = vlaneseq
        %v696 = vshrl.u32 %v695, 7
        %v697 = vsub.s32 7, %v696
        %v698 = vrot.slane %v282, %v697
        %v699 = vlaneseq
        %v700 = vshrl.u32 %v699, 7
        %v701 = vsub.s32 0, %v700
        %v702 = vrot.slane %v283, %v701
        %v703 = vlaneseq
        %v704 = vshrl.u32 %v703, 7
        %v705 = vsub.s32 1, %v704
        %v706 = vrot.slane %v283, %v705
        %v707 = vlaneseq
        %v708 = vshrl.u32 %v707, 7
        %v709 = vsub.s32 2, %v708
        %v710 = vrot.slane %v283, %v709
        %v711 = vlaneseq
        %v712 = vshrl.u32 %v711, 7
        %v713 = vsub.s32 3, %v712
        %v714 = vrot.slane %v283, %v713
        %v715 = vlaneseq
        %v716 = vshrl.u32 %v715, 7
        %v717 = vsub.s32 4, %v716
        %v718 = vrot.slane %v283, %v717
        %v719 = vlaneseq
        %v720 = vshrl.u32 %v719, 7
        %v721 = vsub.s32 5, %v720
        %v722 = vrot.slane %v283, %v721
        %v723 = vlaneseq
        %v724 = vshrl.u32 %v723, 7
        %v725 = vsub.s32 6, %v724
        %v726 = vrot.slane %v283, %v725
        %v727 = vlaneseq
        %v728 = vshrl.u32 %v727, 7
        %v729 = vsub.s32 7, %v728
        %v730 = vrot.slane %v283, %v729
        %v731 = vlaneseq
        %v732 = vshrl.u32 %v731, 7
        %v733 = vsub.s32 0, %v732
        %v734 = vrot.slane %v284, %v733
        %v735 = vlaneseq
        %v736 = vshrl.u32 %v735, 7
        %v737 = vsub.s32 1, %v736
        %v738 = vrot.slane %v284, %v737
        %v739 = vlaneseq
        %v740 = vshrl.u32 %v739, 7
        %v741 = vsub.s32 2, %v740
        %v742 = vrot.slane %v284, %v741
        %v743 = vlaneseq
        %v744 = vshrl.u32 %v743, 7
        %v745 = vsub.s32 3, %v744
        %v746 = vrot.slane %v284, %v745
        %v747 = vlaneseq
        %v748 = vshrl.u32 %v747, 7
        %v749 = vsub.s32 4, %v748
        %v750 = vrot.slane %v284, %v749
        %v751 = vlaneseq
        %v752 = vshrl.u32 %v751, 7
        %v753 = vsub.s32 5, %v752
        %v754 = vrot.slane %v284, %v753
        %v755 = vlaneseq
        %v756 = vshrl.u32 %v755, 7
        %v757 = vsub.s32 6, %v756
        %v758 = vrot.slane %v284, %v757
        %v759 = vlaneseq
        %v760 = vshrl.u32 %v759, 7
        %v761 = vsub.s32 7, %v760
        %v762 = vrot.slane %v284, %v761
        %v763 = vlaneseq
        %v764 = vshrl.u32 %v763, 7
        %v765 = vsub.s32 0, %v764
        %v766 = vrot.slane %v285, %v765
        %v767 = vlaneseq
        %v768 = vshrl.u32 %v767, 7
        %v769 = vsub.s32 1, %v768
        %v770 = vrot.slane %v285, %v769
        %v771 = vlaneseq
        %v772 = vshrl.u32 %v771, 7
        %v773 = vsub.s32 2, %v772
        %v774 = vrot.slane %v285, %v773
        %v775 = vlaneseq
        %v776 = vshrl.u32 %v775, 7
        %v777 = vsub.s32 3, %v776
        %v778 = vrot.slane %v285, %v777
        %v779 = vlaneseq
        %v780 = vshrl.u32 %v779, 7
        %v781 = vsub.s32 4, %v780
        %v782 = vrot.slane %v285, %v781
        %v783 = vlaneseq
        %v784 = vshrl.u32 %v783, 7
        %v785 = vsub.s32 5, %v784
        %v786 = vrot.slane %v285, %v785
        %v787 = vlaneseq
        %v788 = vshrl.u32 %v787, 7
        %v789 = vsub.s32 6, %v788
        %v790 = vrot.slane %v285, %v789
        %v791 = vlaneseq
        %v792 = vshrl.u32 %v791, 7
        %v793 = vsub.s32 7, %v792
        %v794 = vrot.slane %v285, %v793
        %v795 = vlaneseq
        %v796 = vshrl.u32 %v795, 7
        %v797 = vsub.s32 0, %v796
        %v798 = vrot.slane %v286, %v797
        %v799 = vlaneseq
        %v800 = vshrl.u32 %v799, 7
        %v801 = vsub.s32 1, %v800
        %v802 = vrot.slane %v286, %v801
        %v803 = vlaneseq
        %v804 = vshrl.u32 %v803, 7
        %v805 = vsub.s32 2, %v804
        %v806 = vrot.slane %v286, %v805
        %v807 = vlaneseq
        %v808 = vshrl.u32 %v807, 7
        %v809 = vsub.s32 3, %v808
        %v810 = vrot.slane %v286, %v809
        %v811 = vlaneseq
        %v812 = vshrl.u32 %v811, 7
        %v813 = vsub.s32 4, %v812
        %v814 = vrot.slane %v286, %v813
        %v815 = vlaneseq
        %v816 = vshrl.u32 %v815, 7
        %v817 = vsub.s32 5, %v816
        %v818 = vrot.slane %v286, %v817
        %v819 = vlaneseq
        %v820 = vshrl.u32 %v819, 7
        %v821 = vsub.s32 6, %v820
        %v822 = vrot.slane %v286, %v821
        %v823 = vlaneseq
        %v824 = vshrl.u32 %v823, 7
        %v825 = vsub.s32 7, %v824
        %v826 = vrot.slane %v286, %v825
        %v827 = vlaneseq
        %v828 = vshrl.u32 %v827, 7
        %v829 = vsub.s32 0, %v828
        %v830 = vrot.slane %v287, %v829
        %v831 = vlaneseq
        %v832 = vshrl.u32 %v831, 7
        %v833 = vsub.s32 1, %v832
        %v834 = vrot.slane %v287, %v833
        %v835 = vlaneseq
        %v836 = vshrl.u32 %v835, 7
        %v837 = vsub.s32 2, %v836
        %v838 = vrot.slane %v287, %v837
        %v839 = vlaneseq
        %v840 = vshrl.u32 %v839, 7
        %v841 = vsub.s32 3, %v840
        %v842 = vrot.slane %v287, %v841
        %v843 = vlaneseq
        %v844 = vshrl.u32 %v843, 7
        %v845 = vsub.s32 4, %v844
        %v846 = vrot.slane %v287, %v845
        %v847 = vlaneseq
        %v848 = vshrl.u32 %v847, 7
        %v849 = vsub.s32 5, %v848
        %v850 = vrot.slane %v287, %v849
        %v851 = vlaneseq
        %v852 = vshrl.u32 %v851, 7
        %v853 = vsub.s32 6, %v852
        %v854 = vrot.slane %v287, %v853
        %v855 = vlaneseq
        %v856 = vshrl.u32 %v855, 7
        %v857 = vsub.s32 7, %v856
        %v858 = vrot.slane %v287, %v857
        %v859 = vlaneseq
        %v860 = vshrl.u32 %v859, 7
        %v861 = vsub.s32 0, %v860
        %v862 = vrot.slane %v288, %v861
        %v863 = vlaneseq
        %v864 = vshrl.u32 %v863, 7
        %v865 = vsub.s32 1, %v864
        %v866 = vrot.slane %v288, %v865
        %v867 = vlaneseq
        %v868 = vshrl.u32 %v867, 7
        %v869 = vsub.s32 2, %v868
        %v870 = vrot.slane %v288, %v869
        %v871 = vlaneseq
        %v872 = vshrl.u32 %v871, 7
        %v873 = vsub.s32 3, %v872
        %v874 = vrot.slane %v288, %v873
        %v875 = vlaneseq
        %v876 = vshrl.u32 %v875, 7
        %v877 = vsub.s32 4, %v876
        %v878 = vrot.slane %v288, %v877
        %v879 = vlaneseq
        %v880 = vshrl.u32 %v879, 7
        %v881 = vsub.s32 5, %v880
        %v882 = vrot.slane %v288, %v881
        %v883 = vlaneseq
        %v884 = vshrl.u32 %v883, 7
        %v885 = vsub.s32 6, %v884
        %v886 = vrot.slane %v288, %v885
        %v887 = vlaneseq
        %v888 = vshrl.u32 %v887, 7
        %v889 = vsub.s32 7, %v888
        %v890 = vrot.slane %v288, %v889
        %v891 = vlaneseq
        %v892 = vshrl.u32 %v891, 7
        %v893 = vsub.s32 0, %v892
        %v894 = vrot.slane %v289, %v893
        %v895 = vlaneseq
        %v896 = vshrl.u32 %v895, 7
        %v897 = vsub.s32 1, %v896
        %v898 = vrot.slane %v289, %v897
        %v899 = vlaneseq
        %v900 = vshrl.u32 %v899, 7
        %v901 = vsub.s32 2, %v900
        %v902 = vrot.slane %v289, %v901
        %v903 = vlaneseq
        %v904 = vshrl.u32 %v903, 7
        %v905 = vsub.s32 3, %v904
        %v906 = vrot.slane %v289, %v905
        %v907 = vlaneseq
        %v908 = vshrl.u32 %v907, 7
        %v909 = vsub.s32 4, %v908
        %v910 = vrot.slane %v289, %v909
        %v911 = vlaneseq
        %v912 = vshrl.u32 %v911, 7
        %v913 = vsub.s32 5, %v912
        %v914 = vrot.slane %v289, %v913
        %v915 = vlaneseq
        %v916 = vshrl.u32 %v915, 7
        %v917 = vsub.s32 6, %v916
        %v918 = vrot.slane %v289, %v917
        %v919 = vlaneseq
        %v920 = vshrl.u32 %v919, 7
        %v921 = vsub.s32 7, %v920
        %v922 = vrot.slane %v289, %v921
        %v923 = vlaneseq
        %v924 = vshrl.u32 %v923, 7
        %v925 = vsub.s32 0, %v924
        %v926 = vrot.slane %v290, %v925
        %v927 = vlaneseq
        %v928 = vshrl.u32 %v927, 7
        %v929 = vsub.s32 1, %v928
        %v930 = vrot.slane %v290, %v929
        %v931 = vlaneseq
        %v932 = vshrl.u32 %v931, 7
        %v933 = vsub.s32 2, %v932
        %v934 = vrot.slane %v290, %v933
        %v935 = vlaneseq
        %v936 = vshrl.u32 %v935, 7
        %v937 = vsub.s32 3, %v936
        %v938 = vrot.slane %v290, %v937
        %v939 = vlaneseq
        %v940 = vshrl.u32 %v939, 7
        %v941 = vsub.s32 4, %v940
        %v942 = vrot.slane %v290, %v941
        %v943 = vlaneseq
        %v944 = vshrl.u32 %v943, 7
        %v945 = vsub.s32 5, %v944
        %v946 = vrot.slane %v290, %v945
        %v947 = vlaneseq
        %v948 = vshrl.u32 %v947, 7
        %v949 = vsub.s32 6, %v948
        %v950 = vrot.slane %v290, %v949
        %v951 = vlaneseq
        %v952 = vshrl.u32 %v951, 7
        %v953 = vsub.s32 7, %v952
        %v954 = vrot.slane %v290, %v953
        %v955 = vlaneseq
        %v956 = vshrl.u32 %v955, 7
        %v957 = vsub.s32 0, %v956
        %v958 = vrot.slane %v291, %v957
        %v959 = vlaneseq
        %v960 = vshrl.u32 %v959, 7
        %v961 = vsub.s32 1, %v960
        %v962 = vrot.slane %v291, %v961
        %v963 = vlaneseq
        %v964 = vshrl.u32 %v963, 7
        %v965 = vsub.s32 2, %v964
        %v966 = vrot.slane %v291, %v965
        %v967 = vlaneseq
        %v968 = vshrl.u32 %v967, 7
        %v969 = vsub.s32 3, %v968
        %v970 = vrot.slane %v291, %v969
        %v971 = vlaneseq
        %v972 = vshrl.u32 %v971, 7
        %v973 = vsub.s32 4, %v972
        %v974 = vrot.slane %v291, %v973
        %v975 = vlaneseq
        %v976 = vshrl.u32 %v975, 7
        %v977 = vsub.s32 5, %v976
        %v978 = vrot.slane %v291, %v977
        %v979 = vlaneseq
        %v980 = vshrl.u32 %v979, 7
        %v981 = vsub.s32 6, %v980
        %v982 = vrot.slane %v291, %v981
        %v983 = vlaneseq
        %v984 = vshrl.u32 %v983, 7
        %v985 = vsub.s32 7, %v984
        %v986 = vrot.slane %v291, %v985
        %v987 = vlaneseq
        %v988 = vshrl.u32 %v987, 7
        %v989 = vsub.s32 0, %v988
        %v990 = vrot.slane %v292, %v989
        %v991 = vlaneseq
        %v992 = vshrl.u32 %v991, 7
        %v993 = vsub.s32 1, %v992
        %v994 = vrot.slane %v292, %v993
        %v995 = vlaneseq
        %v996 = vshrl.u32 %v995, 7
        %v997 = vsub.s32 2, %v996
        %v998 = vrot.slane %v292, %v997
        %v999 = vlaneseq
        %v1000 = vshrl.u32 %v999, 7
        %v1001 = vsub.s32 3, %v1000
        %v1002 = vrot.slane %v292, %v1001
        %v1003 = vlaneseq
        %v1004 = vshrl.u32 %v1003, 7
        %v1005 = vsub.s32 4, %v1004
        %v1006 = vrot.slane %v292, %v1005
        %v1007 = vlaneseq
        %v1008 = vshrl.u32 %v1007, 7
        %v1009 = vsub.s32 5, %v1008
        %v1010 = vrot.slane %v292, %v1009
        %v1011 = vlaneseq
        %v1012 = vshrl.u32 %v1011, 7
        %v1013 = vsub.s32 6, %v1012
        %v1014 = vrot.slane %v292, %v1013
        %v1015 = vlaneseq
        %v1016 = vshrl.u32 %v1015, 7
        %v1017 = vsub.s32 7, %v1016
        %v1018 = vrot.slane %v292, %v1017
        %v1019 = vlaneseq
        %v1020 = vshrl.u32 %v1019, 7
        %v1021 = vsub.s32 0, %v1020
        %v1022 = vrot.slane %v293, %v1021
        %v1023 = vlaneseq
        %v1024 = vshrl.u32 %v1023, 7
        %v1025 = vsub.s32 1, %v1024
        %v1026 = vrot.slane %v293, %v1025
        %v1027 = vlaneseq
        %v1028 = vshrl.u32 %v1027, 7
        %v1029 = vsub.s32 2, %v1028
        %v1030 = vrot.slane %v293, %v1029
        %v1031 = vlaneseq
        %v1032 = vshrl.u32 %v1031, 7
        %v1033 = vsub.s32 3, %v1032
        %v1034 = vrot.slane %v293, %v1033
        %v1035 = vlaneseq
        %v1036 = vshrl.u32 %v1035, 7
        %v1037 = vsub.s32 4, %v1036
        %v1038 = vrot.slane %v293, %v1037
        %v1039 = vlaneseq
        %v1040 = vshrl.u32 %v1039, 7
        %v1041 = vsub.s32 5, %v1040
        %v1042 = vrot.slane %v293, %v1041
        %v1043 = vlaneseq
        %v1044 = vshrl.u32 %v1043, 7
        %v1045 = vsub.s32 6, %v1044
        %v1046 = vrot.slane %v293, %v1045
        %v1047 = vlaneseq
        %v1048 = vshrl.u32 %v1047, 7
        %v1049 = vsub.s32 7, %v1048
        %v1050 = vrot.slane %v293, %v1049
        %v1051 = vlaneseq
        %v1052 = vshrl.u32 %v1051, 7
        %v1053 = vsub.s32 0, %v1052
        %v1054 = vrot.slane %v294, %v1053
        %v1055 = vlaneseq
        %v1056 = vshrl.u32 %v1055, 7
        %v1057 = vsub.s32 1, %v1056
        %v1058 = vrot.slane %v294, %v1057
        %v1059 = vlaneseq
        %v1060 = vshrl.u32 %v1059, 7
        %v1061 = vsub.s32 2, %v1060
        %v1062 = vrot.slane %v294, %v1061
        %v1063 = vlaneseq
        %v1064 = vshrl.u32 %v1063, 7
        %v1065 = vsub.s32 3, %v1064
        %v1066 = vrot.slane %v294, %v1065
        %v1067 = vlaneseq
        %v1068 = vshrl.u32 %v1067, 7
        %v1069 = vsub.s32 4, %v1068
        %v1070 = vrot.slane %v294, %v1069
        %v1071 = vlaneseq
        %v1072 = vshrl.u32 %v1071, 7
        %v1073 = vsub.s32 5, %v1072
        %v1074 = vrot.slane %v294, %v1073
        %v1075 = vlaneseq
        %v1076 = vshrl.u32 %v1075, 7
        %v1077 = vsub.s32 6, %v1076
        %v1078 = vrot.slane %v294, %v1077
        %v1079 = vlaneseq
        %v1080 = vshrl.u32 %v1079, 7
        %v1081 = vsub.s32 7, %v1080
        %v1082 = vrot.slane %v294, %v1081
        %v1083 = vlaneseq
        %v1084 = vshrl.u32 %v1083, 7
        %v1085 = vsub.s32 0, %v1084
        %v1086 = vrot.slane %v295, %v1085
        %v1087 = vlaneseq
        %v1088 = vshrl.u32 %v1087, 7
        %v1089 = vsub.s32 1, %v1088
        %v1090 = vrot.slane %v295, %v1089
        %v1091 = vlaneseq
        %v1092 = vshrl.u32 %v1091, 7
        %v1093 = vsub.s32 2, %v1092
        %v1094 = vrot.slane %v295, %v1093
        %v1095 = vlaneseq
        %v1096 = vshrl.u32 %v1095, 7
        %v1097 = vsub.s32 3, %v1096
        %v1098 = vrot.slane %v295, %v1097
        %v1099 = vlaneseq
        %v1100 = vshrl.u32 %v1099, 7
        %v1101 = vsub.s32 4, %v1100
        %v1102 = vrot.slane %v295, %v1101
        %v1103 = vlaneseq
        %v1104 = vshrl.u32 %v1103, 7
        %v1105 = vsub.s32 5, %v1104
        %v1106 = vrot.slane %v295, %v1105
        %v1107 = vlaneseq
        %v1108 = vshrl.u32 %v1107, 7
        %v1109 = vsub.s32 6, %v1108
        %v1110 = vrot.slane %v295, %v1109
        %v1111 = vlaneseq
        %v1112 = vshrl.u32 %v1111, 7
        %v1113 = vsub.s32 7, %v1112
        %v1114 = vrot.slane %v295, %v1113
        %v1115 = vlaneseq
        %v1116 = vshrl.u32 %v1115, 7
        %v1117 = vsub.s32 0, %v1116
        %v1118 = vrot.slane %v296, %v1117
        %v1119 = vlaneseq
        %v1120 = vshrl.u32 %v1119, 7
        %v1121 = vsub.s32 1, %v1120
        %v1122 = vrot.slane %v296, %v1121
        %v1123 = vlaneseq
        %v1124 = vshrl.u32 %v1123, 7
        %v1125 = vsub.s32 2, %v1124
        %v1126 = vrot.slane %v296, %v1125
        %v1127 = vlaneseq
        %v1128 = vshrl.u32 %v1127, 7
        %v1129 = vsub.s32 3, %v1128
        %v1130 = vrot.slane %v296, %v1129
        %v1131 = vlaneseq
        %v1132 = vshrl.u32 %v1131, 7
        %v1133 = vsub.s32 4, %v1132
        %v1134 = vrot.slane %v296, %v1133
        %v1135 = vlaneseq
        %v1136 = vshrl.u32 %v1135, 7
        %v1137 = vsub.s32 5, %v1136
        %v1138 = vrot.slane %v296, %v1137
        %v1139 = vlaneseq
        %v1140 = vshrl.u32 %v1139, 7
        %v1141 = vsub.s32 6, %v1140
        %v1142 = vrot.slane %v296, %v1141
        %v1143 = vlaneseq
        %v1144 = vshrl.u32 %v1143, 7
        %v1145 = vsub.s32 7, %v1144
        %v1146 = vrot.slane %v296, %v1145
        %v1147 = vlaneseq
        %v1148 = vshrl.u32 %v1147, 7
        %v1149 = vsub.s32 0, %v1148
        %v1150 = vrot.slane %v297, %v1149
        %v1151 = vlaneseq
        %v1152 = vshrl.u32 %v1151, 7
        %v1153 = vsub.s32 1, %v1152
        %v1154 = vrot.slane %v297, %v1153
        %v1155 = vlaneseq
        %v1156 = vshrl.u32 %v1155, 7
        %v1157 = vsub.s32 2, %v1156
        %v1158 = vrot.slane %v297, %v1157
        %v1159 = vlaneseq
        %v1160 = vshrl.u32 %v1159, 7
        %v1161 = vsub.s32 3, %v1160
        %v1162 = vrot.slane %v297, %v1161
        %v1163 = vlaneseq
        %v1164 = vshrl.u32 %v1163, 7
        %v1165 = vsub.s32 4, %v1164
        %v1166 = vrot.slane %v297, %v1165
        %v1167 = vlaneseq
        %v1168 = vshrl.u32 %v1167, 7
        %v1169 = vsub.s32 5, %v1168
        %v1170 = vrot.slane %v297, %v1169
        %v1171 = vlaneseq
        %v1172 = vshrl.u32 %v1171, 7
        %v1173 = vsub.s32 6, %v1172
        %v1174 = vrot.slane %v297, %v1173
        %v1175 = vlaneseq
        %v1176 = vshrl.u32 %v1175, 7
        %v1177 = vsub.s32 7, %v1176
        %v1178 = vrot.slane %v297, %v1177
        %v1179 = vlaneseq
        %v1180 = vshrl.u32 %v1179, 7
        %v1181 = vsub.s32 0, %v1180
        %v1182 = vrot.slane %v298, %v1181
        %v1183 = vlaneseq
        %v1184 = vshrl.u32 %v1183, 7
        %v1185 = vsub.s32 1, %v1184
        %v1186 = vrot.slane %v298, %v1185
        %v1187 = vlaneseq
        %v1188 = vshrl.u32 %v1187, 7
        %v1189 = vsub.s32 2, %v1188
        %v1190 = vrot.slane %v298, %v1189
        %v1191 = vlaneseq
        %v1192 = vshrl.u32 %v1191, 7
        %v1193 = vsub.s32 3, %v1192
        %v1194 = vrot.slane %v298, %v1193
        %v1195 = vlaneseq
        %v1196 = vshrl.u32 %v1195, 7
        %v1197 = vsub.s32 4, %v1196
        %v1198 = vrot.slane %v298, %v1197
        %v1199 = vlaneseq
        %v1200 = vshrl.u32 %v1199, 7
        %v1201 = vsub.s32 5, %v1200
        %v1202 = vrot.slane %v298, %v1201
        %v1203 = vlaneseq
        %v1204 = vshrl.u32 %v1203, 7
        %v1205 = vsub.s32 6, %v1204
        %v1206 = vrot.slane %v298, %v1205
        %v1207 = vlaneseq
        %v1208 = vshrl.u32 %v1207, 7
        %v1209 = vsub.s32 7, %v1208
        %v1210 = vrot.slane %v298, %v1209
        %v1211 = vlaneseq
        %v1212 = vshrl.u32 %v1211, 7
        %v1213 = vsub.s32 0, %v1212
        %v1214 = vrot.slane %v299, %v1213
        %v1215 = vlaneseq
        %v1216 = vshrl.u32 %v1215, 7
        %v1217 = vsub.s32 1, %v1216
        %v1218 = vrot.slane %v299, %v1217
        %v1219 = vlaneseq
        %v1220 = vshrl.u32 %v1219, 7
        %v1221 = vsub.s32 2, %v1220
        %v1222 = vrot.slane %v299, %v1221
        %v1223 = vlaneseq
        %v1224 = vshrl.u32 %v1223, 7
        %v1225 = vsub.s32 3, %v1224
        %v1226 = vrot.slane %v299, %v1225
        %v1227 = vlaneseq
        %v1228 = vshrl.u32 %v1227, 7
        %v1229 = vsub.s32 4, %v1228
        %v1230 = vrot.slane %v299, %v1229
        %v1231 = vlaneseq
        %v1232 = vshrl.u32 %v1231, 7
        %v1233 = vsub.s32 5, %v1232
        %v1234 = vrot.slane %v299, %v1233
        %v1235 = vlaneseq
        %v1236 = vshrl.u32 %v1235, 7
        %v1237 = vsub.s32 6, %v1236
        %v1238 = vrot.slane %v299, %v1237
        %v1239 = vlaneseq
        %v1240 = vshrl.u32 %v1239, 7
        %v1241 = vsub.s32 7, %v1240
        %v1242 = vrot.slane %v299, %v1241
        %v1243 = vlaneseq
        %v1244 = vshrl.u32 %v1243, 7
        %v1245 = vsub.s32 0, %v1244
        %v1246 = vrot.slane %v300, %v1245
        %v1247 = vlaneseq
        %v1248 = vshrl.u32 %v1247, 7
        %v1249 = vsub.s32 1, %v1248
        %v1250 = vrot.slane %v300, %v1249
        %v1251 = vlaneseq
        %v1252 = vshrl.u32 %v1251, 7
        %v1253 = vsub.s32 2, %v1252
        %v1254 = vrot.slane %v300, %v1253
        %v1255 = vlaneseq
        %v1256 = vshrl.u32 %v1255, 7
        %v1257 = vsub.s32 3, %v1256
        %v1258 = vrot.slane %v300, %v1257
        %v1259 = vlaneseq
        %v1260 = vshrl.u32 %v1259, 7
        %v1261 = vsub.s32 4, %v1260
        %v1262 = vrot.slane %v300, %v1261
        %v1263 = vlaneseq
        %v1264 = vshrl.u32 %v1263, 7
        %v1265 = vsub.s32 5, %v1264
        %v1266 = vrot.slane %v300, %v1265
        %v1267 = vlaneseq
        %v1268 = vshrl.u32 %v1267, 7
        %v1269 = vsub.s32 6, %v1268
        %v1270 = vrot.slane %v300, %v1269
        %v1271 = vlaneseq
        %v1272 = vshrl.u32 %v1271, 7
        %v1273 = vsub.s32 7, %v1272
        %v1274 = vrot.slane %v300, %v1273
        %v1275 = vlaneseq
        %v1276 = vshrl.u32 %v1275, 7
        %v1277 = vsub.s32 0, %v1276
        %v1278 = vrot.slane %v301, %v1277
        %v1279 = vlaneseq
        %v1280 = vshrl.u32 %v1279, 7
        %v1281 = vsub.s32 1, %v1280
        %v1282 = vrot.slane %v301, %v1281
        %v1283 = vlaneseq
        %v1284 = vshrl.u32 %v1283, 7
        %v1285 = vsub.s32 2, %v1284
        %v1286 = vrot.slane %v301, %v1285
        %v1287 = vlaneseq
        %v1288 = vshrl.u32 %v1287, 7
        %v1289 = vsub.s32 3, %v1288
        %v1290 = vrot.slane %v301, %v1289
        %v1291 = vlaneseq
        %v1292 = vshrl.u32 %v1291, 7
        %v1293 = vsub.s32 4, %v1292
        %v1294 = vrot.slane %v301, %v1293
        %v1295 = vlaneseq
        %v1296 = vshrl.u32 %v1295, 7
        %v1297 = vsub.s32 5, %v1296
        %v1298 = vrot.slane %v301, %v1297
        %v1299 = vlaneseq
        %v1300 = vshrl.u32 %v1299, 7
        %v1301 = vsub.s32 6, %v1300
        %v1302 = vrot.slane %v301, %v1301
        %v1303 = vlaneseq
        %v1304 = vshrl.u32 %v1303, 7
        %v1305 = vsub.s32 7, %v1304
        %v1306 = vrot.slane %v301, %v1305
        %v1307 = vlaneseq
        %v1308 = vshrl.u32 %v1307, 7
        %v1309 = vsub.s32 0, %v1308
        %v1310 = vrot.slane %v302, %v1309
        %v1311 = vlaneseq
        %v1312 = vshrl.u32 %v1311, 7
        %v1313 = vsub.s32 1, %v1312
        %v1314 = vrot.slane %v302, %v1313
        %v1315 = vlaneseq
        %v1316 = vshrl.u32 %v1315, 7
        %v1317 = vsub.s32 2, %v1316
        %v1318 = vrot.slane %v302, %v1317
        %v1319 = vlaneseq
        %v1320 = vshrl.u32 %v1319, 7
        %v1321 = vsub.s32 3, %v1320
        %v1322 = vrot.slane %v302, %v1321
        %v1323 = vlaneseq
        %v1324 = vshrl.u32 %v1323, 7
        %v1325 = vsub.s32 4, %v1324
        %v1326 = vrot.slane %v302, %v1325
        %v1327 = vlaneseq
        %v1328 = vshrl.u32 %v1327, 7
        %v1329 = vsub.s32 5, %v1328
        %v1330 = vrot.slane %v302, %v1329
        %v1331 = vlaneseq
        %v1332 = vshrl.u32 %v1331, 7
        %v1333 = vsub.s32 6, %v1332
        %v1334 = vrot.slane %v302, %v1333
        %v1335 = vlaneseq
        %v1336 = vshrl.u32 %v1335, 7
        %v1337 = vsub.s32 7, %v1336
        %v1338 = vrot.slane %v302, %v1337
        %v1339 = vlaneseq
        %v1340 = vshrl.u32 %v1339, 7
        %v1341 = vsub.s32 0, %v1340
        %v1342 = vrot.slane %v303, %v1341
        %v1343 = vlaneseq
        %v1344 = vshrl.u32 %v1343, 7
        %v1345 = vsub.s32 1, %v1344
        %v1346 = vrot.slane %v303, %v1345
        %v1347 = vlaneseq
        %v1348 = vshrl.u32 %v1347, 7
        %v1349 = vsub.s32 2, %v1348
        %v1350 = vrot.slane %v303, %v1349
        %v1351 = vlaneseq
        %v1352 = vshrl.u32 %v1351, 7
        %v1353 = vsub.s32 3, %v1352
        %v1354 = vrot.slane %v303, %v1353
        %v1355 = vlaneseq
        %v1356 = vshrl.u32 %v1355, 7
        %v1357 = vsub.s32 4, %v1356
        %v1358 = vrot.slane %v303, %v1357
        %v1359 = vlaneseq
        %v1360 = vshrl.u32 %v1359, 7
        %v1361 = vsub.s32 5, %v1360
        %v1362 = vrot.slane %v303, %v1361
        %v1363 = vlaneseq
        %v1364 = vshrl.u32 %v1363, 7
        %v1365 = vsub.s32 6, %v1364
        %v1366 = vrot.slane %v303, %v1365
        %v1367 = vlaneseq
        %v1368 = vshrl.u32 %v1367, 7
        %v1369 = vsub.s32 7, %v1368
        %v1370 = vrot.slane %v303, %v1369
        %v1371 = vlaneseq
        %v1372 = vshrl.u32 %v1371, 7
        %v1373 = vsub.s32 0, %v1372
        %v1374 = vrot.slane %v304, %v1373
        %v1375 = vlaneseq
        %v1376 = vshrl.u32 %v1375, 7
        %v1377 = vsub.s32 1, %v1376
        %v1378 = vrot.slane %v304, %v1377
        %v1379 = vlaneseq
        %v1380 = vshrl.u32 %v1379, 7
        %v1381 = vsub.s32 2, %v1380
        %v1382 = vrot.slane %v304, %v1381
        %v1383 = vlaneseq
        %v1384 = vshrl.u32 %v1383, 7
        %v1385 = vsub.s32 3, %v1384
        %v1386 = vrot.slane %v304, %v1385
        %v1387 = vlaneseq
        %v1388 = vshrl.u32 %v1387, 7
        %v1389 = vsub.s32 4, %v1388
        %v1390 = vrot.slane %v304, %v1389
        %v1391 = vlaneseq
        %v1392 = vshrl.u32 %v1391, 7
        %v1393 = vsub.s32 5, %v1392
        %v1394 = vrot.slane %v304, %v1393
        %v1395 = vlaneseq
        %v1396 = vshrl.u32 %v1395, 7
        %v1397 = vsub.s32 6, %v1396
        %v1398 = vrot.slane %v304, %v1397
        %v1399 = vlaneseq
        %v1400 = vshrl.u32 %v1399, 7
        %v1401 = vsub.s32 7, %v1400
        %v1402 = vrot.slane %v304, %v1401
        %v1403 = vlaneseq
        %v1404 = vshrl.u32 %v1403, 7
        %v1405 = vsub.s32 0, %v1404
        %v1406 = vrot.slane %v305, %v1405
        %v1407 = vlaneseq
        %v1408 = vshrl.u32 %v1407, 7
        %v1409 = vsub.s32 1, %v1408
        %v1410 = vrot.slane %v305, %v1409
        %v1411 = vlaneseq
        %v1412 = vshrl.u32 %v1411, 7
        %v1413 = vsub.s32 2, %v1412
        %v1414 = vrot.slane %v305, %v1413
        %v1415 = vlaneseq
        %v1416 = vshrl.u32 %v1415, 7
        %v1417 = vsub.s32 3, %v1416
        %v1418 = vrot.slane %v305, %v1417
        %v1419 = vlaneseq
        %v1420 = vshrl.u32 %v1419, 7
        %v1421 = vsub.s32 4, %v1420
        %v1422 = vrot.slane %v305, %v1421
        %v1423 = vlaneseq
        %v1424 = vshrl.u32 %v1423, 7
        %v1425 = vsub.s32 5, %v1424
        %v1426 = vrot.slane %v305, %v1425
        %v1427 = vlaneseq
        %v1428 = vshrl.u32 %v1427, 7
        %v1429 = vsub.s32 6, %v1428
        %v1430 = vrot.slane %v305, %v1429
        %v1431 = vlaneseq
        %v1432 = vshrl.u32 %v1431, 7
        %v1433 = vsub.s32 7, %v1432
        %v1434 = vrot.slane %v305, %v1433
        %v1435 = vlaneseq
        %v1436 = vshrl.u32 %v1435, 7
        %v1437 = vsub.s32 0, %v1436
        %v1438 = vrot.slane %v306, %v1437
        %v1439 = vlaneseq
        %v1440 = vshrl.u32 %v1439, 7
        %v1441 = vsub.s32 1, %v1440
        %v1442 = vrot.slane %v306, %v1441
        %v1443 = vlaneseq
        %v1444 = vshrl.u32 %v1443, 7
        %v1445 = vsub.s32 2, %v1444
        %v1446 = vrot.slane %v306, %v1445
        %v1447 = vlaneseq
        %v1448 = vshrl.u32 %v1447, 7
        %v1449 = vsub.s32 3, %v1448
        %v1450 = vrot.slane %v306, %v1449
        %v1451 = vlaneseq
        %v1452 = vshrl.u32 %v1451, 7
        %v1453 = vsub.s32 4, %v1452
        %v1454 = vrot.slane %v306, %v1453
        %v1455 = vlaneseq
        %v1456 = vshrl.u32 %v1455, 7
        %v1457 = vsub.s32 5, %v1456
        %v1458 = vrot.slane %v306, %v1457
        %v1459 = vlaneseq
        %v1460 = vshrl.u32 %v1459, 7
        %v1461 = vsub.s32 6, %v1460
        %v1462 = vrot.slane %v306, %v1461
        %v1463 = vlaneseq
        %v1464 = vshrl.u32 %v1463, 7
        %v1465 = vsub.s32 7, %v1464
        %v1466 = vrot.slane %v306, %v1465
        %v1467 = vlaneseq
        %v1468 = vshrl.u32 %v1467, 7
        %v1469 = vsub.s32 0, %v1468
        %v1470 = vrot.slane %v307, %v1469
        %v1471 = vlaneseq
        %v1472 = vshrl.u32 %v1471, 7
        %v1473 = vsub.s32 1, %v1472
        %v1474 = vrot.slane %v307, %v1473
        %v1475 = vlaneseq
        %v1476 = vshrl.u32 %v1475, 7
        %v1477 = vsub.s32 2, %v1476
        %v1478 = vrot.slane %v307, %v1477
        %v1479 = vlaneseq
        %v1480 = vshrl.u32 %v1479, 7
        %v1481 = vsub.s32 3, %v1480
        %v1482 = vrot.slane %v307, %v1481
        %v1483 = vlaneseq
        %v1484 = vshrl.u32 %v1483, 7
        %v1485 = vsub.s32 4, %v1484
        %v1486 = vrot.slane %v307, %v1485
        %v1487 = vlaneseq
        %v1488 = vshrl.u32 %v1487, 7
        %v1489 = vsub.s32 5, %v1488
        %v1490 = vrot.slane %v307, %v1489
        %v1491 = vlaneseq
        %v1492 = vshrl.u32 %v1491, 7
        %v1493 = vsub.s32 6, %v1492
        %v1494 = vrot.slane %v307, %v1493
        %v1495 = vlaneseq
        %v1496 = vshrl.u32 %v1495, 7
        %v1497 = vsub.s32 7, %v1496
        %v1498 = vrot.slane %v307, %v1497
        %v1499 = vlaneseq
        %v1500 = vshrl.u32 %v1499, 7
        %v1501 = vsub.s32 0, %v1500
        %v1502 = vrot.slane %v308, %v1501
        %v1503 = vlaneseq
        %v1504 = vshrl.u32 %v1503, 7
        %v1505 = vsub.s32 1, %v1504
        %v1506 = vrot.slane %v308, %v1505
        %v1507 = vlaneseq
        %v1508 = vshrl.u32 %v1507, 7
        %v1509 = vsub.s32 2, %v1508
        %v1510 = vrot.slane %v308, %v1509
        %v1511 = vlaneseq
        %v1512 = vshrl.u32 %v1511, 7
        %v1513 = vsub.s32 3, %v1512
        %v1514 = vrot.slane %v308, %v1513
        %v1515 = vlaneseq
        %v1516 = vshrl.u32 %v1515, 7
        %v1517 = vsub.s32 4, %v1516
        %v1518 = vrot.slane %v308, %v1517
        %v1519 = vlaneseq
        %v1520 = vshrl.u32 %v1519, 7
        %v1521 = vsub.s32 5, %v1520
        %v1522 = vrot.slane %v308, %v1521
        %v1523 = vlaneseq
        %v1524 = vshrl.u32 %v1523, 7
        %v1525 = vsub.s32 6, %v1524
        %v1526 = vrot.slane %v308, %v1525
        %v1527 = vlaneseq
        %v1528 = vshrl.u32 %v1527, 7
        %v1529 = vsub.s32 7, %v1528
        %v1530 = vrot.slane %v308, %v1529
        %v1531 = vlaneseq
        %v1532 = vshrl.u32 %v1531, 7
        %v1533 = vsub.s32 0, %v1532
        %v1534 = vrot.slane %v309, %v1533
        %v1535 = vlaneseq
        %v1536 = vshrl.u32 %v1535, 7
        %v1537 = vsub.s32 1, %v1536
        %v1538 = vrot.slane %v309, %v1537
        %v1539 = vlaneseq
        %v1540 = vshrl.u32 %v1539, 7
        %v1541 = vsub.s32 2, %v1540
        %v1542 = vrot.slane %v309, %v1541
        %v1543 = vlaneseq
        %v1544 = vshrl.u32 %v1543, 7
        %v1545 = vsub.s32 3, %v1544
        %v1546 = vrot.slane %v309, %v1545
        %v1547 = vlaneseq
        %v1548 = vshrl.u32 %v1547, 7
        %v1549 = vsub.s32 4, %v1548
        %v1550 = vrot.slane %v309, %v1549
        %v1551 = vlaneseq
        %v1552 = vshrl.u32 %v1551, 7
        %v1553 = vsub.s32 5, %v1552
        %v1554 = vrot.slane %v309, %v1553
        %v1555 = vlaneseq
        %v1556 = vshrl.u32 %v1555, 7
        %v1557 = vsub.s32 6, %v1556
        %v1558 = vrot.slane %v309, %v1557
        %v1559 = vlaneseq
        %v1560 = vshrl.u32 %v1559, 7
        %v1561 = vsub.s32 7, %v1560
        %v1562 = vrot.slane %v309, %v1561
        %v1563 = vlaneseq
        %v1564 = vshrl.u32 %v1563, 7
        %v1565 = vsub.s32 0, %v1564
        %v1566 = vrot.slane %v310, %v1565
        %v1567 = vlaneseq
        %v1568 = vshrl.u32 %v1567, 7
        %v1569 = vsub.s32 1, %v1568
        %v1570 = vrot.slane %v310, %v1569
        %v1571 = vlaneseq
        %v1572 = vshrl.u32 %v1571, 7
        %v1573 = vsub.s32 2, %v1572
        %v1574 = vrot.slane %v310, %v1573
        %v1575 = vlaneseq
        %v1576 = vshrl.u32 %v1575, 7
        %v1577 = vsub.s32 3, %v1576
        %v1578 = vrot.slane %v310, %v1577
        %v1579 = vlaneseq
        %v1580 = vshrl.u32 %v1579, 7
        %v1581 = vsub.s32 4, %v1580
        %v1582 = vrot.slane %v310, %v1581
        %v1583 = vlaneseq
        %v1584 = vshrl.u32 %v1583, 7
        %v1585 = vsub.s32 5, %v1584
        %v1586 = vrot.slane %v310, %v1585
        %v1587 = vlaneseq
        %v1588 = vshrl.u32 %v1587, 7
        %v1589 = vsub.s32 6, %v1588
        %v1590 = vrot.slane %v310, %v1589
        %v1591 = vlaneseq
        %v1592 = vshrl.u32 %v1591, 7
        %v1593 = vsub.s32 7, %v1592
        %v1594 = vrot.slane %v310, %v1593
        %v1595 = vlaneseq
        %v1596 = vshrl.u32 %v1595, 7
        %v1597 = vsub.s32 0, %v1596
        %v1598 = vrot.slane %v311, %v1597
        %v1599 = vlaneseq
        %v1600 = vshrl.u32 %v1599, 7
        %v1601 = vsub.s32 1, %v1600
        %v1602 = vrot.slane %v311, %v1601
        %v1603 = vlaneseq
        %v1604 = vshrl.u32 %v1603, 7
        %v1605 = vsub.s32 2, %v1604
        %v1606 = vrot.slane %v311, %v1605
        %v1607 = vlaneseq
        %v1608 = vshrl.u32 %v1607, 7
        %v1609 = vsub.s32 3, %v1608
        %v1610 = vrot.slane %v311, %v1609
        %v1611 = vlaneseq
        %v1612 = vshrl.u32 %v1611, 7
        %v1613 = vsub.s32 4, %v1612
        %v1614 = vrot.slane %v311, %v1613
        %v1615 = vlaneseq
        %v1616 = vshrl.u32 %v1615, 7
        %v1617 = vsub.s32 5, %v1616
        %v1618 = vrot.slane %v311, %v1617
        %v1619 = vlaneseq
        %v1620 = vshrl.u32 %v1619, 7
        %v1621 = vsub.s32 6, %v1620
        %v1622 = vrot.slane %v311, %v1621
        %v1623 = vlaneseq
        %v1624 = vshrl.u32 %v1623, 7
        %v1625 = vsub.s32 7, %v1624
        %v1626 = vrot.slane %v311, %v1625
        %v1627 = vlaneseq
        %v1628 = vshrl.u32 %v1627, 7
        %v1629 = vsub.s32 0, %v1628
        %v1630 = vrot.slane %v312, %v1629
        %v1631 = vlaneseq
        %v1632 = vshrl.u32 %v1631, 7
        %v1633 = vsub.s32 1, %v1632
        %v1634 = vrot.slane %v312, %v1633
        %v1635 = vlaneseq
        %v1636 = vshrl.u32 %v1635, 7
        %v1637 = vsub.s32 2, %v1636
        %v1638 = vrot.slane %v312, %v1637
        %v1639 = vlaneseq
        %v1640 = vshrl.u32 %v1639, 7
        %v1641 = vsub.s32 3, %v1640
        %v1642 = vrot.slane %v312, %v1641
        %v1643 = vlaneseq
        %v1644 = vshrl.u32 %v1643, 7
        %v1645 = vsub.s32 4, %v1644
        %v1646 = vrot.slane %v312, %v1645
        %v1647 = vlaneseq
        %v1648 = vshrl.u32 %v1647, 7
        %v1649 = vsub.s32 5, %v1648
        %v1650 = vrot.slane %v312, %v1649
        %v1651 = vlaneseq
        %v1652 = vshrl.u32 %v1651, 7
        %v1653 = vsub.s32 6, %v1652
        %v1654 = vrot.slane %v312, %v1653
        %v1655 = vlaneseq
        %v1656 = vshrl.u32 %v1655, 7
        %v1657 = vsub.s32 7, %v1656
        %v1658 = vrot.slane %v312, %v1657
        %v1659 = vlaneseq
        %v1660 = vshrl.u32 %v1659, 7
        %v1661 = vsub.s32 0, %v1660
        %v1662 = vrot.slane %v313, %v1661
        %v1663 = vlaneseq
        %v1664 = vshrl.u32 %v1663, 7
        %v1665 = vsub.s32 1, %v1664
        %v1666 = vrot.slane %v313, %v1665
        %v1667 = vlaneseq
        %v1668 = vshrl.u32 %v1667, 7
        %v1669 = vsub.s32 2, %v1668
        %v1670 = vrot.slane %v313, %v1669
        %v1671 = vlaneseq
        %v1672 = vshrl.u32 %v1671, 7
        %v1673 = vsub.s32 3, %v1672
        %v1674 = vrot.slane %v313, %v1673
        %v1675 = vlaneseq
        %v1676 = vshrl.u32 %v1675, 7
        %v1677 = vsub.s32 4, %v1676
        %v1678 = vrot.slane %v313, %v1677
        %v1679 = vlaneseq
        %v1680 = vshrl.u32 %v1679, 7
        %v1681 = vsub.s32 5, %v1680
        %v1682 = vrot.slane %v313, %v1681
        %v1683 = vlaneseq
        %v1684 = vshrl.u32 %v1683, 7
        %v1685 = vsub.s32 6, %v1684
        %v1686 = vrot.slane %v313, %v1685
        %v1687 = vlaneseq
        %v1688 = vshrl.u32 %v1687, 7
        %v1689 = vsub.s32 7, %v1688
        %v1690 = vrot.slane %v313, %v1689
        %v1691 = vlaneseq
        %v1692 = vshrl.u32 %v1691, 7
        %v1693 = vsub.s32 0, %v1692
        %v1694 = vrot.slane %v314, %v1693
        %v1695 = vlaneseq
        %v1696 = vshrl.u32 %v1695, 7
        %v1697 = vsub.s32 1, %v1696
        %v1698 = vrot.slane %v314, %v1697
        %v1699 = vlaneseq
        %v1700 = vshrl.u32 %v1699, 7
        %v1701 = vsub.s32 2, %v1700
        %v1702 = vrot.slane %v314, %v1701
        %v1703 = vlaneseq
        %v1704 = vshrl.u32 %v1703, 7
        %v1705 = vsub.s32 3, %v1704
        %v1706 = vrot.slane %v314, %v1705
        %v1707 = vlaneseq
        %v1708 = vshrl.u32 %v1707, 7
        %v1709 = vsub.s32 4, %v1708
        %v1710 = vrot.slane %v314, %v1709
        %v1711 = vlaneseq
        %v1712 = vshrl.u32 %v1711, 7
        %v1713 = vsub.s32 5, %v1712
        %v1714 = vrot.slane %v314, %v1713
        %v1715 = vlaneseq
        %v1716 = vshrl.u32 %v1715, 7
        %v1717 = vsub.s32 6, %v1716
        %v1718 = vrot.slane %v314, %v1717
        %v1719 = vlaneseq
        %v1720 = vshrl.u32 %v1719, 7
        %v1721 = vsub.s32 7, %v1720
        %v1722 = vrot.slane %v314, %v1721
        %v1723 = vlaneseq
        %v1724 = vshrl.u32 %v1723, 7
        %v1725 = vsub.s32 0, %v1724
        %v1726 = vrot.slane %v315, %v1725
        %v1727 = vlaneseq
        %v1728 = vshrl.u32 %v1727, 7
        %v1729 = vsub.s32 1, %v1728
        %v1730 = vrot.slane %v315, %v1729
        %v1731 = vlaneseq
        %v1732 = vshrl.u32 %v1731, 7
        %v1733 = vsub.s32 2, %v1732
        %v1734 = vrot.slane %v315, %v1733
        %v1735 = vlaneseq
        %v1736 = vshrl.u32 %v1735, 7
        %v1737 = vsub.s32 3, %v1736
        %v1738 = vrot.slane %v315, %v1737
        %v1739 = vlaneseq
        %v1740 = vshrl.u32 %v1739, 7
        %v1741 = vsub.s32 4, %v1740
        %v1742 = vrot.slane %v315, %v1741
        %v1743 = vlaneseq
        %v1744 = vshrl.u32 %v1743, 7
        %v1745 = vsub.s32 5, %v1744
        %v1746 = vrot.slane %v315, %v1745
        %v1747 = vlaneseq
        %v1748 = vshrl.u32 %v1747, 7
        %v1749 = vsub.s32 6, %v1748
        %v1750 = vrot.slane %v315, %v1749
        %v1751 = vlaneseq
        %v1752 = vshrl.u32 %v1751, 7
        %v1753 = vsub.s32 7, %v1752
        %v1754 = vrot.slane %v315, %v1753
        %v1755 = vlaneseq
        %v1756 = vshrl.u32 %v1755, 7
        %v1757 = vsub.s32 0, %v1756
        %v1758 = vrot.slane %v316, %v1757
        %v1759 = vlaneseq
        %v1760 = vshrl.u32 %v1759, 7
        %v1761 = vsub.s32 1, %v1760
        %v1762 = vrot.slane %v316, %v1761
        %v1763 = vlaneseq
        %v1764 = vshrl.u32 %v1763, 7
        %v1765 = vsub.s32 2, %v1764
        %v1766 = vrot.slane %v316, %v1765
        %v1767 = vlaneseq
        %v1768 = vshrl.u32 %v1767, 7
        %v1769 = vsub.s32 3, %v1768
        %v1770 = vrot.slane %v316, %v1769
        %v1771 = vlaneseq
        %v1772 = vshrl.u32 %v1771, 7
        %v1773 = vsub.s32 4, %v1772
        %v1774 = vrot.slane %v316, %v1773
        %v1775 = vlaneseq
        %v1776 = vshrl.u32 %v1775, 7
        %v1777 = vsub.s32 5, %v1776
        %v1778 = vrot.slane %v316, %v1777
        %v1779 = vlaneseq
        %v1780 = vshrl.u32 %v1779, 7
        %v1781 = vsub.s32 6, %v1780
        %v1782 = vrot.slane %v316, %v1781
        %v1783 = vlaneseq
        %v1784 = vshrl.u32 %v1783, 7
        %v1785 = vsub.s32 7, %v1784
        %v1786 = vrot.slane %v316, %v1785
        %v1787 = vlaneseq
        %v1788 = vshrl.u32 %v1787, 7
        %v1789 = vsub.s32 0, %v1788
        %v1790 = vrot.slane %v317, %v1789
        %v1791 = vlaneseq
        %v1792 = vshrl.u32 %v1791, 7
        %v1793 = vsub.s32 1, %v1792
        %v1794 = vrot.slane %v317, %v1793
        %v1795 = vlaneseq
        %v1796 = vshrl.u32 %v1795, 7
        %v1797 = vsub.s32 2, %v1796
        %v1798 = vrot.slane %v317, %v1797
        %v1799 = vlaneseq
        %v1800 = vshrl.u32 %v1799, 7
        %v1801 = vsub.s32 3, %v1800
        %v1802 = vrot.slane %v317, %v1801
        %v1803 = vlaneseq
        %v1804 = vshrl.u32 %v1803, 7
        %v1805 = vsub.s32 4, %v1804
        %v1806 = vrot.slane %v317, %v1805
        %v1807 = vlaneseq
        %v1808 = vshrl.u32 %v1807, 7
        %v1809 = vsub.s32 5, %v1808
        %v1810 = vrot.slane %v317, %v1809
        %v1811 = vlaneseq
        %v1812 = vshrl.u32 %v1811, 7
        %v1813 = vsub.s32 6, %v1812
        %v1814 = vrot.slane %v317, %v1813
        %v1815 = vlaneseq
        %v1816 = vshrl.u32 %v1815, 7
        %v1817 = vsub.s32 7, %v1816
        %v1818 = vrot.slane %v317, %v1817
        %v1819 = vlaneseq
        %v1820 = vshrl.u32 %v1819, 7
        %v1821 = vsub.s32 0, %v1820
        %v1822 = vrot.slane %v318, %v1821
        %v1823 = vlaneseq
        %v1824 = vshrl.u32 %v1823, 7
        %v1825 = vsub.s32 1, %v1824
        %v1826 = vrot.slane %v318, %v1825
        %v1827 = vlaneseq
        %v1828 = vshrl.u32 %v1827, 7
        %v1829 = vsub.s32 2, %v1828
        %v1830 = vrot.slane %v318, %v1829
        %v1831 = vlaneseq
        %v1832 = vshrl.u32 %v1831, 7
        %v1833 = vsub.s32 3, %v1832
        %v1834 = vrot.slane %v318, %v1833
        %v1835 = vlaneseq
        %v1836 = vshrl.u32 %v1835, 7
        %v1837 = vsub.s32 4, %v1836
        %v1838 = vrot.slane %v318, %v1837
        %v1839 = vlaneseq
        %v1840 = vshrl.u32 %v1839, 7
        %v1841 = vsub.s32 5, %v1840
        %v1842 = vrot.slane %v318, %v1841
        %v1843 = vlaneseq
        %v1844 = vshrl.u32 %v1843, 7
        %v1845 = vsub.s32 6, %v1844
        %v1846 = vrot.slane %v318, %v1845
        %v1847 = vlaneseq
        %v1848 = vshrl.u32 %v1847, 7
        %v1849 = vsub.s32 7, %v1848
        %v1850 = vrot.slane %v318, %v1849
        %v1851 = vlaneseq
        %v1852 = vshrl.u32 %v1851, 7
        %v1853 = vsub.s32 0, %v1852
        %v1854 = vrot.slane %v319, %v1853
        %v1855 = vlaneseq
        %v1856 = vshrl.u32 %v1855, 7
        %v1857 = vsub.s32 1, %v1856
        %v1858 = vrot.slane %v319, %v1857
        %v1859 = vlaneseq
        %v1860 = vshrl.u32 %v1859, 7
        %v1861 = vsub.s32 2, %v1860
        %v1862 = vrot.slane %v319, %v1861
        %v1863 = vlaneseq
        %v1864 = vshrl.u32 %v1863, 7
        %v1865 = vsub.s32 3, %v1864
        %v1866 = vrot.slane %v319, %v1865
        %v1867 = vlaneseq
        %v1868 = vshrl.u32 %v1867, 7
        %v1869 = vsub.s32 4, %v1868
        %v1870 = vrot.slane %v319, %v1869
        %v1871 = vlaneseq
        %v1872 = vshrl.u32 %v1871, 7
        %v1873 = vsub.s32 5, %v1872
        %v1874 = vrot.slane %v319, %v1873
        %v1875 = vlaneseq
        %v1876 = vshrl.u32 %v1875, 7
        %v1877 = vsub.s32 6, %v1876
        %v1878 = vrot.slane %v319, %v1877
        %v1879 = vlaneseq
        %v1880 = vshrl.u32 %v1879, 7
        %v1881 = vsub.s32 7, %v1880
        %v1882 = vrot.slane %v319, %v1881
        %v1883 = vlaneseq
        %v1884 = vshrl.u32 %v1883, 7
        %v1885 = vsub.s32 0, %v1884
        %v1886 = vrot.slane %v320, %v1885
        %v1887 = vlaneseq
        %v1888 = vshrl.u32 %v1887, 7
        %v1889 = vsub.s32 1, %v1888
        %v1890 = vrot.slane %v320, %v1889
        %v1891 = vlaneseq
        %v1892 = vshrl.u32 %v1891, 7
        %v1893 = vsub.s32 2, %v1892
        %v1894 = vrot.slane %v320, %v1893
        %v1895 = vlaneseq
        %v1896 = vshrl.u32 %v1895, 7
        %v1897 = vsub.s32 3, %v1896
        %v1898 = vrot.slane %v320, %v1897
        %v1899 = vlaneseq
        %v1900 = vshrl.u32 %v1899, 7
        %v1901 = vsub.s32 4, %v1900
        %v1902 = vrot.slane %v320, %v1901
        %v1903 = vlaneseq
        %v1904 = vshrl.u32 %v1903, 7
        %v1905 = vsub.s32 5, %v1904
        %v1906 = vrot.slane %v320, %v1905
        %v1907 = vlaneseq
        %v1908 = vshrl.u32 %v1907, 7
        %v1909 = vsub.s32 6, %v1908
        %v1910 = vrot.slane %v320, %v1909
        %v1911 = vlaneseq
        %v1912 = vshrl.u32 %v1911, 7
        %v1913 = vsub.s32 7, %v1912
        %v1914 = vrot.slane %v320, %v1913
        %v1915 = vlaneseq
        %v1916 = vshrl.u32 %v1915, 7
        %v1917 = vsub.s32 0, %v1916
        %v1918 = vrot.slane %v321, %v1917
        %v1919 = vlaneseq
        %v1920 = vshrl.u32 %v1919, 7
        %v1921 = vsub.s32 1, %v1920
        %v1922 = vrot.slane %v321, %v1921
        %v1923 = vlaneseq
        %v1924 = vshrl.u32 %v1923, 7
        %v1925 = vsub.s32 2, %v1924
        %v1926 = vrot.slane %v321, %v1925
        %v1927 = vlaneseq
        %v1928 = vshrl.u32 %v1927, 7
        %v1929 = vsub.s32 3, %v1928
        %v1930 = vrot.slane %v321, %v1929
        %v1931 = vlaneseq
        %v1932 = vshrl.u32 %v1931, 7
        %v1933 = vsub.s32 4, %v1932
        %v1934 = vrot.slane %v321, %v1933
        %v1935 = vlaneseq
        %v1936 = vshrl.u32 %v1935, 7
        %v1937 = vsub.s32 5, %v1936
        %v1938 = vrot.slane %v321, %v1937
        %v1939 = vlaneseq
        %v1940 = vshrl.u32 %v1939, 7
        %v1941 = vsub.s32 6, %v1940
        %v1942 = vrot.slane %v321, %v1941
        %v1943 = vlaneseq
        %v1944 = vshrl.u32 %v1943, 7
        %v1945 = vsub.s32 7, %v1944
        %v1946 = vrot.slane %v321, %v1945
        %v1947 = vlaneseq
        %v1948 = vshrl.u32 %v1947, 7
        %v1949 = vsub.s32 0, %v1948
        %v1950 = vrot.slane %v322, %v1949
        %v1951 = vlaneseq
        %v1952 = vshrl.u32 %v1951, 7
        %v1953 = vsub.s32 1, %v1952
        %v1954 = vrot.slane %v322, %v1953
        %v1955 = vlaneseq
        %v1956 = vshrl.u32 %v1955, 7
        %v1957 = vsub.s32 2, %v1956
        %v1958 = vrot.slane %v322, %v1957
        %v1959 = vlaneseq
        %v1960 = vshrl.u32 %v1959, 7
        %v1961 = vsub.s32 3, %v1960
        %v1962 = vrot.slane %v322, %v1961
        %v1963 = vlaneseq
        %v1964 = vshrl.u32 %v1963, 7
        %v1965 = vsub.s32 4, %v1964
        %v1966 = vrot.slane %v322, %v1965
        %v1967 = vlaneseq
        %v1968 = vshrl.u32 %v1967, 7
        %v1969 = vsub.s32 5, %v1968
        %v1970 = vrot.slane %v322, %v1969
        %v1971 = vlaneseq
        %v1972 = vshrl.u32 %v1971, 7
        %v1973 = vsub.s32 6, %v1972
        %v1974 = vrot.slane %v322, %v1973
        %v1975 = vlaneseq
        %v1976 = vshrl.u32 %v1975, 7
        %v1977 = vsub.s32 7, %v1976
        %v1978 = vrot.slane %v322, %v1977
        %v1979 = vlaneseq
        %v1980 = vshrl.u32 %v1979, 7
        %v1981 = vsub.s32 0, %v1980
        %v1982 = vrot.slane %v323, %v1981
        %v1983 = vlaneseq
        %v1984 = vshrl.u32 %v1983, 7
        %v1985 = vsub.s32 1, %v1984
        %v1986 = vrot.slane %v323, %v1985
        %v1987 = vlaneseq
        %v1988 = vshrl.u32 %v1987, 7
        %v1989 = vsub.s32 2, %v1988
        %v1990 = vrot.slane %v323, %v1989
        %v1991 = vlaneseq
        %v1992 = vshrl.u32 %v1991, 7
        %v1993 = vsub.s32 3, %v1992
        %v1994 = vrot.slane %v323, %v1993
        %v1995 = vlaneseq
        %v1996 = vshrl.u32 %v1995, 7
        %v1997 = vsub.s32 4, %v1996
        %v1998 = vrot.slane %v323, %v1997
        %v1999 = vlaneseq
        %v2000 = vshrl.u32 %v1999, 7
        %v2001 = vsub.s32 5, %v2000
        %v2002 = vrot.slane %v323, %v2001
        %v2003 = vlaneseq
        %v2004 = vshrl.u32 %v2003, 7
        %v2005 = vsub.s32 6, %v2004
        %v2006 = vrot.slane %v323, %v2005
        %v2007 = vlaneseq
        %v2008 = vshrl.u32 %v2007, 7
        %v2009 = vsub.s32 7, %v2008
        %v2010 = vrot.slane %v323, %v2009
        %v2011 = vlaneseq
        %v2012 = vshrl.u32 %v2011, 7
        %v2013 = vsub.s32 0, %v2012
        %v2014 = vrot.slane %v324, %v2013
        %v2015 = vlaneseq
        %v2016 = vshrl.u32 %v2015, 7
        %v2017 = vsub.s32 1, %v2016
        %v2018 = vrot.slane %v324, %v2017
        %v2019 = vlaneseq
        %v2020 = vshrl.u32 %v2019, 7
        %v2021 = vsub.s32 2, %v2020
        %v2022 = vrot.slane %v324, %v2021
        %v2023 = vlaneseq
        %v2024 = vshrl.u32 %v2023, 7
        %v2025 = vsub.s32 3, %v2024
        %v2026 = vrot.slane %v324, %v2025
        %v2027 = vlaneseq
        %v2028 = vshrl.u32 %v2027, 7
        %v2029 = vsub.s32 4, %v2028
        %v2030 = vrot.slane %v324, %v2029
        %v2031 = vlaneseq
        %v2032 = vshrl.u32 %v2031, 7
        %v2033 = vsub.s32 5, %v2032
        %v2034 = vrot.slane %v324, %v2033
        %v2035 = vlaneseq
        %v2036 = vshrl.u32 %v2035, 7
        %v2037 = vsub.s32 6, %v2036
        %v2038 = vrot.slane %v324, %v2037
        %v2039 = vlaneseq
        %v2040 = vshrl.u32 %v2039, 7
        %v2041 = vsub.s32 7, %v2040
        %v2042 = vrot.slane %v324, %v2041
        %v2043 = vlaneseq
        %v2044 = vshrl.u32 %v2043, 7
        %v2045 = vsub.s32 0, %v2044
        %v2046 = vrot.slane %v325, %v2045
        %v2047 = vlaneseq
        %v2048 = vshrl.u32 %v2047, 7
        %v2049 = vsub.s32 1, %v2048
        %v2050 = vrot.slane %v325, %v2049
        %v2051 = vlaneseq
        %v2052 = vshrl.u32 %v2051, 7
        %v2053 = vsub.s32 2, %v2052
        %v2054 = vrot.slane %v325, %v2053
        %v2055 = vlaneseq
        %v2056 = vshrl.u32 %v2055, 7
        %v2057 = vsub.s32 3, %v2056
        %v2058 = vrot.slane %v325, %v2057
        %v2059 = vlaneseq
        %v2060 = vshrl.u32 %v2059, 7
        %v2061 = vsub.s32 4, %v2060
        %v2062 = vrot.slane %v325, %v2061
        %v2063 = vlaneseq
        %v2064 = vshrl.u32 %v2063, 7
        %v2065 = vsub.s32 5, %v2064
        %v2066 = vrot.slane %v325, %v2065
        %v2067 = vlaneseq
        %v2068 = vshrl.u32 %v2067, 7
        %v2069 = vsub.s32 6, %v2068
        %v2070 = vrot.slane %v325, %v2069
        %v2071 = vlaneseq
        %v2072 = vshrl.u32 %v2071, 7
        %v2073 = vsub.s32 7, %v2072
        %v2074 = vrot.slane %v325, %v2073
        %v2075 = vlaneseq
        %v2076 = vshrl.u32 %v2075, 7
        %v2077 = vsub.s32 0, %v2076
        %v2078 = vrot.slane %v326, %v2077
        %v2079 = vlaneseq
        %v2080 = vshrl.u32 %v2079, 7
        %v2081 = vsub.s32 1, %v2080
        %v2082 = vrot.slane %v326, %v2081
        %v2083 = vlaneseq
        %v2084 = vshrl.u32 %v2083, 7
        %v2085 = vsub.s32 2, %v2084
        %v2086 = vrot.slane %v326, %v2085
        %v2087 = vlaneseq
        %v2088 = vshrl.u32 %v2087, 7
        %v2089 = vsub.s32 3, %v2088
        %v2090 = vrot.slane %v326, %v2089
        %v2091 = vlaneseq
        %v2092 = vshrl.u32 %v2091, 7
        %v2093 = vsub.s32 4, %v2092
        %v2094 = vrot.slane %v326, %v2093
        %v2095 = vlaneseq
        %v2096 = vshrl.u32 %v2095, 7
        %v2097 = vsub.s32 5, %v2096
        %v2098 = vrot.slane %v326, %v2097
        %v2099 = vlaneseq
        %v2100 = vshrl.u32 %v2099, 7
        %v2101 = vsub.s32 6, %v2100
        %v2102 = vrot.slane %v326, %v2101
        %v2103 = vlaneseq
        %v2104 = vshrl.u32 %v2103, 7
        %v2105 = vsub.s32 7, %v2104
        %v2106 = vrot.slane %v326, %v2105
        %v2107 = vlaneseq
        %v2108 = vshrl.u32 %v2107, 7
        %v2109 = vsub.s32 0, %v2108
        %v2110 = vrot.slane %v327, %v2109
        %v2111 = vlaneseq
        %v2112 = vshrl.u32 %v2111, 7
        %v2113 = vsub.s32 1, %v2112
        %v2114 = vrot.slane %v327, %v2113
        %v2115 = vlaneseq
        %v2116 = vshrl.u32 %v2115, 7
        %v2117 = vsub.s32 2, %v2116
        %v2118 = vrot.slane %v327, %v2117
        %v2119 = vlaneseq
        %v2120 = vshrl.u32 %v2119, 7
        %v2121 = vsub.s32 3, %v2120
        %v2122 = vrot.slane %v327, %v2121
        %v2123 = vlaneseq
        %v2124 = vshrl.u32 %v2123, 7
        %v2125 = vsub.s32 4, %v2124
        %v2126 = vrot.slane %v327, %v2125
        %v2127 = vlaneseq
        %v2128 = vshrl.u32 %v2127, 7
        %v2129 = vsub.s32 5, %v2128
        %v2130 = vrot.slane %v327, %v2129
        %v2131 = vlaneseq
        %v2132 = vshrl.u32 %v2131, 7
        %v2133 = vsub.s32 6, %v2132
        %v2134 = vrot.slane %v327, %v2133
        %v2135 = vlaneseq
        %v2136 = vshrl.u32 %v2135, 7
        %v2137 = vsub.s32 7, %v2136
        %v2138 = vrot.slane %v327, %v2137
        %v2139 = vlaneseq
        %v2140 = vshrl.u32 %v2139, 7
        %v2141 = vsub.s32 0, %v2140
        %v2142 = vrot.slane %v328, %v2141
        %v2143 = vlaneseq
        %v2144 = vshrl.u32 %v2143, 7
        %v2145 = vsub.s32 1, %v2144
        %v2146 = vrot.slane %v328, %v2145
        %v2147 = vlaneseq
        %v2148 = vshrl.u32 %v2147, 7
        %v2149 = vsub.s32 2, %v2148
        %v2150 = vrot.slane %v328, %v2149
        %v2151 = vlaneseq
        %v2152 = vshrl.u32 %v2151, 7
        %v2153 = vsub.s32 3, %v2152
        %v2154 = vrot.slane %v328, %v2153
        %v2155 = vlaneseq
        %v2156 = vshrl.u32 %v2155, 7
        %v2157 = vsub.s32 4, %v2156
        %v2158 = vrot.slane %v328, %v2157
        %v2159 = vlaneseq
        %v2160 = vshrl.u32 %v2159, 7
        %v2161 = vsub.s32 5, %v2160
        %v2162 = vrot.slane %v328, %v2161
        %v2163 = vlaneseq
        %v2164 = vshrl.u32 %v2163, 7
        %v2165 = vsub.s32 6, %v2164
        %v2166 = vrot.slane %v328, %v2165
        %v2167 = vlaneseq
        %v2168 = vshrl.u32 %v2167, 7
        %v2169 = vsub.s32 7, %v2168
        %v2170 = vrot.slane %v328, %v2169
        %v2171 = vlaneseq
        %v2172 = vshrl.u32 %v2171, 7
        %v2173 = vsub.s32 0, %v2172
        %v2174 = vrot.slane %v329, %v2173
        %v2175 = vlaneseq
        %v2176 = vshrl.u32 %v2175, 7
        %v2177 = vsub.s32 1, %v2176
        %v2178 = vrot.slane %v329, %v2177
        %v2179 = vlaneseq
        %v2180 = vshrl.u32 %v2179, 7
        %v2181 = vsub.s32 2, %v2180
        %v2182 = vrot.slane %v329, %v2181
        %v2183 = vlaneseq
        %v2184 = vshrl.u32 %v2183, 7
        %v2185 = vsub.s32 3, %v2184
        %v2186 = vrot.slane %v329, %v2185
        %v2187 = vlaneseq
        %v2188 = vshrl.u32 %v2187, 7
        %v2189 = vsub.s32 4, %v2188
        %v2190 = vrot.slane %v329, %v2189
        %v2191 = vlaneseq
        %v2192 = vshrl.u32 %v2191, 7
        %v2193 = vsub.s32 5, %v2192
        %v2194 = vrot.slane %v329, %v2193
        %v2195 = vlaneseq
        %v2196 = vshrl.u32 %v2195, 7
        %v2197 = vsub.s32 6, %v2196
        %v2198 = vrot.slane %v329, %v2197
        %v2199 = vlaneseq
        %v2200 = vshrl.u32 %v2199, 7
        %v2201 = vsub.s32 7, %v2200
        %v2202 = vrot.slane %v329, %v2201
        %v2203 = vlaneseq
        %v2204 = vshrl.u32 %v2203, 7
        %v2205 = vsub.s32 0, %v2204
        %v2206 = vrot.slane %v330, %v2205
        %v2207 = vlaneseq
        %v2208 = vshrl.u32 %v2207, 7
        %v2209 = vsub.s32 1, %v2208
        %v2210 = vrot.slane %v330, %v2209
        %v2211 = vlaneseq
        %v2212 = vshrl.u32 %v2211, 7
        %v2213 = vsub.s32 2, %v2212
        %v2214 = vrot.slane %v330, %v2213
        %v2215 = vlaneseq
        %v2216 = vshrl.u32 %v2215, 7
        %v2217 = vsub.s32 3, %v2216
        %v2218 = vrot.slane %v330, %v2217
        %v2219 = vlaneseq
        %v2220 = vshrl.u32 %v2219, 7
        %v2221 = vsub.s32 4, %v2220
        %v2222 = vrot.slane %v330, %v2221
        %v2223 = vlaneseq
        %v2224 = vshrl.u32 %v2223, 7
        %v2225 = vsub.s32 5, %v2224
        %v2226 = vrot.slane %v330, %v2225
        %v2227 = vlaneseq
        %v2228 = vshrl.u32 %v2227, 7
        %v2229 = vsub.s32 6, %v2228
        %v2230 = vrot.slane %v330, %v2229
        %v2231 = vlaneseq
        %v2232 = vshrl.u32 %v2231, 7
        %v2233 = vsub.s32 7, %v2232
        %v2234 = vrot.slane %v330, %v2233
        %v2235 = vlaneseq
        %v2236 = vshrl.u32 %v2235, 7
        %v2237 = vsub.s32 0, %v2236
        %v2238 = vrot.slane %v331, %v2237
        %v2239 = vlaneseq
        %v2240 = vshrl.u32 %v2239, 7
        %v2241 = vsub.s32 1, %v2240
        %v2242 = vrot.slane %v331, %v2241
        %v2243 = vlaneseq
        %v2244 = vshrl.u32 %v2243, 7
        %v2245 = vsub.s32 2, %v2244
        %v2246 = vrot.slane %v331, %v2245
        %v2247 = vlaneseq
        %v2248 = vshrl.u32 %v2247, 7
        %v2249 = vsub.s32 3, %v2248
        %v2250 = vrot.slane %v331, %v2249
        %v2251 = vlaneseq
        %v2252 = vshrl.u32 %v2251, 7
        %v2253 = vsub.s32 4, %v2252
        %v2254 = vrot.slane %v331, %v2253
        %v2255 = vlaneseq
        %v2256 = vshrl.u32 %v2255, 7
        %v2257 = vsub.s32 5, %v2256
        %v2258 = vrot.slane %v331, %v2257
        %v2259 = vlaneseq
        %v2260 = vshrl.u32 %v2259, 7
        %v2261 = vsub.s32 6, %v2260
        %v2262 = vrot.slane %v331, %v2261
        %v2263 = vlaneseq
        %v2264 = vshrl.u32 %v2263, 7
        %v2265 = vsub.s32 7, %v2264
        %v2266 = vrot.slane %v331, %v2265
        %v2267 = vlaneseq
        %v2268 = vshrl.u32 %v2267, 7
        %v2269 = vsub.s32 0, %v2268
        %v2270 = vrot.slane %v332, %v2269
        %v2271 = vlaneseq
        %v2272 = vshrl.u32 %v2271, 7
        %v2273 = vsub.s32 1, %v2272
        %v2274 = vrot.slane %v332, %v2273
        %v2275 = vlaneseq
        %v2276 = vshrl.u32 %v2275, 7
        %v2277 = vsub.s32 2, %v2276
        %v2278 = vrot.slane %v332, %v2277
        %v2279 = vlaneseq
        %v2280 = vshrl.u32 %v2279, 7
        %v2281 = vsub.s32 3, %v2280
        %v2282 = vrot.slane %v332, %v2281
        %v2283 = vlaneseq
        %v2284 = vshrl.u32 %v2283, 7
        %v2285 = vsub.s32 4, %v2284
        %v2286 = vrot.slane %v332, %v2285
        %v2287 = vlaneseq
        %v2288 = vshrl.u32 %v2287, 7
        %v2289 = vsub.s32 5, %v2288
        %v2290 = vrot.slane %v332, %v2289
        %v2291 = vlaneseq
        %v2292 = vshrl.u32 %v2291, 7
        %v2293 = vsub.s32 6, %v2292
        %v2294 = vrot.slane %v332, %v2293
        %v2295 = vlaneseq
        %v2296 = vshrl.u32 %v2295, 7
        %v2297 = vsub.s32 7, %v2296
        %v2298 = vrot.slane %v332, %v2297
        %v2299 = vlaneseq
        %v2300 = vshrl.u32 %v2299, 7
        %v2301 = vsub.s32 0, %v2300
        %v2302 = vrot.slane %v333, %v2301
        %v2303 = vlaneseq
        %v2304 = vshrl.u32 %v2303, 7
        %v2305 = vsub.s32 1, %v2304
        %v2306 = vrot.slane %v333, %v2305
        %v2307 = vlaneseq
        %v2308 = vshrl.u32 %v2307, 7
        %v2309 = vsub.s32 2, %v2308
        %v2310 = vrot.slane %v333, %v2309
        %v2311 = vlaneseq
        %v2312 = vshrl.u32 %v2311, 7
        %v2313 = vsub.s32 3, %v2312
        %v2314 = vrot.slane %v333, %v2313
        %v2315 = vlaneseq
        %v2316 = vshrl.u32 %v2315, 7
        %v2317 = vsub.s32 4, %v2316
        %v2318 = vrot.slane %v333, %v2317
        %v2319 = vlaneseq
        %v2320 = vshrl.u32 %v2319, 7
        %v2321 = vsub.s32 5, %v2320
        %v2322 = vrot.slane %v333, %v2321
        %v2323 = vlaneseq
        %v2324 = vshrl.u32 %v2323, 7
        %v2325 = vsub.s32 6, %v2324
        %v2326 = vrot.slane %v333, %v2325
        %v2327 = vlaneseq
        %v2328 = vshrl.u32 %v2327, 7
        %v2329 = vsub.s32 7, %v2328
        %v2330 = vrot.slane %v333, %v2329
        %v2331 = vlaneseq
        %v2332 = vshrl.u32 %v2331, 7
        %v2333 = vsub.s32 0, %v2332
        %v2334 = vrot.slane %v334, %v2333
        %v2335 = vlaneseq
        %v2336 = vshrl.u32 %v2335, 7
        %v2337 = vsub.s32 1, %v2336
        %v2338 = vrot.slane %v334, %v2337
        %v2339 = vlaneseq
        %v2340 = vshrl.u32 %v2339, 7
        %v2341 = vsub.s32 2, %v2340
        %v2342 = vrot.slane %v334, %v2341
        %v2343 = vlaneseq
        %v2344 = vshrl.u32 %v2343, 7
        %v2345 = vsub.s32 3, %v2344
        %v2346 = vrot.slane %v334, %v2345
        %v2347 = vlaneseq
        %v2348 = vshrl.u32 %v2347, 7
        %v2349 = vsub.s32 4, %v2348
        %v2350 = vrot.slane %v334, %v2349
        %v2351 = vlaneseq
        %v2352 = vshrl.u32 %v2351, 7
        %v2353 = vsub.s32 5, %v2352
        %v2354 = vrot.slane %v334, %v2353
        %v2355 = vlaneseq
        %v2356 = vshrl.u32 %v2355, 7
        %v2357 = vsub.s32 6, %v2356
        %v2358 = vrot.slane %v334, %v2357
        %v2359 = vlaneseq
        %v2360 = vshrl.u32 %v2359, 7
        %v2361 = vsub.s32 7, %v2360
        %v2362 = vrot.slane %v334, %v2361
        %v2363 = vlaneseq
        %v2364 = vshrl.u32 %v2363, 7
        %v2365 = vsub.s32 0, %v2364
        %v2366 = vrot.slane %v335, %v2365
        %v2367 = vlaneseq
        %v2368 = vshrl.u32 %v2367, 7
        %v2369 = vsub.s32 1, %v2368
        %v2370 = vrot.slane %v335, %v2369
        %v2371 = vlaneseq
        %v2372 = vshrl.u32 %v2371, 7
        %v2373 = vsub.s32 2, %v2372
        %v2374 = vrot.slane %v335, %v2373
        %v2375 = vlaneseq
        %v2376 = vshrl.u32 %v2375, 7
        %v2377 = vsub.s32 3, %v2376
        %v2378 = vrot.slane %v335, %v2377
        %v2379 = vlaneseq
        %v2380 = vshrl.u32 %v2379, 7
        %v2381 = vsub.s32 4, %v2380
        %v2382 = vrot.slane %v335, %v2381
        %v2383 = vlaneseq
        %v2384 = vshrl.u32 %v2383, 7
        %v2385 = vsub.s32 5, %v2384
        %v2386 = vrot.slane %v335, %v2385
        %v2387 = vlaneseq
        %v2388 = vshrl.u32 %v2387, 7
        %v2389 = vsub.s32 6, %v2388
        %v2390 = vrot.slane %v335, %v2389
        %v2391 = vlaneseq
        %v2392 = vshrl.u32 %v2391, 7
        %v2393 = vsub.s32 7, %v2392
        %v2394 = vrot.slane %v335, %v2393
        %v2395 = vlaneseq
        %v2396 = vshrl.u32 %v2395, 7
        %v2397 = vsub.s32 0, %v2396
        %v2398 = vrot.slane %v336, %v2397
        %v2399 = vlaneseq
        %v2400 = vshrl.u32 %v2399, 7
        %v2401 = vsub.s32 1, %v2400
        %v2402 = vrot.slane %v336, %v2401
        %v2403 = vlaneseq
        %v2404 = vshrl.u32 %v2403, 7
        %v2405 = vsub.s32 2, %v2404
        %v2406 = vrot.slane %v336, %v2405
        %v2407 = vlaneseq
        %v2408 = vshrl.u32 %v2407, 7
        %v2409 = vsub.s32 3, %v2408
        %v2410 = vrot.slane %v336, %v2409
        %v2411 = vlaneseq
        %v2412 = vshrl.u32 %v2411, 7
        %v2413 = vsub.s32 4, %v2412
        %v2414 = vrot.slane %v336, %v2413
        %v2415 = vlaneseq
        %v2416 = vshrl.u32 %v2415, 7
        %v2417 = vsub.s32 5, %v2416
        %v2418 = vrot.slane %v336, %v2417
        %v2419 = vlaneseq
        %v2420 = vshrl.u32 %v2419, 7
        %v2421 = vsub.s32 6, %v2420
        %v2422 = vrot.slane %v336, %v2421
        %v2423 = vlaneseq
        %v2424 = vshrl.u32 %v2423, 7
        %v2425 = vsub.s32 7, %v2424
        %v2426 = vrot.slane %v336, %v2425
        %v2427 = vlaneseq
        %v2428 = vshrl.u32 %v2427, 7
        %v2429 = vsub.s32 0, %v2428
        %v2430 = vrot.slane %v337, %v2429
        %v2431 = vlaneseq
        %v2432 = vshrl.u32 %v2431, 7
        %v2433 = vsub.s32 1, %v2432
        %v2434 = vrot.slane %v337, %v2433
        %v2435 = vlaneseq
        %v2436 = vshrl.u32 %v2435, 7
        %v2437 = vsub.s32 2, %v2436
        %v2438 = vrot.slane %v337, %v2437
        %v2439 = vlaneseq
        %v2440 = vshrl.u32 %v2439, 7
        %v2441 = vsub.s32 3, %v2440
        %v2442 = vrot.slane %v337, %v2441
        %v2443 = vlaneseq
        %v2444 = vshrl.u32 %v2443, 7
        %v2445 = vsub.s32 4, %v2444
        %v2446 = vrot.slane %v337, %v2445
        %v2447 = vlaneseq
        %v2448 = vshrl.u32 %v2447, 7
        %v2449 = vsub.s32 5, %v2448
        %v2450 = vrot.slane %v337, %v2449
        %v2451 = vlaneseq
        %v2452 = vshrl.u32 %v2451, 7
        %v2453 = vsub.s32 6, %v2452
        %v2454 = vrot.slane %v337, %v2453
        %v2455 = vlaneseq
        %v2456 = vshrl.u32 %v2455, 7
        %v2457 = vsub.s32 7, %v2456
        %v2458 = vrot.slane %v337, %v2457
        %v2459 = vlaneseq
        %v2460 = vshrl.u32 %v2459, 7
        %v2461 = vsub.s32 0, %v2460
        %v2462 = vrot.slane %v338, %v2461
        %v2463 = vlaneseq
        %v2464 = vshrl.u32 %v2463, 7
        %v2465 = vsub.s32 1, %v2464
        %v2466 = vrot.slane %v338, %v2465
        %v2467 = vlaneseq
        %v2468 = vshrl.u32 %v2467, 7
        %v2469 = vsub.s32 2, %v2468
        %v2470 = vrot.slane %v338, %v2469
        %v2471 = vlaneseq
        %v2472 = vshrl.u32 %v2471, 7
        %v2473 = vsub.s32 3, %v2472
        %v2474 = vrot.slane %v338, %v2473
        %v2475 = vlaneseq
        %v2476 = vshrl.u32 %v2475, 7
        %v2477 = vsub.s32 4, %v2476
        %v2478 = vrot.slane %v338, %v2477
        %v2479 = vlaneseq
        %v2480 = vshrl.u32 %v2479, 7
        %v2481 = vsub.s32 5, %v2480
        %v2482 = vrot.slane %v338, %v2481
        %v2483 = vlaneseq
        %v2484 = vshrl.u32 %v2483, 7
        %v2485 = vsub.s32 6, %v2484
        %v2486 = vrot.slane %v338, %v2485
        %v2487 = vlaneseq
        %v2488 = vshrl.u32 %v2487, 7
        %v2489 = vsub.s32 7, %v2488
        %v2490 = vrot.slane %v338, %v2489
        %v2491 = vlaneseq
        %v2492 = vshrl.u32 %v2491, 7
        %v2493 = vsub.s32 0, %v2492
        %v2494 = vrot.slane %v339, %v2493
        %v2495 = vlaneseq
        %v2496 = vshrl.u32 %v2495, 7
        %v2497 = vsub.s32 1, %v2496
        %v2498 = vrot.slane %v339, %v2497
        %v2499 = vlaneseq
        %v2500 = vshrl.u32 %v2499, 7
        %v2501 = vsub.s32 2, %v2500
        %v2502 = vrot.slane %v339, %v2501
        %v2503 = vlaneseq
        %v2504 = vshrl.u32 %v2503, 7
        %v2505 = vsub.s32 3, %v2504
        %v2506 = vrot.slane %v339, %v2505
        %v2507 = vlaneseq
        %v2508 = vshrl.u32 %v2507, 7
        %v2509 = vsub.s32 4, %v2508
        %v2510 = vrot.slane %v339, %v2509
        %v2511 = vlaneseq
        %v2512 = vshrl.u32 %v2511, 7
        %v2513 = vsub.s32 5, %v2512
        %v2514 = vrot.slane %v339, %v2513
        %v2515 = vlaneseq
        %v2516 = vshrl.u32 %v2515, 7
        %v2517 = vsub.s32 6, %v2516
        %v2518 = vrot.slane %v339, %v2517
        %v2519 = vlaneseq
        %v2520 = vshrl.u32 %v2519, 7
        %v2521 = vsub.s32 7, %v2520
        %v2522 = vrot.slane %v339, %v2521
        %v2523 = vlaneseq
        %v2524 = vshrl.u32 %v2523, 7
        %v2525 = vsub.s32 0, %v2524
        %v2526 = vrot.slane %v340, %v2525
        %v2527 = vlaneseq
        %v2528 = vshrl.u32 %v2527, 7
        %v2529 = vsub.s32 1, %v2528
        %v2530 = vrot.slane %v340, %v2529
        %v2531 = vlaneseq
        %v2532 = vshrl.u32 %v2531, 7
        %v2533 = vsub.s32 2, %v2532
        %v2534 = vrot.slane %v340, %v2533
        %v2535 = vlaneseq
        %v2536 = vshrl.u32 %v2535, 7
        %v2537 = vsub.s32 3, %v2536
        %v2538 = vrot.slane %v340, %v2537
        %v2539 = vlaneseq
        %v2540 = vshrl.u32 %v2539, 7
        %v2541 = vsub.s32 4, %v2540
        %v2542 = vrot.slane %v340, %v2541
        %v2543 = vlaneseq
        %v2544 = vshrl.u32 %v2543, 7
        %v2545 = vsub.s32 5, %v2544
        %v2546 = vrot.slane %v340, %v2545
        %v2547 = vlaneseq
        %v2548 = vshrl.u32 %v2547, 7
        %v2549 = vsub.s32 6, %v2548
        %v2550 = vrot.slane %v340, %v2549
        %v2551 = vlaneseq
        %v2552 = vshrl.u32 %v2551, 7
        %v2553 = vsub.s32 7, %v2552
        %v2554 = vrot.slane %v340, %v2553
        %v2555 = vlaneseq
        %v2556 = vshrl.u32 %v2555, 7
        %v2557 = vsub.s32 0, %v2556
        %v2558 = vrot.slane %v341, %v2557
        %v2559 = vlaneseq
        %v2560 = vshrl.u32 %v2559, 7
        %v2561 = vsub.s32 1, %v2560
        %v2562 = vrot.slane %v341, %v2561
        %v2563 = vlaneseq
        %v2564 = vshrl.u32 %v2563, 7
        %v2565 = vsub.s32 2, %v2564
        %v2566 = vrot.slane %v341, %v2565
        %v2567 = vlaneseq
        %v2568 = vshrl.u32 %v2567, 7
        %v2569 = vsub.s32 3, %v2568
        %v2570 = vrot.slane %v341, %v2569
        %v2571 = vlaneseq
        %v2572 = vshrl.u32 %v2571, 7
        %v2573 = vsub.s32 4, %v2572
        %v2574 = vrot.slane %v341, %v2573
        %v2575 = vlaneseq
        %v2576 = vshrl.u32 %v2575, 7
        %v2577 = vsub.s32 5, %v2576
        %v2578 = vrot.slane %v341, %v2577
        %v2579 = vlaneseq
        %v2580 = vshrl.u32 %v2579, 7
        %v2581 = vsub.s32 6, %v2580
        %v2582 = vrot.slane %v341, %v2581
        %v2583 = vlaneseq
        %v2584 = vshrl.u32 %v2583, 7
        %v2585 = vsub.s32 7, %v2584
        %v2586 = vrot.slane %v341, %v2585
        %v2587 = vlaneseq
        %v2588 = vshrl.u32 %v2587, 7
        %v2589 = vsub.s32 0, %v2588
        %v2590 = vrot.slane %v342, %v2589
        %v2591 = vlaneseq
        %v2592 = vshrl.u32 %v2591, 7
        %v2593 = vsub.s32 1, %v2592
        %v2594 = vrot.slane %v342, %v2593
        %v2595 = vlaneseq
        %v2596 = vshrl.u32 %v2595, 7
        %v2597 = vsub.s32 2, %v2596
        %v2598 = vrot.slane %v342, %v2597
        %v2599 = vlaneseq
        %v2600 = vshrl.u32 %v2599, 7
        %v2601 = vsub.s32 3, %v2600
        %v2602 = vrot.slane %v342, %v2601
        %v2603 = vlaneseq
        %v2604 = vshrl.u32 %v2603, 7
        %v2605 = vsub.s32 4, %v2604
        %v2606 = vrot.slane %v342, %v2605
        %v2607 = vlaneseq
        %v2608 = vshrl.u32 %v2607, 7
        %v2609 = vsub.s32 5, %v2608
        %v2610 = vrot.slane %v342, %v2609
        %v2611 = vlaneseq
        %v2612 = vshrl.u32 %v2611, 7
        %v2613 = vsub.s32 6, %v2612
        %v2614 = vrot.slane %v342, %v2613
        %v2615 = vlaneseq
        %v2616 = vshrl.u32 %v2615, 7
        %v2617 = vsub.s32 7, %v2616
        %v2618 = vrot.slane %v342, %v2617
        %v2619 = vlaneseq
        %v2620 = vshrl.u32 %v2619, 7
        %v2621 = vsub.s32 0, %v2620
        %v2622 = vrot.slane %v343, %v2621
        %v2623 = vlaneseq
        %v2624 = vshrl.u32 %v2623, 7
        %v2625 = vsub.s32 1, %v2624
        %v2626 = vrot.slane %v343, %v2625
        %v2627 = vlaneseq
        %v2628 = vshrl.u32 %v2627, 7
        %v2629 = vsub.s32 2, %v2628
        %v2630 = vrot.slane %v343, %v2629
        %v2631 = vlaneseq
        %v2632 = vshrl.u32 %v2631, 7
        %v2633 = vsub.s32 3, %v2632
        %v2634 = vrot.slane %v343, %v2633
        %v2635 = vlaneseq
        %v2636 = vshrl.u32 %v2635, 7
        %v2637 = vsub.s32 4, %v2636
        %v2638 = vrot.slane %v343, %v2637
        %v2639 = vlaneseq
        %v2640 = vshrl.u32 %v2639, 7
        %v2641 = vsub.s32 5, %v2640
        %v2642 = vrot.slane %v343, %v2641
        %v2643 = vlaneseq
        %v2644 = vshrl.u32 %v2643, 7
        %v2645 = vsub.s32 6, %v2644
        %v2646 = vrot.slane %v343, %v2645
        %v2647 = vlaneseq
        %v2648 = vshrl.u32 %v2647, 7
        %v2649 = vsub.s32 7, %v2648
        %v2650 = vrot.slane %v343, %v2649
        %v2651 = vlaneseq
        %v2652 = vshrl.u32 %v2651, 7
        %v2653 = vsub.s32 0, %v2652
        %v2654 = vrot.slane %v344, %v2653
        %v2655 = vlaneseq
        %v2656 = vshrl.u32 %v2655, 7
        %v2657 = vsub.s32 1, %v2656
        %v2658 = vrot.slane %v344, %v2657
        %v2659 = vlaneseq
        %v2660 = vshrl.u32 %v2659, 7
        %v2661 = vsub.s32 2, %v2660
        %v2662 = vrot.slane %v344, %v2661
        %v2663 = vlaneseq
        %v2664 = vshrl.u32 %v2663, 7
        %v2665 = vsub.s32 3, %v2664
        %v2666 = vrot.slane %v344, %v2665
        %v2667 = vlaneseq
        %v2668 = vshrl.u32 %v2667, 7
        %v2669 = vsub.s32 4, %v2668
        %v2670 = vrot.slane %v344, %v2669
        %v2671 = vlaneseq
        %v2672 = vshrl.u32 %v2671, 7
        %v2673 = vsub.s32 5, %v2672
        %v2674 = vrot.slane %v344, %v2673
        %v2675 = vlaneseq
        %v2676 = vshrl.u32 %v2675, 7
        %v2677 = vsub.s32 6, %v2676
        %v2678 = vrot.slane %v344, %v2677
        %v2679 = vlaneseq
        %v2680 = vshrl.u32 %v2679, 7
        %v2681 = vsub.s32 7, %v2680
        %v2682 = vrot.slane %v344, %v2681
        %v2683 = vlaneseq
        %v2684 = vshrl.u32 %v2683, 7
        %v2685 = vsub.s32 0, %v2684
        %v2686 = vrot.slane %v345, %v2685
        %v2687 = vlaneseq
        %v2688 = vshrl.u32 %v2687, 7
        %v2689 = vsub.s32 1, %v2688
        %v2690 = vrot.slane %v345, %v2689
        %v2691 = vlaneseq
        %v2692 = vshrl.u32 %v2691, 7
        %v2693 = vsub.s32 2, %v2692
        %v2694 = vrot.slane %v345, %v2693
        %v2695 = vlaneseq
        %v2696 = vshrl.u32 %v2695, 7
        %v2697 = vsub.s32 3, %v2696
        %v2698 = vrot.slane %v345, %v2697
        %v2699 = vlaneseq
        %v2700 = vshrl.u32 %v2699, 7
        %v2701 = vsub.s32 4, %v2700
        %v2702 = vrot.slane %v345, %v2701
        %v2703 = vlaneseq
        %v2704 = vshrl.u32 %v2703, 7
        %v2705 = vsub.s32 5, %v2704
        %v2706 = vrot.slane %v345, %v2705
        %v2707 = vlaneseq
        %v2708 = vshrl.u32 %v2707, 7
        %v2709 = vsub.s32 6, %v2708
        %v2710 = vrot.slane %v345, %v2709
        %v2711 = vlaneseq
        %v2712 = vshrl.u32 %v2711, 7
        %v2713 = vsub.s32 7, %v2712
        %v2714 = vrot.slane %v345, %v2713
        %v2715 = vlaneseq
        %v2716 = vshrl.u32 %v2715, 7
        %v2717 = vsub.s32 0, %v2716
        %v2718 = vrot.slane %v346, %v2717
        %v2719 = vlaneseq
        %v2720 = vshrl.u32 %v2719, 7
        %v2721 = vsub.s32 1, %v2720
        %v2722 = vrot.slane %v346, %v2721
        %v2723 = vlaneseq
        %v2724 = vshrl.u32 %v2723, 7
        %v2725 = vsub.s32 2, %v2724
        %v2726 = vrot.slane %v346, %v2725
        %v2727 = vlaneseq
        %v2728 = vshrl.u32 %v2727, 7
        %v2729 = vsub.s32 3, %v2728
        %v2730 = vrot.slane %v346, %v2729
        %v2731 = vlaneseq
        %v2732 = vshrl.u32 %v2731, 7
        %v2733 = vsub.s32 4, %v2732
        %v2734 = vrot.slane %v346, %v2733
        %v2735 = vlaneseq
        %v2736 = vshrl.u32 %v2735, 7
        %v2737 = vsub.s32 5, %v2736
        %v2738 = vrot.slane %v346, %v2737
        %v2739 = vlaneseq
        %v2740 = vshrl.u32 %v2739, 7
        %v2741 = vsub.s32 6, %v2740
        %v2742 = vrot.slane %v346, %v2741
        %v2743 = vlaneseq
        %v2744 = vshrl.u32 %v2743, 7
        %v2745 = vsub.s32 7, %v2744
        %v2746 = vrot.slane %v346, %v2745
        %v2747 = vlaneseq
        %v2748 = vshrl.u32 %v2747, 7
        %v2749 = vsub.s32 0, %v2748
        %v2750 = vrot.slane %v347, %v2749
        %v2751 = vlaneseq
        %v2752 = vshrl.u32 %v2751, 7
        %v2753 = vsub.s32 1, %v2752
        %v2754 = vrot.slane %v347, %v2753
        %v2755 = vlaneseq
        %v2756 = vshrl.u32 %v2755, 7
        %v2757 = vsub.s32 2, %v2756
        %v2758 = vrot.slane %v347, %v2757
        %v2759 = vlaneseq
        %v2760 = vshrl.u32 %v2759, 7
        %v2761 = vsub.s32 3, %v2760
        %v2762 = vrot.slane %v347, %v2761
        %v2763 = vlaneseq
        %v2764 = vshrl.u32 %v2763, 7
        %v2765 = vsub.s32 4, %v2764
        %v2766 = vrot.slane %v347, %v2765
        %v2767 = vlaneseq
        %v2768 = vshrl.u32 %v2767, 7
        %v2769 = vsub.s32 5, %v2768
        %v2770 = vrot.slane %v347, %v2769
        %v2771 = vlaneseq
        %v2772 = vshrl.u32 %v2771, 7
        %v2773 = vsub.s32 6, %v2772
        %v2774 = vrot.slane %v347, %v2773
        %v2775 = vlaneseq
        %v2776 = vshrl.u32 %v2775, 7
        %v2777 = vsub.s32 7, %v2776
        %v2778 = vrot.slane %v347, %v2777
        %v2779 = vlaneseq
        %v2780 = vshrl.u32 %v2779, 7
        %v2781 = vsub.s32 0, %v2780
        %v2782 = vrot.slane %v348, %v2781
        %v2783 = vlaneseq
        %v2784 = vshrl.u32 %v2783, 7
        %v2785 = vsub.s32 1, %v2784
        %v2786 = vrot.slane %v348, %v2785
        %v2787 = vlaneseq
        %v2788 = vshrl.u32 %v2787, 7
        %v2789 = vsub.s32 2, %v2788
        %v2790 = vrot.slane %v348, %v2789
        %v2791 = vlaneseq
        %v2792 = vshrl.u32 %v2791, 7
        %v2793 = vsub.s32 3, %v2792
        %v2794 = vrot.slane %v348, %v2793
        %v2795 = vlaneseq
        %v2796 = vshrl.u32 %v2795, 7
        %v2797 = vsub.s32 4, %v2796
        %v2798 = vrot.slane %v348, %v2797
        %v2799 = vlaneseq
        %v2800 = vshrl.u32 %v2799, 7
        %v2801 = vsub.s32 5, %v2800
        %v2802 = vrot.slane %v348, %v2801
        %v2803 = vlaneseq
        %v2804 = vshrl.u32 %v2803, 7
        %v2805 = vsub.s32 6, %v2804
        %v2806 = vrot.slane %v348, %v2805
        %v2807 = vlaneseq
        %v2808 = vshrl.u32 %v2807, 7
        %v2809 = vsub.s32 7, %v2808
        %v2810 = vrot.slane %v348, %v2809
        %v2811 = vlaneseq
        %v2812 = vshrl.u32 %v2811, 7
        %v2813 = vsub.s32 0, %v2812
        %v2814 = vrot.slane %v349, %v2813
        %v2815 = vlaneseq
        %v2816 = vshrl.u32 %v2815, 7
        %v2817 = vsub.s32 1, %v2816
        %v2818 = vrot.slane %v349, %v2817
        %v2819 = vlaneseq
        %v2820 = vshrl.u32 %v2819, 7
        %v2821 = vsub.s32 2, %v2820
        %v2822 = vrot.slane %v349, %v2821
        %v2823 = vlaneseq
        %v2824 = vshrl.u32 %v2823, 7
        %v2825 = vsub.s32 3, %v2824
        %v2826 = vrot.slane %v349, %v2825
        %v2827 = vlaneseq
        %v2828 = vshrl.u32 %v2827, 7
        %v2829 = vsub.s32 4, %v2828
        %v2830 = vrot.slane %v349, %v2829
        %v2831 = vlaneseq
        %v2832 = vshrl.u32 %v2831, 7
        %v2833 = vsub.s32 5, %v2832
        %v2834 = vrot.slane %v349, %v2833
        %v2835 = vlaneseq
        %v2836 = vshrl.u32 %v2835, 7
        %v2837 = vsub.s32 6, %v2836
        %v2838 = vrot.slane %v349, %v2837
        %v2839 = vlaneseq
        %v2840 = vshrl.u32 %v2839, 7
        %v2841 = vsub.s32 7, %v2840
        %v2842 = vrot.slane %v349, %v2841
        %v2843 = vlaneseq
        %v2844 = vshrl.u32 %v2843, 7
        %v2845 = vsub.s32 0, %v2844
        %v2846 = vrot.slane %v350, %v2845
        %v2847 = vlaneseq
        %v2848 = vshrl.u32 %v2847, 7
        %v2849 = vsub.s32 1, %v2848
        %v2850 = vrot.slane %v350, %v2849
        %v2851 = vlaneseq
        %v2852 = vshrl.u32 %v2851, 7
        %v2853 = vsub.s32 2, %v2852
        %v2854 = vrot.slane %v350, %v2853
        %v2855 = vlaneseq
        %v2856 = vshrl.u32 %v2855, 7
        %v2857 = vsub.s32 3, %v2856
        %v2858 = vrot.slane %v350, %v2857
        %v2859 = vlaneseq
        %v2860 = vshrl.u32 %v2859, 7
        %v2861 = vsub.s32 4, %v2860
        %v2862 = vrot.slane %v350, %v2861
        %v2863 = vlaneseq
        %v2864 = vshrl.u32 %v2863, 7
        %v2865 = vsub.s32 5, %v2864
        %v2866 = vrot.slane %v350, %v2865
        %v2867 = vlaneseq
        %v2868 = vshrl.u32 %v2867, 7
        %v2869 = vsub.s32 6, %v2868
        %v2870 = vrot.slane %v350, %v2869
        %v2871 = vlaneseq
        %v2872 = vshrl.u32 %v2871, 7
        %v2873 = vsub.s32 7, %v2872
        %v2874 = vrot.slane %v350, %v2873
        %v2875 = vlaneseq
        %v2876 = vshrl.u32 %v2875, 7
        %v2877 = vsub.s32 0, %v2876
        %v2878 = vrot.slane %v351, %v2877
        %v2879 = vlaneseq
        %v2880 = vshrl.u32 %v2879, 7
        %v2881 = vsub.s32 1, %v2880
        %v2882 = vrot.slane %v351, %v2881
        %v2883 = vlaneseq
        %v2884 = vshrl.u32 %v2883, 7
        %v2885 = vsub.s32 2, %v2884
        %v2886 = vrot.slane %v351, %v2885
        %v2887 = vlaneseq
        %v2888 = vshrl.u32 %v2887, 7
        %v2889 = vsub.s32 3, %v2888
        %v2890 = vrot.slane %v351, %v2889
        %v2891 = vlaneseq
        %v2892 = vshrl.u32 %v2891, 7
        %v2893 = vsub.s32 4, %v2892
        %v2894 = vrot.slane %v351, %v2893
        %v2895 = vlaneseq
        %v2896 = vshrl.u32 %v2895, 7
        %v2897 = vsub.s32 5, %v2896
        %v2898 = vrot.slane %v351, %v2897
        %v2899 = vlaneseq
        %v2900 = vshrl.u32 %v2899, 7
        %v2901 = vsub.s32 6, %v2900
        %v2902 = vrot.slane %v351, %v2901
        %v2903 = vlaneseq
        %v2904 = vshrl.u32 %v2903, 7
        %v2905 = vsub.s32 7, %v2904
        %v2906 = vrot.slane %v351, %v2905
        %v2907 = vlaneseq
        %v2908 = vshrl.u32 %v2907, 7
        %v2909 = vsub.s32 0, %v2908
        %v2910 = vrot.slane %v352, %v2909
        %v2911 = vlaneseq
        %v2912 = vshrl.u32 %v2911, 7
        %v2913 = vsub.s32 1, %v2912
        %v2914 = vrot.slane %v352, %v2913
        %v2915 = vlaneseq
        %v2916 = vshrl.u32 %v2915, 7
        %v2917 = vsub.s32 2, %v2916
        %v2918 = vrot.slane %v352, %v2917
        %v2919 = vlaneseq
        %v2920 = vshrl.u32 %v2919, 7
        %v2921 = vsub.s32 3, %v2920
        %v2922 = vrot.slane %v352, %v2921
        %v2923 = vlaneseq
        %v2924 = vshrl.u32 %v2923, 7
        %v2925 = vsub.s32 4, %v2924
        %v2926 = vrot.slane %v352, %v2925
        %v2927 = vlaneseq
        %v2928 = vshrl.u32 %v2927, 7
        %v2929 = vsub.s32 5, %v2928
        %v2930 = vrot.slane %v352, %v2929
        %v2931 = vlaneseq
        %v2932 = vshrl.u32 %v2931, 7
        %v2933 = vsub.s32 6, %v2932
        %v2934 = vrot.slane %v352, %v2933
        %v2935 = vlaneseq
        %v2936 = vshrl.u32 %v2935, 7
        %v2937 = vsub.s32 7, %v2936
        %v2938 = vrot.slane %v352, %v2937
        %v2939 = vlaneseq
        %v2940 = vshrl.u32 %v2939, 7
        %v2941 = vsub.s32 0, %v2940
        %v2942 = vrot.slane %v353, %v2941
        %v3568 = vmul.f32 %v357, %v446
        %v3569 = vmul.f32 %v357, %v450
        %v3570 = vmul.f32 %v357, %v454
        %v3571 = vmul.f32 %v357, %v458
        %v3572 = vmul.f32 %v357, %v462
        %v3573 = vmul.f32 %v357, %v466
        %v3574 = vmul.f32 %v357, %v470
        %v3575 = vmul.f32 %v357, %v474
        %v3576 = vmul.f32 %v357, %v478
        %v3577 = vmul.f32 %v357, %v482
        %v3578 = vmul.f32 %v357, %v486
        %v3579 = vmul.f32 %v357, %v490
        %v3580 = vmul.f32 %v357, %v494
        %v3581 = vmul.f32 %v357, %v498
        %v3582 = vmul.f32 %v357, %v502
        %v3583 = vmul.f32 %v357, %v506
        %v3584 = vmul.f32 %v357, %v510
        %v3585 = vmul.f32 %v357, %v514
        %v3586 = vmul.f32 %v357, %v518
        %v3587 = vmul.f32 %v357, %v522
        %v3588 = vmul.f32 %v357, %v526
        %v3589 = vmul.f32 %v357, %v530
        %v3590 = vmul.f32 %v357, %v534
        %v3591 = vmul.f32 %v357, %v538
        %v3592 = vmul.f32 %v357, %v542
        %v3593 = vmul.f32 %v357, %v546
        %v3594 = vmul.f32 %v357, %v550
        %v3595 = vmul.f32 %v357, %v554
        %v3596 = vmul.f32 %v357, %v558
        %v3597 = vmul.f32 %v357, %v562
        %v3598 = vmul.f32 %v357, %v566
        %v3599 = vmul.f32 %v357, %v570
        %v3600 = vmul.f32 %v357, %v574
        %v3601 = vmul.f32 %v357, %v578
        %v3602 = vmul.f32 %v357, %v582
        %v3603 = vmul.f32 %v357, %v586
        %v3604 = vmul.f32 %v357, %v590
        %v3605 = vmul.f32 %v357, %v594
        %v3606 = vmul.f32 %v357, %v598
        %v3607 = vmul.f32 %v357, %v602
        %v3608 = vmul.f32 %v357, %v606
        %v3609 = vmul.f32 %v357, %v610
        %v3610 = vmul.f32 %v357, %v614
        %v3611 = vmul.f32 %v357, %v618
        %v3612 = vmul.f32 %v357, %v622
        %v3613 = vmul.f32 %v357, %v626
        %v3614 = vmul.f32 %v357, %v630
        %v3615 = vmul.f32 %v357, %v634
        %v3616 = vmul.f32 %v357, %v638
        %v3617 = vmul.f32 %v357, %v642
        %v3618 = vmul.f32 %v357, %v646
        %v3619 = vmul.f32 %v357, %v650
        %v3620 = vmul.f32 %v357, %v654
        %v3621 = vmul.f32 %v357, %v658
        %v3622 = vmul.f32 %v357, %v662
        %v3623 = vmul.f32 %v357, %v666
        %v3624 = vmul.f32 %v357, %v670
        %v3625 = vmul.f32 %v357, %v674
        %v3626 = vmul.f32 %v357, %v678
        %v3627 = vmul.f32 %v357, %v682
        %v3628 = vmul.f32 %v357, %v686
        %v3629 = vmul.f32 %v357, %v690
        %v3630 = vmul.f32 %v357, %v694
        %v3631 = vmul.f32 %v357, %v698
        %v3632 = vmul.f32 %v357, %v702
        %v3633 = vmul.f32 %v357, %v706
        %v3634 = vmul.f32 %v357, %v710
        %v3635 = vmul.f32 %v357, %v714
        %v3636 = vmul.f32 %v357, %v718
        %v3637 = vmul.f32 %v357, %v722
        %v3638 = vmul.f32 %v357, %v726
        %v3639 = vmul.f32 %v357, %v730
        %v3640 = vmul.f32 %v357, %v734
        %v3641 = vmul.f32 %v357, %v738
        %v3642 = vmul.f32 %v357, %v742
        %v3643 = vmul.f32 %v357, %v746
        %v3644 = vmul.f32 %v357, %v750
        %v3645 = vmul.f32 %v357, %v754
        %v3646 = vmul.f32 %v357, %v758
        %v3647 = vmul.f32 %v357, %v762
        %v3648 = vmul.f32 %v357, %v766
        %v3649 = vmul.f32 %v357, %v770
        %v3650 = vmul.f32 %v357, %v774
        %v3651 = vmul.f32 %v357, %v778
        %v3652 = vmul.f32 %v357, %v782
        %v3653 = vmul.f32 %v357, %v786
        %v3654 = vmul.f32 %v357, %v790
        %v3655 = vmul.f32 %v357, %v794
        %v3656 = vmul.f32 %v357, %v798
        %v3657 = vmul.f32 %v357, %v802
        %v3658 = vmul.f32 %v357, %v806
        %v3659 = vmul.f32 %v357, %v810
        %v3660 = vmul.f32 %v357, %v814
        %v3661 = vmul.f32 %v357, %v818
        %v3662 = vmul.f32 %v357, %v822
        %v3663 = vmul.f32 %v357, %v826
        %v3664 = vmul.f32 %v357, %v830
        %v3665 = vmul.f32 %v357, %v834
        %v3666 = vmul.f32 %v357, %v838
        %v3667 = vmul.f32 %v357, %v842
        %v3668 = vmul.f32 %v357, %v846
        %v3669 = vmul.f32 %v357, %v850
        %v3670 = vmul.f32 %v357, %v854
        %v3671 = vmul.f32 %v357, %v858
        %v3672 = vmul.f32 %v357, %v862
        %v3673 = vmul.f32 %v357, %v866
        %v3674 = vmul.f32 %v357, %v870
        %v3675 = vmul.f32 %v357, %v874
        %v3676 = vmul.f32 %v357, %v878
        %v3677 = vmul.f32 %v357, %v882
        %v3678 = vmul.f32 %v357, %v886
        %v3679 = vmul.f32 %v357, %v890
        %v3680 = vmul.f32 %v357, %v894
        %v3681 = vmul.f32 %v357, %v898
        %v3682 = vmul.f32 %v357, %v902
        %v3683 = vmul.f32 %v357, %v906
        %v3684 = vmul.f32 %v357, %v910
        %v3685 = vmul.f32 %v357, %v914
        %v3686 = vmul.f32 %v357, %v918
        %v3687 = vmul.f32 %v357, %v922
        %v3688 = vmul.f32 %v357, %v926
        %v3689 = vmul.f32 %v357, %v930
        %v3690 = vmul.f32 %v357, %v934
        %v3691 = vmul.f32 %v357, %v938
        %v3692 = vmul.f32 %v357, %v942
        %v3693 = vmul.f32 %v357, %v946
        %v3694 = vmul.f32 %v357, %v950
        %v3695 = vmul.f32 %v357, %v954
        %v3696 = vmul.f32 %v357, %v958
        %v3697 = vmul.f32 %v357, %v962
        %v3698 = vmul.f32 %v357, %v966
        %v3699 = vmul.f32 %v357, %v970
        %v3700 = vmul.f32 %v357, %v974
        %v3701 = vmul.f32 %v357, %v978
        %v3702 = vmul.f32 %v357, %v982
        %v3703 = vmul.f32 %v357, %v986
        %v3704 = vmul.f32 %v357, %v990
        %v3705 = vmul.f32 %v357, %v994
        %v3706 = vmul.f32 %v357, %v998
        %v3707 = vmul.f32 %v357, %v1002
        %v3708 = vmul.f32 %v357, %v1006
        %v3709 = vmul.f32 %v357, %v1010
        %v3710 = vmul.f32 %v357, %v1014
        %v3711 = vmul.f32 %v357, %v1018
        %v3712 = vmul.f32 %v357, %v1022
        %v3713 = vmul.f32 %v357, %v1026
        %v3714 = vmul.f32 %v357, %v1030
        %v3715 = vmul.f32 %v357, %v1034
        %v3716 = vmul.f32 %v357, %v1038
        %v3717 = vmul.f32 %v357, %v1042
        %v3718 = vmul.f32 %v357, %v1046
        %v3719 = vmul.f32 %v357, %v1050
        %v3720 = vmul.f32 %v357, %v1054
        %v3721 = vmul.f32 %v357, %v1058
        %v3722 = vmul.f32 %v357, %v1062
        %v3723 = vmul.f32 %v357, %v1066
        %v3724 = vmul.f32 %v357, %v1070
        %v3725 = vmul.f32 %v357, %v1074
        %v3726 = vmul.f32 %v357, %v1078
        %v3727 = vmul.f32 %v357, %v1082
        %v3728 = vmul.f32 %v357, %v1086
        %v3729 = vmul.f32 %v357, %v1090
        %v3730 = vmul.f32 %v357, %v1094
        %v3731 = vmul.f32 %v357, %v1098
        %v3732 = vmul.f32 %v357, %v1102
        %v3733 = vmul.f32 %v357, %v1106
        %v3734 = vmul.f32 %v357, %v1110
        %v3735 = vmul.f32 %v357, %v1114
        %v3736 = vmul.f32 %v357, %v1118
        %v3737 = vmul.f32 %v357, %v1122
        %v3738 = vmul.f32 %v357, %v1126
        %v3739 = vmul.f32 %v357, %v1130
        %v3740 = vmul.f32 %v357, %v1134
        %v3741 = vmul.f32 %v357, %v1138
        %v3742 = vmul.f32 %v357, %v1142
        %v3743 = vmul.f32 %v357, %v1146
        %v3744 = vmul.f32 %v357, %v1150
        %v3745 = vmul.f32 %v357, %v1154
        %v3746 = vmul.f32 %v357, %v1158
        %v3747 = vmul.f32 %v357, %v1162
        %v3748 = vmul.f32 %v357, %v1166
        %v3749 = vmul.f32 %v357, %v1170
        %v3750 = vmul.f32 %v357, %v1174
        %v3751 = vmul.f32 %v357, %v1178
        %v3752 = vmul.f32 %v357, %v1182
        %v3753 = vmul.f32 %v357, %v1186
        %v3754 = vmul.f32 %v357, %v1190
        %v3755 = vmul.f32 %v357, %v1194
        %v3756 = vmul.f32 %v357, %v1198
        %v3757 = vmul.f32 %v357, %v1202
        %v3758 = vmul.f32 %v357, %v1206
        %v3759 = vmul.f32 %v357, %v1210
        %v3760 = vmul.f32 %v357, %v1214
        %v3761 = vmul.f32 %v357, %v1218
        %v3762 = vmul.f32 %v357, %v1222
        %v3763 = vmul.f32 %v357, %v1226
        %v3764 = vmul.f32 %v357, %v1230
        %v3765 = vmul.f32 %v357, %v1234
        %v3766 = vmul.f32 %v357, %v1238
        %v3767 = vmul.f32 %v357, %v1242
        %v3768 = vmul.f32 %v357, %v1246
        %v3769 = vmul.f32 %v357, %v1250
        %v3770 = vmul.f32 %v357, %v1254
        %v3771 = vmul.f32 %v357, %v1258
        %v3772 = vmul.f32 %v357, %v1262
        %v3773 = vmul.f32 %v357, %v1266
        %v3774 = vmul.f32 %v357, %v1270
        %v3775 = vmul.f32 %v357, %v1274
        %v3776 = vmul.f32 %v357, %v1278
        %v3777 = vmul.f32 %v357, %v1282
        %v3778 = vmul.f32 %v357, %v1286
        %v3779 = vmul.f32 %v357, %v1290
        %v3780 = vmul.f32 %v357, %v1294
        %v3781 = vmul.f32 %v357, %v1298
        %v3782 = vmul.f32 %v357, %v1302
        %v3783 = vmul.f32 %v357, %v1306
        %v3784 = vmul.f32 %v357, %v1310
        %v3785 = vmul.f32 %v357, %v1314
        %v3786 = vmul.f32 %v357, %v1318
        %v3787 = vmul.f32 %v357, %v1322
        %v3788 = vmul.f32 %v357, %v1326
        %v3789 = vmul.f32 %v357, %v1330
        %v3790 = vmul.f32 %v357, %v1334
        %v3791 = vmul.f32 %v357, %v1338
        %v3792 = vmul.f32 %v357, %v1342
        %v3793 = vmul.f32 %v357, %v1346
        %v3794 = vmul.f32 %v357, %v1350
        %v3795 = vmul.f32 %v357, %v1354
        %v3796 = vmul.f32 %v357, %v1358
        %v3797 = vmul.f32 %v357, %v1362
        %v3798 = vmul.f32 %v357, %v1366
        %v3799 = vmul.f32 %v357, %v1370
        %v3800 = vmul.f32 %v357, %v1374
        %v3801 = vmul.f32 %v357, %v1378
        %v3802 = vmul.f32 %v357, %v1382
        %v3803 = vmul.f32 %v357, %v1386
        %v3804 = vmul.f32 %v357, %v1390
        %v3805 = vmul.f32 %v357, %v1394
        %v3806 = vmul.f32 %v357, %v1398
        %v3807 = vmul.f32 %v357, %v1402
        %v3808 = vmul.f32 %v357, %v1406
        %v3809 = vmul.f32 %v357, %v1410
        %v3810 = vmul.f32 %v357, %v1414
        %v3811 = vmul.f32 %v357, %v1418
        %v3812 = vmul.f32 %v357, %v1422
        %v3813 = vmul.f32 %v357, %v1426
        %v3814 = vmul.f32 %v357, %v1430
        %v3815 = vmul.f32 %v357, %v1434
        %v3816 = vmul.f32 %v357, %v1438
        %v3817 = vmul.f32 %v357, %v1442
        %v3818 = vmul.f32 %v357, %v1446
        %v3819 = vmul.f32 %v357, %v1450
        %v3820 = vmul.f32 %v357, %v1454
        %v3821 = vmul.f32 %v357, %v1458
        %v3822 = vmul.f32 %v357, %v1462
        %v3823 = vmul.f32 %v357, %v1466
        %v3824 = vmul.f32 %v357, %v1470
        %v3825 = vmul.f32 %v357, %v1474
        %v3826 = vmul.f32 %v357, %v1478
        %v3827 = vmul.f32 %v357, %v1482
        %v3828 = vmul.f32 %v357, %v1486
        %v3829 = vmul.f32 %v357, %v1490
        %v3830 = vmul.f32 %v357, %v1494
        %v3831 = vmul.f32 %v357, %v1498
        %v3832 = vmul.f32 %v357, %v1502
        %v3833 = vmul.f32 %v357, %v1506
        %v3834 = vmul.f32 %v357, %v1510
        %v3835 = vmul.f32 %v357, %v1514
        %v3836 = vmul.f32 %v357, %v1518
        %v3837 = vmul.f32 %v357, %v1522
        %v3838 = vmul.f32 %v357, %v1526
        %v3839 = vmul.f32 %v357, %v1530
        %v3840 = vmul.f32 %v357, %v1534
        %v3841 = vmul.f32 %v357, %v1538
        %v3842 = vmul.f32 %v357, %v1542
        %v3843 = vmul.f32 %v357, %v1546
        %v3844 = vmul.f32 %v357, %v1550
        %v3845 = vmul.f32 %v357, %v1554
        %v3846 = vmul.f32 %v357, %v1558
        %v3847 = vmul.f32 %v357, %v1562
        %v3848 = vmul.f32 %v357, %v1566
        %v3849 = vmul.f32 %v357, %v1570
        %v3850 = vmul.f32 %v357, %v1574
        %v3851 = vmul.f32 %v357, %v1578
        %v3852 = vmul.f32 %v357, %v1582
        %v3853 = vmul.f32 %v357, %v1586
        %v3854 = vmul.f32 %v357, %v1590
        %v3855 = vmul.f32 %v357, %v1594
        %v3856 = vmul.f32 %v357, %v1598
        %v3857 = vmul.f32 %v357, %v1602
        %v3858 = vmul.f32 %v357, %v1606
        %v3859 = vmul.f32 %v357, %v1610
        %v3860 = vmul.f32 %v357, %v1614
        %v3861 = vmul.f32 %v357, %v1618
        %v3862 = vmul.f32 %v357, %v1622
        %v3863 = vmul.f32 %v357, %v1626
        %v3864 = vmul.f32 %v357, %v1630
        %v3865 = vmul.f32 %v357, %v1634
        %v3866 = vmul.f32 %v357, %v1638
        %v3867 = vmul.f32 %v357, %v1642
        %v3868 = vmul.f32 %v357, %v1646
        %v3869 = vmul.f32 %v357, %v1650
        %v3870 = vmul.f32 %v357, %v1654
        %v3871 = vmul.f32 %v357, %v1658
        %v3872 = vmul.f32 %v357, %v1662
        %v3873 = vmul.f32 %v357, %v1666
        %v3874 = vmul.f32 %v357, %v1670
        %v3875 = vmul.f32 %v357, %v1674
        %v3876 = vmul.f32 %v357, %v1678
        %v3877 = vmul.f32 %v357, %v1682
        %v3878 = vmul.f32 %v357, %v1686
        %v3879 = vmul.f32 %v357, %v1690
        %v3880 = vmul.f32 %v357, %v1694
        %v3881 = vmul.f32 %v357, %v1698
        %v3882 = vmul.f32 %v357, %v1702
        %v3883 = vmul.f32 %v357, %v1706
        %v3884 = vmul.f32 %v357, %v1710
        %v3885 = vmul.f32 %v357, %v1714
        %v3886 = vmul.f32 %v357, %v1718
        %v3887 = vmul.f32 %v357, %v1722
        %v3888 = vmul.f32 %v357, %v1726
        %v3889 = vmul.f32 %v357, %v1730
        %v3890 = vmul.f32 %v357, %v1734
        %v3891 = vmul.f32 %v357, %v1738
        %v3892 = vmul.f32 %v357, %v1742
        %v3893 = vmul.f32 %v357, %v1746
        %v3894 = vmul.f32 %v357, %v1750
        %v3895 = vmul.f32 %v357, %v1754
        %v3896 = vmul.f32 %v357, %v1758
        %v3897 = vmul.f32 %v357, %v1762
        %v3898 = vmul.f32 %v357, %v1766
        %v3899 = vmul.f32 %v357, %v1770
        %v3900 = vmul.f32 %v357, %v1774
        %v3901 = vmul.f32 %v357, %v1778
        %v3902 = vmul.f32 %v357, %v1782
        %v3903 = vmul.f32 %v357, %v1786
        %v3904 = vmul.f32 %v357, %v1790
        %v3905 = vmul.f32 %v357, %v1794
        %v3906 = vmul.f32 %v357, %v1798
        %v3907 = vmul.f32 %v357, %v1802
        %v3908 = vmul.f32 %v357, %v1806
        %v3909 = vmul.f32 %v357, %v1810
        %v3910 = vmul.f32 %v357, %v1814
        %v3911 = vmul.f32 %v357, %v1818
        %v3912 = vmul.f32 %v357, %v1822
        %v3913 = vmul.f32 %v357, %v1826
        %v3914 = vmul.f32 %v357, %v1830
        %v3915 = vmul.f32 %v357, %v1834
        %v3916 = vmul.f32 %v357, %v1838
        %v3917 = vmul.f32 %v357, %v1842
        %v3918 = vmul.f32 %v357, %v1846
        %v3919 = vmul.f32 %v357, %v1850
        %v3920 = vmul.f32 %v357, %v1854
        %v3921 = vmul.f32 %v357, %v1858
        %v3922 = vmul.f32 %v357, %v1862
        %v3923 = vmul.f32 %v357, %v1866
        %v3924 = vmul.f32 %v357, %v1870
        %v3925 = vmul.f32 %v357, %v1874
        %v3926 = vmul.f32 %v357, %v1878
        %v3927 = vmul.f32 %v357, %v1882
        %v3928 = vmul.f32 %v357, %v1886
        %v3929 = vmul.f32 %v357, %v1890
        %v3930 = vmul.f32 %v357, %v1894
        %v3931 = vmul.f32 %v357, %v1898
        %v3932 = vmul.f32 %v357, %v1902
        %v3933 = vmul.f32 %v357, %v1906
        %v3934 = vmul.f32 %v357, %v1910
        %v3935 = vmul.f32 %v357, %v1914
        %v3936 = vmul.f32 %v357, %v1918
        %v3937 = vmul.f32 %v357, %v1922
        %v3938 = vmul.f32 %v357, %v1926
        %v3939 = vmul.f32 %v357, %v1930
        %v3940 = vmul.f32 %v357, %v1934
        %v3941 = vmul.f32 %v357, %v1938
        %v3942 = vmul.f32 %v357, %v1942
        %v3943 = vmul.f32 %v357, %v1946
        %v3944 = vmul.f32 %v357, %v1950
        %v3945 = vmul.f32 %v357, %v1954
        %v3946 = vmul.f32 %v357, %v1958
        %v3947 = vmul.f32 %v357, %v1962
        %v3948 = vmul.f32 %v357, %v1966
        %v3949 = vmul.f32 %v357, %v1970
        %v3950 = vmul.f32 %v357, %v1974
        %v3951 = vmul.f32 %v357, %v1978
        %v3952 = vmul.f32 %v357, %v1982
        %v3953 = vmul.f32 %v357, %v1986
        %v3954 = vmul.f32 %v357, %v1990
        %v3955 = vmul.f32 %v357, %v1994
        %v3956 = vmul.f32 %v357, %v1998
        %v3957 = vmul.f32 %v357, %v2002
        %v3958 = vmul.f32 %v357, %v2006
        %v3959 = vmul.f32 %v357, %v2010
        %v3960 = vmul.f32 %v357, %v2014
        %v3961 = vmul.f32 %v357, %v2018
        %v3962 = vmul.f32 %v357, %v2022
        %v3963 = vmul.f32 %v357, %v2026
        %v3964 = vmul.f32 %v357, %v2030
        %v3965 = vmul.f32 %v357, %v2034
        %v3966 = vmul.f32 %v357, %v2038
        %v3967 = vmul.f32 %v357, %v2042
        %v3968 = vmul.f32 %v357, %v2046
        %v3969 = vmul.f32 %v357, %v2050
        %v3970 = vmul.f32 %v357, %v2054
        %v3971 = vmul.f32 %v357, %v2058
        %v3972 = vmul.f32 %v357, %v2062
        %v3973 = vmul.f32 %v357, %v2066
        %v3974 = vmul.f32 %v357, %v2070
        %v3975 = vmul.f32 %v357, %v2074
        %v3976 = vmul.f32 %v357, %v2078
        %v3977 = vmul.f32 %v357, %v2082
        %v3978 = vmul.f32 %v357, %v2086
        %v3979 = vmul.f32 %v357, %v2090
        %v3980 = vmul.f32 %v357, %v2094
        %v3981 = vmul.f32 %v357, %v2098
        %v3982 = vmul.f32 %v357, %v2102
        %v3983 = vmul.f32 %v357, %v2106
        %v3984 = vmul.f32 %v357, %v2110
        %v3985 = vmul.f32 %v357, %v2114
        %v3986 = vmul.f32 %v357, %v2118
        %v3987 = vmul.f32 %v357, %v2122
        %v3988 = vmul.f32 %v357, %v2126
        %v3989 = vmul.f32 %v357, %v2130
        %v3990 = vmul.f32 %v357, %v2134
        %v3991 = vmul.f32 %v357, %v2138
        %v3992 = vmul.f32 %v357, %v2142
        %v3993 = vmul.f32 %v357, %v2146
        %v3994 = vmul.f32 %v357, %v2150
        %v3995 = vmul.f32 %v357, %v2154
        %v3996 = vmul.f32 %v357, %v2158
        %v3997 = vmul.f32 %v357, %v2162
        %v3998 = vmul.f32 %v357, %v2166
        %v3999 = vmul.f32 %v357, %v2170
        %v4000 = vmul.f32 %v357, %v2174
        %v4001 = vmul.f32 %v357, %v2178
        %v4002 = vmul.f32 %v357, %v2182
        %v4003 = vmul.f32 %v357, %v2186
        %v4004 = vmul.f32 %v357, %v2190
        %v4005 = vmul.f32 %v357, %v2194
        %v4006 = vmul.f32 %v357, %v2198
        %v4007 = vmul.f32 %v357, %v2202
        %v4008 = vmul.f32 %v357, %v2206
        %v4009 = vmul.f32 %v357, %v2210
        %v4010 = vmul.f32 %v357, %v2214
        %v4011 = vmul.f32 %v357, %v2218
        %v4012 = vmul.f32 %v357, %v2222
        %v4013 = vmul.f32 %v357, %v2226
        %v4014 = vmul.f32 %v357, %v2230
        %v4015 = vmul.f32 %v357, %v2234
        %v4016 = vmul.f32 %v357, %v2238
        %v4017 = vmul.f32 %v357, %v2242
        %v4018 = vmul.f32 %v357, %v2246
        %v4019 = vmul.f32 %v357, %v2250
        %v4020 = vmul.f32 %v357, %v2254
        %v4021 = vmul.f32 %v357, %v2258
        %v4022 = vmul.f32 %v357, %v2262
        %v4023 = vmul.f32 %v357, %v2266
        %v4024 = vmul.f32 %v357, %v2270
        %v4025 = vmul.f32 %v357, %v2274
        %v4026 = vmul.f32 %v357, %v2278
        %v4027 = vmul.f32 %v357, %v2282
        %v4028 = vmul.f32 %v357, %v2286
        %v4029 = vmul.f32 %v357, %v2290
        %v4030 = vmul.f32 %v357, %v2294
        %v4031 = vmul.f32 %v357, %v2298
        %v4032 = vmul.f32 %v357, %v2302
        %v4033 = vmul.f32 %v357, %v2306
        %v4034 = vmul.f32 %v357, %v2310
        %v4035 = vmul.f32 %v357, %v2314
        %v4036 = vmul.f32 %v357, %v2318
        %v4037 = vmul.f32 %v357, %v2322
        %v4038 = vmul.f32 %v357, %v2326
        %v4039 = vmul.f32 %v357, %v2330
        %v4040 = vmul.f32 %v357, %v2334
        %v4041 = vmul.f32 %v357, %v2338
        %v4042 = vmul.f32 %v357, %v2342
        %v4043 = vmul.f32 %v357, %v2346
        %v4044 = vmul.f32 %v357, %v2350
        %v4045 = vmul.f32 %v357, %v2354
        %v4046 = vmul.f32 %v357, %v2358
        %v4047 = vmul.f32 %v357, %v2362
        %v4048 = vmul.f32 %v357, %v2366
        %v4049 = vmul.f32 %v357, %v2370
        %v4050 = vmul.f32 %v357, %v2374
        %v4051 = vmul.f32 %v357, %v2378
        %v4052 = vmul.f32 %v357, %v2382
        %v4053 = vmul.f32 %v357, %v2386
        %v4054 = vmul.f32 %v357, %v2390
        %v4055 = vmul.f32 %v357, %v2394
        %v4056 = vmul.f32 %v357, %v2398
        %v4057 = vmul.f32 %v357, %v2402
        %v4058 = vmul.f32 %v357, %v2406
        %v4059 = vmul.f32 %v357, %v2410
        %v4060 = vmul.f32 %v357, %v2414
        %v4061 = vmul.f32 %v357, %v2418
        %v4062 = vmul.f32 %v357, %v2422
        %v4063 = vmul.f32 %v357, %v2426
        %v4064 = vmul.f32 %v357, %v2430
        %v4065 = vmul.f32 %v357, %v2434
        %v4066 = vmul.f32 %v357, %v2438
        %v4067 = vmul.f32 %v357, %v2442
        %v4068 = vmul.f32 %v357, %v2446
        %v4069 = vmul.f32 %v357, %v2450
        %v4070 = vmul.f32 %v357, %v2454
        %v4071 = vmul.f32 %v357, %v2458
        %v4072 = vmul.f32 %v357, %v2462
        %v4073 = vmul.f32 %v357, %v2466
        %v4074 = vmul.f32 %v357, %v2470
        %v4075 = vmul.f32 %v357, %v2474
        %v4076 = vmul.f32 %v357, %v2478
        %v4077 = vmul.f32 %v357, %v2482
        %v4078 = vmul.f32 %v357, %v2486
        %v4079 = vmul.f32 %v357, %v2490
        %v4080 = vmul.f32 %v357, %v2494
        %v4081 = vmul.f32 %v357, %v2498
        %v4082 = vmul.f32 %v357, %v2502
        %v4083 = vmul.f32 %v357, %v2506
        %v4084 = vmul.f32 %v357, %v2510
        %v4085 = vmul.f32 %v357, %v2514
        %v4086 = vmul.f32 %v357, %v2518
        %v4087 = vmul.f32 %v357, %v2522
        %v4088 = vmul.f32 %v357, %v2526
        %v4089 = vmul.f32 %v357, %v2530
        %v4090 = vmul.f32 %v357, %v2534
        %v4091 = vmul.f32 %v357, %v2538
        %v4092 = vmul.f32 %v357, %v2542
        %v4093 = vmul.f32 %v357, %v2546
        %v4094 = vmul.f32 %v357, %v2550
        %v4095 = vmul.f32 %v357, %v2554
        %v4096 = vmul.f32 %v357, %v2558
        %v4097 = vmul.f32 %v357, %v2562
        %v4098 = vmul.f32 %v357, %v2566
        %v4099 = vmul.f32 %v357, %v2570
        %v4100 = vmul.f32 %v357, %v2574
        %v4101 = vmul.f32 %v357, %v2578
        %v4102 = vmul.f32 %v357, %v2582
        %v4103 = vmul.f32 %v357, %v2586
        %v4104 = vmul.f32 %v357, %v2590
        %v4105 = vmul.f32 %v357, %v2594
        %v4106 = vmul.f32 %v357, %v2598
        %v4107 = vmul.f32 %v357, %v2602
        %v4108 = vmul.f32 %v357, %v2606
        %v4109 = vmul.f32 %v357, %v2610
        %v4110 = vmul.f32 %v357, %v2614
        %v4111 = vmul.f32 %v357, %v2618
        %v4112 = vmul.f32 %v357, %v2622
        %v4113 = vmul.f32 %v357, %v2626
        %v4114 = vmul.f32 %v357, %v2630
        %v4115 = vmul.f32 %v357, %v2634
        %v4116 = vmul.f32 %v357, %v2638
        %v4117 = vmul.f32 %v357, %v2642
        %v4118 = vmul.f32 %v357, %v2646
        %v4119 = vmul.f32 %v357, %v2650
        %v4120 = vmul.f32 %v357, %v2654
        %v4121 = vmul.f32 %v357, %v2658
        %v4122 = vmul.f32 %v357, %v2662
        %v4123 = vmul.f32 %v357, %v2666
        %v4124 = vmul.f32 %v357, %v2670
        %v4125 = vmul.f32 %v357, %v2674
        %v4126 = vmul.f32 %v357, %v2678
        %v4127 = vmul.f32 %v357, %v2682
        %v4128 = vmul.f32 %v357, %v2686
        %v4129 = vmul.f32 %v357, %v2690
        %v4130 = vmul.f32 %v357, %v2694
        %v4131 = vmul.f32 %v357, %v2698
        %v4132 = vmul.f32 %v357, %v2702
        %v4133 = vmul.f32 %v357, %v2706
        %v4134 = vmul.f32 %v357, %v2710
        %v4135 = vmul.f32 %v357, %v2714
        %v4136 = vmul.f32 %v357, %v2718
        %v4137 = vmul.f32 %v357, %v2722
        %v4138 = vmul.f32 %v357, %v2726
        %v4139 = vmul.f32 %v357, %v2730
        %v4140 = vmul.f32 %v357, %v2734
        %v4141 = vmul.f32 %v357, %v2738
        %v4142 = vmul.f32 %v357, %v2742
        %v4143 = vmul.f32 %v357, %v2746
        %v4144 = vmul.f32 %v357, %v2750
        %v4145 = vmul.f32 %v357, %v2754
        %v4146 = vmul.f32 %v357, %v2758
        %v4147 = vmul.f32 %v357, %v2762
        %v4148 = vmul.f32 %v357, %v2766
        %v4149 = vmul.f32 %v357, %v2770
        %v4150 = vmul.f32 %v357, %v2774
        %v4151 = vmul.f32 %v357, %v2778
        %v4152 = vmul.f32 %v357, %v2782
        %v4153 = vmul.f32 %v357, %v2786
        %v4154 = vmul.f32 %v357, %v2790
        %v4155 = vmul.f32 %v357, %v2794
        %v4156 = vmul.f32 %v357, %v2798
        %v4157 = vmul.f32 %v357, %v2802
        %v4158 = vmul.f32 %v357, %v2806
        %v4159 = vmul.f32 %v357, %v2810
        %v4160 = vmul.f32 %v357, %v2814
        %v4161 = vmul.f32 %v357, %v2818
        %v4162 = vmul.f32 %v357, %v2822
        %v4163 = vmul.f32 %v357, %v2826
        %v4164 = vmul.f32 %v357, %v2830
        %v4165 = vmul.f32 %v357, %v2834
        %v4166 = vmul.f32 %v357, %v2838
        %v4167 = vmul.f32 %v357, %v2842
        %v4168 = vmul.f32 %v357, %v2846
        %v4169 = vmul.f32 %v357, %v2850
        %v4170 = vmul.f32 %v357, %v2854
        %v4171 = vmul.f32 %v357, %v2858
        %v4172 = vmul.f32 %v357, %v2862
        %v4173 = vmul.f32 %v357, %v2866
        %v4174 = vmul.f32 %v357, %v2870
        %v4175 = vmul.f32 %v357, %v2874
        %v4176 = vmul.f32 %v357, %v2878
        %v4177 = vmul.f32 %v357, %v2882
        %v4178 = vmul.f32 %v357, %v2886
        %v4179 = vmul.f32 %v357, %v2890
        %v4180 = vmul.f32 %v357, %v2894
        %v4181 = vmul.f32 %v357, %v2898
        %v4182 = vmul.f32 %v357, %v2902
        %v4183 = vmul.f32 %v357, %v2906
        %v4184 = vmul.f32 %v357, %v2910
        %v4185 = vmul.f32 %v357, %v2914
        %v4186 = vmul.f32 %v357, %v2918
        %v4187 = vmul.f32 %v357, %v2922
        %v4188 = vmul.f32 %v357, %v2926
        %v4189 = vmul.f32 %v357, %v2930
        %v4190 = vmul.f32 %v357, %v2934
        %v4191 = vmul.f32 %v357, %v2938
        %v4192 = vmul.f32 %v357, %v2942
        %v4193 = vmul.f32 %v362, %v446
        %v4194 = vmul.f32 %v362, %v450
        %v4195 = vmul.f32 %v362, %v454
        %v4196 = vmul.f32 %v362, %v458
        %v4197 = vmul.f32 %v362, %v462
        %v4198 = vmul.f32 %v362, %v466
        %v4199 = vmul.f32 %v362, %v470
        %v4200 = vmul.f32 %v362, %v474
        %v4201 = vmul.f32 %v362, %v478
        %v4202 = vmul.f32 %v362, %v482
        %v4203 = vmul.f32 %v362, %v486
        %v4204 = vmul.f32 %v362, %v490
        %v4205 = vmul.f32 %v362, %v494
        %v4206 = vmul.f32 %v362, %v498
        %v4207 = vmul.f32 %v362, %v502
        %v4208 = vmul.f32 %v362, %v506
        %v4209 = vmul.f32 %v362, %v510
        %v4210 = vmul.f32 %v362, %v514
        %v4211 = vmul.f32 %v362, %v518
        %v4212 = vmul.f32 %v362, %v522
        %v4213 = vmul.f32 %v362, %v526
        %v4214 = vmul.f32 %v362, %v530
        %v4215 = vmul.f32 %v362, %v534
        %v4216 = vmul.f32 %v362, %v538
        %v4217 = vmul.f32 %v362, %v542
        %v4218 = vmul.f32 %v362, %v546
        %v4219 = vmul.f32 %v362, %v550
        %v4220 = vmul.f32 %v362, %v554
        %v4221 = vmul.f32 %v362, %v558
        %v4222 = vmul.f32 %v362, %v562
        %v4223 = vmul.f32 %v362, %v566
        %v4224 = vmul.f32 %v362, %v570
        %v4225 = vmul.f32 %v362, %v574
        %v4226 = vmul.f32 %v362, %v578
        %v4227 = vmul.f32 %v362, %v582
        %v4228 = vmul.f32 %v362, %v586
        %v4229 = vmul.f32 %v362, %v590
        %v4230 = vmul.f32 %v362, %v594
        %v4231 = vmul.f32 %v362, %v598
        %v4232 = vmul.f32 %v362, %v602
        %v4233 = vmul.f32 %v362, %v606
        %v4234 = vmul.f32 %v362, %v610
        %v4235 = vmul.f32 %v362, %v614
        %v4236 = vmul.f32 %v362, %v618
        %v4237 = vmul.f32 %v362, %v622
        %v4238 = vmul.f32 %v362, %v626
        %v4239 = vmul.f32 %v362, %v630
        %v4240 = vmul.f32 %v362, %v634
        %v4241 = vmul.f32 %v362, %v638
        %v4242 = vmul.f32 %v362, %v642
        %v4243 = vmul.f32 %v362, %v646
        %v4244 = vmul.f32 %v362, %v650
        %v4245 = vmul.f32 %v362, %v654
        %v4246 = vmul.f32 %v362, %v658
        %v4247 = vmul.f32 %v362, %v662
        %v4248 = vmul.f32 %v362, %v666
        %v4249 = vmul.f32 %v362, %v670
        %v4250 = vmul.f32 %v362, %v674
        %v4251 = vmul.f32 %v362, %v678
        %v4252 = vmul.f32 %v362, %v682
        %v4253 = vmul.f32 %v362, %v686
        %v4254 = vmul.f32 %v362, %v690
        %v4255 = vmul.f32 %v362, %v694
        %v4256 = vmul.f32 %v362, %v698
        %v4257 = vmul.f32 %v362, %v702
        %v4258 = vmul.f32 %v362, %v706
        %v4259 = vmul.f32 %v362, %v710
        %v4260 = vmul.f32 %v362, %v714
        %v4261 = vmul.f32 %v362, %v718
        %v4262 = vmul.f32 %v362, %v722
        %v4263 = vmul.f32 %v362, %v726
        %v4264 = vmul.f32 %v362, %v730
        %v4265 = vmul.f32 %v362, %v734
        %v4266 = vmul.f32 %v362, %v738
        %v4267 = vmul.f32 %v362, %v742
        %v4268 = vmul.f32 %v362, %v746
        %v4269 = vmul.f32 %v362, %v750
        %v4270 = vmul.f32 %v362, %v754
        %v4271 = vmul.f32 %v362, %v758
        %v4272 = vmul.f32 %v362, %v762
        %v4273 = vmul.f32 %v362, %v766
        %v4274 = vmul.f32 %v362, %v770
        %v4275 = vmul.f32 %v362, %v774
        %v4276 = vmul.f32 %v362, %v778
        %v4277 = vmul.f32 %v362, %v782
        %v4278 = vmul.f32 %v362, %v786
        %v4279 = vmul.f32 %v362, %v790
        %v4280 = vmul.f32 %v362, %v794
        %v4281 = vmul.f32 %v362, %v798
        %v4282 = vmul.f32 %v362, %v802
        %v4283 = vmul.f32 %v362, %v806
        %v4284 = vmul.f32 %v362, %v810
        %v4285 = vmul.f32 %v362, %v814
        %v4286 = vmul.f32 %v362, %v818
        %v4287 = vmul.f32 %v362, %v822
        %v4288 = vmul.f32 %v362, %v826
        %v4289 = vmul.f32 %v362, %v830
        %v4290 = vmul.f32 %v362, %v834
        %v4291 = vmul.f32 %v362, %v838
        %v4292 = vmul.f32 %v362, %v842
        %v4293 = vmul.f32 %v362, %v846
        %v4294 = vmul.f32 %v362, %v850
        %v4295 = vmul.f32 %v362, %v854
        %v4296 = vmul.f32 %v362, %v858
        %v4297 = vmul.f32 %v362, %v862
        %v4298 = vmul.f32 %v362, %v866
        %v4299 = vmul.f32 %v362, %v870
        %v4300 = vmul.f32 %v362, %v874
        %v4301 = vmul.f32 %v362, %v878
        %v4302 = vmul.f32 %v362, %v882
        %v4303 = vmul.f32 %v362, %v886
        %v4304 = vmul.f32 %v362, %v890
        %v4305 = vmul.f32 %v362, %v894
        %v4306 = vmul.f32 %v362, %v898
        %v4307 = vmul.f32 %v362, %v902
        %v4308 = vmul.f32 %v362, %v906
        %v4309 = vmul.f32 %v362, %v910
        %v4310 = vmul.f32 %v362, %v914
        %v4311 = vmul.f32 %v362, %v918
        %v4312 = vmul.f32 %v362, %v922
        %v4313 = vmul.f32 %v362, %v926
        %v4314 = vmul.f32 %v362, %v930
        %v4315 = vmul.f32 %v362, %v934
        %v4316 = vmul.f32 %v362, %v938
        %v4317 = vmul.f32 %v362, %v942
        %v4318 = vmul.f32 %v362, %v946
        %v4319 = vmul.f32 %v362, %v950
        %v4320 = vmul.f32 %v362, %v954
        %v4321 = vmul.f32 %v362, %v958
        %v4322 = vmul.f32 %v362, %v962
        %v4323 = vmul.f32 %v362, %v966
        %v4324 = vmul.f32 %v362, %v970
        %v4325 = vmul.f32 %v362, %v974
        %v4326 = vmul.f32 %v362, %v978
        %v4327 = vmul.f32 %v362, %v982
        %v4328 = vmul.f32 %v362, %v986
        %v4329 = vmul.f32 %v362, %v990
        %v4330 = vmul.f32 %v362, %v994
        %v4331 = vmul.f32 %v362, %v998
        %v4332 = vmul.f32 %v362, %v1002
        %v4333 = vmul.f32 %v362, %v1006
        %v4334 = vmul.f32 %v362, %v1010
        %v4335 = vmul.f32 %v362, %v1014
        %v4336 = vmul.f32 %v362, %v1018
        %v4337 = vmul.f32 %v362, %v1022
        %v4338 = vmul.f32 %v362, %v1026
        %v4339 = vmul.f32 %v362, %v1030
        %v4340 = vmul.f32 %v362, %v1034
        %v4341 = vmul.f32 %v362, %v1038
        %v4342 = vmul.f32 %v362, %v1042
        %v4343 = vmul.f32 %v362, %v1046
        %v4344 = vmul.f32 %v362, %v1050
        %v4345 = vmul.f32 %v362, %v1054
        %v4346 = vmul.f32 %v362, %v1058
        %v4347 = vmul.f32 %v362, %v1062
        %v4348 = vmul.f32 %v362, %v1066
        %v4349 = vmul.f32 %v362, %v1070
        %v4350 = vmul.f32 %v362, %v1074
        %v4351 = vmul.f32 %v362, %v1078
        %v4352 = vmul.f32 %v362, %v1082
        %v4353 = vmul.f32 %v362, %v1086
        %v4354 = vmul.f32 %v362, %v1090
        %v4355 = vmul.f32 %v362, %v1094
        %v4356 = vmul.f32 %v362, %v1098
        %v4357 = vmul.f32 %v362, %v1102
        %v4358 = vmul.f32 %v362, %v1106
        %v4359 = vmul.f32 %v362, %v1110
        %v4360 = vmul.f32 %v362, %v1114
        %v4361 = vmul.f32 %v362, %v1118
        %v4362 = vmul.f32 %v362, %v1122
        %v4363 = vmul.f32 %v362, %v1126
        %v4364 = vmul.f32 %v362, %v1130
        %v4365 = vmul.f32 %v362, %v1134
        %v4366 = vmul.f32 %v362, %v1138
        %v4367 = vmul.f32 %v362, %v1142
        %v4368 = vmul.f32 %v362, %v1146
        %v4369 = vmul.f32 %v362, %v1150
        %v4370 = vmul.f32 %v362, %v1154
        %v4371 = vmul.f32 %v362, %v1158
        %v4372 = vmul.f32 %v362, %v1162
        %v4373 = vmul.f32 %v362, %v1166
        %v4374 = vmul.f32 %v362, %v1170
        %v4375 = vmul.f32 %v362, %v1174
        %v4376 = vmul.f32 %v362, %v1178
        %v4377 = vmul.f32 %v362, %v1182
        %v4378 = vmul.f32 %v362, %v1186
        %v4379 = vmul.f32 %v362, %v1190
        %v4380 = vmul.f32 %v362, %v1194
        %v4381 = vmul.f32 %v362, %v1198
        %v4382 = vmul.f32 %v362, %v1202
        %v4383 = vmul.f32 %v362, %v1206
        %v4384 = vmul.f32 %v362, %v1210
        %v4385 = vmul.f32 %v362, %v1214
        %v4386 = vmul.f32 %v362, %v1218
        %v4387 = vmul.f32 %v362, %v1222
        %v4388 = vmul.f32 %v362, %v1226
        %v4389 = vmul.f32 %v362, %v1230
        %v4390 = vmul.f32 %v362, %v1234
        %v4391 = vmul.f32 %v362, %v1238
        %v4392 = vmul.f32 %v362, %v1242
        %v4393 = vmul.f32 %v362, %v1246
        %v4394 = vmul.f32 %v362, %v1250
        %v4395 = vmul.f32 %v362, %v1254
        %v4396 = vmul.f32 %v362, %v1258
        %v4397 = vmul.f32 %v362, %v1262
        %v4398 = vmul.f32 %v362, %v1266
        %v4399 = vmul.f32 %v362, %v1270
        %v4400 = vmul.f32 %v362, %v1274
        %v4401 = vmul.f32 %v362, %v1278
        %v4402 = vmul.f32 %v362, %v1282
        %v4403 = vmul.f32 %v362, %v1286
        %v4404 = vmul.f32 %v362, %v1290
        %v4405 = vmul.f32 %v362, %v1294
        %v4406 = vmul.f32 %v362, %v1298
        %v4407 = vmul.f32 %v362, %v1302
        %v4408 = vmul.f32 %v362, %v1306
        %v4409 = vmul.f32 %v362, %v1310
        %v4410 = vmul.f32 %v362, %v1314
        %v4411 = vmul.f32 %v362, %v1318
        %v4412 = vmul.f32 %v362, %v1322
        %v4413 = vmul.f32 %v362, %v1326
        %v4414 = vmul.f32 %v362, %v1330
        %v4415 = vmul.f32 %v362, %v1334
        %v4416 = vmul.f32 %v362, %v1338
        %v4417 = vmul.f32 %v362, %v1342
        %v4418 = vmul.f32 %v362, %v1346
        %v4419 = vmul.f32 %v362, %v1350
        %v4420 = vmul.f32 %v362, %v1354
        %v4421 = vmul.f32 %v362, %v1358
        %v4422 = vmul.f32 %v362, %v1362
        %v4423 = vmul.f32 %v362, %v1366
        %v4424 = vmul.f32 %v362, %v1370
        %v4425 = vmul.f32 %v362, %v1374
        %v4426 = vmul.f32 %v362, %v1378
        %v4427 = vmul.f32 %v362, %v1382
        %v4428 = vmul.f32 %v362, %v1386
        %v4429 = vmul.f32 %v362, %v1390
        %v4430 = vmul.f32 %v362, %v1394
        %v4431 = vmul.f32 %v362, %v1398
        %v4432 = vmul.f32 %v362, %v1402
        %v4433 = vmul.f32 %v362, %v1406
        %v4434 = vmul.f32 %v362, %v1410
        %v4435 = vmul.f32 %v362, %v1414
        %v4436 = vmul.f32 %v362, %v1418
        %v4437 = vmul.f32 %v362, %v1422
        %v4438 = vmul.f32 %v362, %v1426
        %v4439 = vmul.f32 %v362, %v1430
        %v4440 = vmul.f32 %v362, %v1434
        %v4441 = vmul.f32 %v362, %v1438
        %v4442 = vmul.f32 %v362, %v1442
        %v4443 = vmul.f32 %v362, %v1446
        %v4444 = vmul.f32 %v362, %v1450
        %v4445 = vmul.f32 %v362, %v1454
        %v4446 = vmul.f32 %v362, %v1458
        %v4447 = vmul.f32 %v362, %v1462
        %v4448 = vmul.f32 %v362, %v1466
        %v4449 = vmul.f32 %v362, %v1470
        %v4450 = vmul.f32 %v362, %v1474
        %v4451 = vmul.f32 %v362, %v1478
        %v4452 = vmul.f32 %v362, %v1482
        %v4453 = vmul.f32 %v362, %v1486
        %v4454 = vmul.f32 %v362, %v1490
        %v4455 = vmul.f32 %v362, %v1494
        %v4456 = vmul.f32 %v362, %v1498
        %v4457 = vmul.f32 %v362, %v1502
        %v4458 = vmul.f32 %v362, %v1506
        %v4459 = vmul.f32 %v362, %v1510
        %v4460 = vmul.f32 %v362, %v1514
        %v4461 = vmul.f32 %v362, %v1518
        %v4462 = vmul.f32 %v362, %v1522
        %v4463 = vmul.f32 %v362, %v1526
        %v4464 = vmul.f32 %v362, %v1530
        %v4465 = vmul.f32 %v362, %v1534
        %v4466 = vmul.f32 %v362, %v1538
        %v4467 = vmul.f32 %v362, %v1542
        %v4468 = vmul.f32 %v362, %v1546
        %v4469 = vmul.f32 %v362, %v1550
        %v4470 = vmul.f32 %v362, %v1554
        %v4471 = vmul.f32 %v362, %v1558
        %v4472 = vmul.f32 %v362, %v1562
        %v4473 = vmul.f32 %v362, %v1566
        %v4474 = vmul.f32 %v362, %v1570
        %v4475 = vmul.f32 %v362, %v1574
        %v4476 = vmul.f32 %v362, %v1578
        %v4477 = vmul.f32 %v362, %v1582
        %v4478 = vmul.f32 %v362, %v1586
        %v4479 = vmul.f32 %v362, %v1590
        %v4480 = vmul.f32 %v362, %v1594
        %v4481 = vmul.f32 %v362, %v1598
        %v4482 = vmul.f32 %v362, %v1602
        %v4483 = vmul.f32 %v362, %v1606
        %v4484 = vmul.f32 %v362, %v1610
        %v4485 = vmul.f32 %v362, %v1614
        %v4486 = vmul.f32 %v362, %v1618
        %v4487 = vmul.f32 %v362, %v1622
        %v4488 = vmul.f32 %v362, %v1626
        %v4489 = vmul.f32 %v362, %v1630
        %v4490 = vmul.f32 %v362, %v1634
        %v4491 = vmul.f32 %v362, %v1638
        %v4492 = vmul.f32 %v362, %v1642
        %v4493 = vmul.f32 %v362, %v1646
        %v4494 = vmul.f32 %v362, %v1650
        %v4495 = vmul.f32 %v362, %v1654
        %v4496 = vmul.f32 %v362, %v1658
        %v4497 = vmul.f32 %v362, %v1662
        %v4498 = vmul.f32 %v362, %v1666
        %v4499 = vmul.f32 %v362, %v1670
        %v4500 = vmul.f32 %v362, %v1674
        %v4501 = vmul.f32 %v362, %v1678
        %v4502 = vmul.f32 %v362, %v1682
        %v4503 = vmul.f32 %v362, %v1686
        %v4504 = vmul.f32 %v362, %v1690
        %v4505 = vmul.f32 %v362, %v1694
        %v4506 = vmul.f32 %v362, %v1698
        %v4507 = vmul.f32 %v362, %v1702
        %v4508 = vmul.f32 %v362, %v1706
        %v4509 = vmul.f32 %v362, %v1710
        %v4510 = vmul.f32 %v362, %v1714
        %v4511 = vmul.f32 %v362, %v1718
        %v4512 = vmul.f32 %v362, %v1722
        %v4513 = vmul.f32 %v362, %v1726
        %v4514 = vmul.f32 %v362, %v1730
        %v4515 = vmul.f32 %v362, %v1734
        %v4516 = vmul.f32 %v362, %v1738
        %v4517 = vmul.f32 %v362, %v1742
        %v4518 = vmul.f32 %v362, %v1746
        %v4519 = vmul.f32 %v362, %v1750
        %v4520 = vmul.f32 %v362, %v1754
        %v4521 = vmul.f32 %v362, %v1758
        %v4522 = vmul.f32 %v362, %v1762
        %v4523 = vmul.f32 %v362, %v1766
        %v4524 = vmul.f32 %v362, %v1770
        %v4525 = vmul.f32 %v362, %v1774
        %v4526 = vmul.f32 %v362, %v1778
        %v4527 = vmul.f32 %v362, %v1782
        %v4528 = vmul.f32 %v362, %v1786
        %v4529 = vmul.f32 %v362, %v1790
        %v4530 = vmul.f32 %v362, %v1794
        %v4531 = vmul.f32 %v362, %v1798
        %v4532 = vmul.f32 %v362, %v1802
        %v4533 = vmul.f32 %v362, %v1806
        %v4534 = vmul.f32 %v362, %v1810
        %v4535 = vmul.f32 %v362, %v1814
        %v4536 = vmul.f32 %v362, %v1818
        %v4537 = vmul.f32 %v362, %v1822
        %v4538 = vmul.f32 %v362, %v1826
        %v4539 = vmul.f32 %v362, %v1830
        %v4540 = vmul.f32 %v362, %v1834
        %v4541 = vmul.f32 %v362, %v1838
        %v4542 = vmul.f32 %v362, %v1842
        %v4543 = vmul.f32 %v362, %v1846
        %v4544 = vmul.f32 %v362, %v1850
        %v4545 = vmul.f32 %v362, %v1854
        %v4546 = vmul.f32 %v362, %v1858
        %v4547 = vmul.f32 %v362, %v1862
        %v4548 = vmul.f32 %v362, %v1866
        %v4549 = vmul.f32 %v362, %v1870
        %v4550 = vmul.f32 %v362, %v1874
        %v4551 = vmul.f32 %v362, %v1878
        %v4552 = vmul.f32 %v362, %v1882
        %v4553 = vmul.f32 %v362, %v1886
        %v4554 = vmul.f32 %v362, %v1890
        %v4555 = vmul.f32 %v362, %v1894
        %v4556 = vmul.f32 %v362, %v1898
        %v4557 = vmul.f32 %v362, %v1902
        %v4558 = vmul.f32 %v362, %v1906
        %v4559 = vmul.f32 %v362, %v1910
        %v4560 = vmul.f32 %v362, %v1914
        %v4561 = vmul.f32 %v362, %v1918
        %v4562 = vmul.f32 %v362, %v1922
        %v4563 = vmul.f32 %v362, %v1926
        %v4564 = vmul.f32 %v362, %v1930
        %v4565 = vmul.f32 %v362, %v1934
        %v4566 = vmul.f32 %v362, %v1938
        %v4567 = vmul.f32 %v362, %v1942
        %v4568 = vmul.f32 %v362, %v1946
        %v4569 = vmul.f32 %v362, %v1950
        %v4570 = vmul.f32 %v362, %v1954
        %v4571 = vmul.f32 %v362, %v1958
        %v4572 = vmul.f32 %v362, %v1962
        %v4573 = vmul.f32 %v362, %v1966
        %v4574 = vmul.f32 %v362, %v1970
        %v4575 = vmul.f32 %v362, %v1974
        %v4576 = vmul.f32 %v362, %v1978
        %v4577 = vmul.f32 %v362, %v1982
        %v4578 = vmul.f32 %v362, %v1986
        %v4579 = vmul.f32 %v362, %v1990
        %v4580 = vmul.f32 %v362, %v1994
        %v4581 = vmul.f32 %v362, %v1998
        %v4582 = vmul.f32 %v362, %v2002
        %v4583 = vmul.f32 %v362, %v2006
        %v4584 = vmul.f32 %v362, %v2010
        %v4585 = vmul.f32 %v362, %v2014
        %v4586 = vmul.f32 %v362, %v2018
        %v4587 = vmul.f32 %v362, %v2022
        %v4588 = vmul.f32 %v362, %v2026
        %v4589 = vmul.f32 %v362, %v2030
        %v4590 = vmul.f32 %v362, %v2034
        %v4591 = vmul.f32 %v362, %v2038
        %v4592 = vmul.f32 %v362, %v2042
        %v4593 = vmul.f32 %v362, %v2046
        %v4594 = vmul.f32 %v362, %v2050
        %v4595 = vmul.f32 %v362, %v2054
        %v4596 = vmul.f32 %v362, %v2058
        %v4597 = vmul.f32 %v362, %v2062
        %v4598 = vmul.f32 %v362, %v2066
        %v4599 = vmul.f32 %v362, %v2070
        %v4600 = vmul.f32 %v362, %v2074
        %v4601 = vmul.f32 %v362, %v2078
        %v4602 = vmul.f32 %v362, %v2082
        %v4603 = vmul.f32 %v362, %v2086
        %v4604 = vmul.f32 %v362, %v2090
        %v4605 = vmul.f32 %v362, %v2094
        %v4606 = vmul.f32 %v362, %v2098
        %v4607 = vmul.f32 %v362, %v2102
        %v4608 = vmul.f32 %v362, %v2106
        %v4609 = vmul.f32 %v362, %v2110
        %v4610 = vmul.f32 %v362, %v2114
        %v4611 = vmul.f32 %v362, %v2118
        %v4612 = vmul.f32 %v362, %v2122
        %v4613 = vmul.f32 %v362, %v2126
        %v4614 = vmul.f32 %v362, %v2130
        %v4615 = vmul.f32 %v362, %v2134
        %v4616 = vmul.f32 %v362, %v2138
        %v4617 = vmul.f32 %v362, %v2142
        %v4618 = vmul.f32 %v362, %v2146
        %v4619 = vmul.f32 %v362, %v2150
        %v4620 = vmul.f32 %v362, %v2154
        %v4621 = vmul.f32 %v362, %v2158
        %v4622 = vmul.f32 %v362, %v2162
        %v4623 = vmul.f32 %v362, %v2166
        %v4624 = vmul.f32 %v362, %v2170
        %v4625 = vmul.f32 %v362, %v2174
        %v4626 = vmul.f32 %v362, %v2178
        %v4627 = vmul.f32 %v362, %v2182
        %v4628 = vmul.f32 %v362, %v2186
        %v4629 = vmul.f32 %v362, %v2190
        %v4630 = vmul.f32 %v362, %v2194
        %v4631 = vmul.f32 %v362, %v2198
        %v4632 = vmul.f32 %v362, %v2202
        %v4633 = vmul.f32 %v362, %v2206
        %v4634 = vmul.f32 %v362, %v2210
        %v4635 = vmul.f32 %v362, %v2214
        %v4636 = vmul.f32 %v362, %v2218
        %v4637 = vmul.f32 %v362, %v2222
        %v4638 = vmul.f32 %v362, %v2226
        %v4639 = vmul.f32 %v362, %v2230
        %v4640 = vmul.f32 %v362, %v2234
        %v4641 = vmul.f32 %v362, %v2238
        %v4642 = vmul.f32 %v362, %v2242
        %v4643 = vmul.f32 %v362, %v2246
        %v4644 = vmul.f32 %v362, %v2250
        %v4645 = vmul.f32 %v362, %v2254
        %v4646 = vmul.f32 %v362, %v2258
        %v4647 = vmul.f32 %v362, %v2262
        %v4648 = vmul.f32 %v362, %v2266
        %v4649 = vmul.f32 %v362, %v2270
        %v4650 = vmul.f32 %v362, %v2274
        %v4651 = vmul.f32 %v362, %v2278
        %v4652 = vmul.f32 %v362, %v2282
        %v4653 = vmul.f32 %v362, %v2286
        %v4654 = vmul.f32 %v362, %v2290
        %v4655 = vmul.f32 %v362, %v2294
        %v4656 = vmul.f32 %v362, %v2298
        %v4657 = vmul.f32 %v362, %v2302
        %v4658 = vmul.f32 %v362, %v2306
        %v4659 = vmul.f32 %v362, %v2310
        %v4660 = vmul.f32 %v362, %v2314
        %v4661 = vmul.f32 %v362, %v2318
        %v4662 = vmul.f32 %v362, %v2322
        %v4663 = vmul.f32 %v362, %v2326
        %v4664 = vmul.f32 %v362, %v2330
        %v4665 = vmul.f32 %v362, %v2334
        %v4666 = vmul.f32 %v362, %v2338
        %v4667 = vmul.f32 %v362, %v2342
        %v4668 = vmul.f32 %v362, %v2346
        %v4669 = vmul.f32 %v362, %v2350
        %v4670 = vmul.f32 %v362, %v2354
        %v4671 = vmul.f32 %v362, %v2358
        %v4672 = vmul.f32 %v362, %v2362
        %v4673 = vmul.f32 %v362, %v2366
        %v4674 = vmul.f32 %v362, %v2370
        %v4675 = vmul.f32 %v362, %v2374
        %v4676 = vmul.f32 %v362, %v2378
        %v4677 = vmul.f32 %v362, %v2382
        %v4678 = vmul.f32 %v362, %v2386
        %v4679 = vmul.f32 %v362, %v2390
        %v4680 = vmul.f32 %v362, %v2394
        %v4681 = vmul.f32 %v362, %v2398
        %v4682 = vmul.f32 %v362, %v2402
        %v4683 = vmul.f32 %v362, %v2406
        %v4684 = vmul.f32 %v362, %v2410
        %v4685 = vmul.f32 %v362, %v2414
        %v4686 = vmul.f32 %v362, %v2418
        %v4687 = vmul.f32 %v362, %v2422
        %v4688 = vmul.f32 %v362, %v2426
        %v4689 = vmul.f32 %v362, %v2430
        %v4690 = vmul.f32 %v362, %v2434
        %v4691 = vmul.f32 %v362, %v2438
        %v4692 = vmul.f32 %v362, %v2442
        %v4693 = vmul.f32 %v362, %v2446
        %v4694 = vmul.f32 %v362, %v2450
        %v4695 = vmul.f32 %v362, %v2454
        %v4696 = vmul.f32 %v362, %v2458
        %v4697 = vmul.f32 %v362, %v2462
        %v4698 = vmul.f32 %v362, %v2466
        %v4699 = vmul.f32 %v362, %v2470
        %v4700 = vmul.f32 %v362, %v2474
        %v4701 = vmul.f32 %v362, %v2478
        %v4702 = vmul.f32 %v362, %v2482
        %v4703 = vmul.f32 %v362, %v2486
        %v4704 = vmul.f32 %v362, %v2490
        %v4705 = vmul.f32 %v362, %v2494
        %v4706 = vmul.f32 %v362, %v2498
        %v4707 = vmul.f32 %v362, %v2502
        %v4708 = vmul.f32 %v362, %v2506
        %v4709 = vmul.f32 %v362, %v2510
        %v4710 = vmul.f32 %v362, %v2514
        %v4711 = vmul.f32 %v362, %v2518
        %v4712 = vmul.f32 %v362, %v2522
        %v4713 = vmul.f32 %v362, %v2526
        %v4714 = vmul.f32 %v362, %v2530
        %v4715 = vmul.f32 %v362, %v2534
        %v4716 = vmul.f32 %v362, %v2538
        %v4717 = vmul.f32 %v362, %v2542
        %v4718 = vmul.f32 %v362, %v2546
        %v4719 = vmul.f32 %v362, %v2550
        %v4720 = vmul.f32 %v362, %v2554
        %v4721 = vmul.f32 %v362, %v2558
        %v4722 = vmul.f32 %v362, %v2562
        %v4723 = vmul.f32 %v362, %v2566
        %v4724 = vmul.f32 %v362, %v2570
        %v4725 = vmul.f32 %v362, %v2574
        %v4726 = vmul.f32 %v362, %v2578
        %v4727 = vmul.f32 %v362, %v2582
        %v4728 = vmul.f32 %v362, %v2586
        %v4729 = vmul.f32 %v362, %v2590
        %v4730 = vmul.f32 %v362, %v2594
        %v4731 = vmul.f32 %v362, %v2598
        %v4732 = vmul.f32 %v362, %v2602
        %v4733 = vmul.f32 %v362, %v2606
        %v4734 = vmul.f32 %v362, %v2610
        %v4735 = vmul.f32 %v362, %v2614
        %v4736 = vmul.f32 %v362, %v2618
        %v4737 = vmul.f32 %v362, %v2622
        %v4738 = vmul.f32 %v362, %v2626
        %v4739 = vmul.f32 %v362, %v2630
        %v4740 = vmul.f32 %v362, %v2634
        %v4741 = vmul.f32 %v362, %v2638
        %v4742 = vmul.f32 %v362, %v2642
        %v4743 = vmul.f32 %v362, %v2646
        %v4744 = vmul.f32 %v362, %v2650
        %v4745 = vmul.f32 %v362, %v2654
        %v4746 = vmul.f32 %v362, %v2658
        %v4747 = vmul.f32 %v362, %v2662
        %v4748 = vmul.f32 %v362, %v2666
        %v4749 = vmul.f32 %v362, %v2670
        %v4750 = vmul.f32 %v362, %v2674
        %v4751 = vmul.f32 %v362, %v2678
        %v4752 = vmul.f32 %v362, %v2682
        %v4753 = vmul.f32 %v362, %v2686
        %v4754 = vmul.f32 %v362, %v2690
        %v4755 = vmul.f32 %v362, %v2694
        %v4756 = vmul.f32 %v362, %v2698
        %v4757 = vmul.f32 %v362, %v2702
        %v4758 = vmul.f32 %v362, %v2706
        %v4759 = vmul.f32 %v362, %v2710
        %v4760 = vmul.f32 %v362, %v2714
        %v4761 = vmul.f32 %v362, %v2718
        %v4762 = vmul.f32 %v362, %v2722
        %v4763 = vmul.f32 %v362, %v2726
        %v4764 = vmul.f32 %v362, %v2730
        %v4765 = vmul.f32 %v362, %v2734
        %v4766 = vmul.f32 %v362, %v2738
        %v4767 = vmul.f32 %v362, %v2742
        %v4768 = vmul.f32 %v362, %v2746
        %v4769 = vmul.f32 %v362, %v2750
        %v4770 = vmul.f32 %v362, %v2754
        %v4771 = vmul.f32 %v362, %v2758
        %v4772 = vmul.f32 %v362, %v2762
        %v4773 = vmul.f32 %v362, %v2766
        %v4774 = vmul.f32 %v362, %v2770
        %v4775 = vmul.f32 %v362, %v2774
        %v4776 = vmul.f32 %v362, %v2778
        %v4777 = vmul.f32 %v362, %v2782
        %v4778 = vmul.f32 %v362, %v2786
        %v4779 = vmul.f32 %v362, %v2790
        %v4780 = vmul.f32 %v362, %v2794
        %v4781 = vmul.f32 %v362, %v2798
        %v4782 = vmul.f32 %v362, %v2802
        %v4783 = vmul.f32 %v362, %v2806
        %v4784 = vmul.f32 %v362, %v2810
        %v4785 = vmul.f32 %v362, %v2814
        %v4786 = vmul.f32 %v362, %v2818
        %v4787 = vmul.f32 %v362, %v2822
        %v4788 = vmul.f32 %v362, %v2826
        %v4789 = vmul.f32 %v362, %v2830
        %v4790 = vmul.f32 %v362, %v2834
        %v4791 = vmul.f32 %v362, %v2838
        %v4792 = vmul.f32 %v362, %v2842
        %v4793 = vmul.f32 %v362, %v2846
        %v4794 = vmul.f32 %v362, %v2850
        %v4795 = vmul.f32 %v362, %v2854
        %v4796 = vmul.f32 %v362, %v2858
        %v4797 = vmul.f32 %v362, %v2862
        %v4798 = vmul.f32 %v362, %v2866
        %v4799 = vmul.f32 %v362, %v2870
        %v4800 = vmul.f32 %v362, %v2874
        %v4801 = vmul.f32 %v362, %v2878
        %v4802 = vmul.f32 %v362, %v2882
        %v4803 = vmul.f32 %v362, %v2886
        %v4804 = vmul.f32 %v362, %v2890
        %v4805 = vmul.f32 %v362, %v2894
        %v4806 = vmul.f32 %v362, %v2898
        %v4807 = vmul.f32 %v362, %v2902
        %v4808 = vmul.f32 %v362, %v2906
        %v4809 = vmul.f32 %v362, %v2910
        %v4810 = vmul.f32 %v362, %v2914
        %v4811 = vmul.f32 %v362, %v2918
        %v4812 = vmul.f32 %v362, %v2922
        %v4813 = vmul.f32 %v362, %v2926
        %v4814 = vmul.f32 %v362, %v2930
        %v4815 = vmul.f32 %v362, %v2934
        %v4816 = vmul.f32 %v362, %v2938
        %v4817 = vmul.f32 %v362, %v2942
        %4818 = vst [vmem:[%s187] sm:$0xff] %v3568
        %4819 = vst [vmem:[%s187 + $0x8] sm:$0xff] %v3569
        %4820 = vst [vmem:[%s187 + $0x10] sm:$0xff] %v3570
        %4821 = vst [vmem:[%s187 + $0x18] sm:$0xff] %v3571
        %4822 = vst [vmem:[%s187 + $0x20] sm:$0xff] %v3572
        %4823 = vst [vmem:[%s187 + $0x28] sm:$0xff] %v3573
        %4824 = vst [vmem:[%s187 + $0x30] sm:$0xff] %v3574
        %4825 = vst [vmem:[%s187 + $0x38] sm:$0xff] %v3575
        %4826 = vst [vmem:[%s187 + $0x40] sm:$0xff] %v3576
        %4827 = vst [vmem:[%s187 + $0x48] sm:$0xff] %v3577
        %4828 = vst [vmem:[%s187 + $0x50] sm:$0xff] %v3578
        %4829 = vst [vmem:[%s187 + $0x58] sm:$0xff] %v3579
        %4830 = vst [vmem:[%s187 + $0x60] sm:$0xff] %v3580
        %4831 = vst [vmem:[%s187 + $0x68] sm:$0xff] %v3581
        %4832 = vst [vmem:[%s187 + $0x70] sm:$0xff] %v3582
        %4833 = vst [vmem:[%s187 + $0x78] sm:$0xff] %v3583
        %4834 = vst [vmem:[%s187 + $0x80] sm:$0xff] %v3584
        %4835 = vst [vmem:[%s187 + $0x88] sm:$0xff] %v3585
        %4836 = vst [vmem:[%s187 + $0x90] sm:$0xff] %v3586
        %4837 = vst [vmem:[%s187 + $0x98] sm:$0xff] %v3587
        %4838 = vst [vmem:[%s187 + $0xa0] sm:$0xff] %v3588
        %4839 = vst [vmem:[%s187 + $0xa8] sm:$0xff] %v3589
        %4840 = vst [vmem:[%s187 + $0xb0] sm:$0xff] %v3590
        %4841 = vst [vmem:[%s187 + $0xb8] sm:$0xff] %v3591
        %4842 = vst [vmem:[%s187 + $0xc0] sm:$0xff] %v3592
        %4843 = vst [vmem:[%s187 + $0xc8] sm:$0xff] %v3593
        %4844 = vst [vmem:[%s187 + $0xd0] sm:$0xff] %v3594
        %4845 = vst [vmem:[%s187 + $0xd8] sm:$0xff] %v3595
        %4846 = vst [vmem:[%s187 + $0xe0] sm:$0xff] %v3596
        %4847 = vst [vmem:[%s187 + $0xe8] sm:$0xff] %v3597
        %4848 = vst [vmem:[%s187 + $0xf0] sm:$0xff] %v3598
        %4849 = vst [vmem:[%s187 + $0xf8] sm:$0xff] %v3599
        %4850 = vst [vmem:[%s187 + $0x100] sm:$0xff] %v3600
        %4851 = vst [vmem:[%s187 + $0x108] sm:$0xff] %v3601
        %4852 = vst [vmem:[%s187 + $0x110] sm:$0xff] %v3602
        %4853 = vst [vmem:[%s187 + $0x118] sm:$0xff] %v3603
        %4854 = vst [vmem:[%s187 + $0x120] sm:$0xff] %v3604
        %4855 = vst [vmem:[%s187 + $0x128] sm:$0xff] %v3605
        %4856 = vst [vmem:[%s187 + $0x130] sm:$0xff] %v3606
        %4857 = vst [vmem:[%s187 + $0x138] sm:$0xff] %v3607
        %4858 = vst [vmem:[%s187 + $0x140] sm:$0xff] %v3608
        %4859 = vst [vmem:[%s187 + $0x148] sm:$0xff] %v3609
        %4860 = vst [vmem:[%s187 + $0x150] sm:$0xff] %v3610
        %4861 = vst [vmem:[%s187 + $0x158] sm:$0xff] %v3611
        %4862 = vst [vmem:[%s187 + $0x160] sm:$0xff] %v3612
        %4863 = vst [vmem:[%s187 + $0x168] sm:$0xff] %v3613
        %4864 = vst [vmem:[%s187 + $0x170] sm:$0xff] %v3614
        %4865 = vst [vmem:[%s187 + $0x178] sm:$0xff] %v3615
        %4866 = vst [vmem:[%s187 + $0x180] sm:$0xff] %v3616
        %4867 = vst [vmem:[%s187 + $0x188] sm:$0xff] %v3617
        %4868 = vst [vmem:[%s187 + $0x190] sm:$0xff] %v3618
        %4869 = vst [vmem:[%s187 + $0x198] sm:$0xff] %v3619
        %4870 = vst [vmem:[%s187 + $0x1a0] sm:$0xff] %v3620
        %4871 = vst [vmem:[%s187 + $0x1a8] sm:$0xff] %v3621
        %4872 = vst [vmem:[%s187 + $0x1b0] sm:$0xff] %v3622
        %4873 = vst [vmem:[%s187 + $0x1b8] sm:$0xff] %v3623
        %4874 = vst [vmem:[%s187 + $0x1c0] sm:$0xff] %v3624
        %4875 = vst [vmem:[%s187 + $0x1c8] sm:$0xff] %v3625
        %4876 = vst [vmem:[%s187 + $0x1d0] sm:$0xff] %v3626
        %4877 = vst [vmem:[%s187 + $0x1d8] sm:$0xff] %v3627
        %4878 = vst [vmem:[%s187 + $0x1e0] sm:$0xff] %v3628
        %4879 = vst [vmem:[%s187 + $0x1e8] sm:$0xff] %v3629
        %4880 = vst [vmem:[%s187 + $0x1f0] sm:$0xff] %v3630
        %4881 = vst [vmem:[%s187 + $0x1f8] sm:$0xff] %v3631
        %4882 = vst [vmem:[%s187 + $0x200] sm:$0xff] %v3632
        %4883 = vst [vmem:[%s187 + $0x208] sm:$0xff] %v3633
        %4884 = vst [vmem:[%s187 + $0x210] sm:$0xff] %v3634
        %4885 = vst [vmem:[%s187 + $0x218] sm:$0xff] %v3635
        %4886 = vst [vmem:[%s187 + $0x220] sm:$0xff] %v3636
        %4887 = vst [vmem:[%s187 + $0x228] sm:$0xff] %v3637
        %4888 = vst [vmem:[%s187 + $0x230] sm:$0xff] %v3638
        %4889 = vst [vmem:[%s187 + $0x238] sm:$0xff] %v3639
        %4890 = vst [vmem:[%s187 + $0x240] sm:$0xff] %v3640
        %4891 = vst [vmem:[%s187 + $0x248] sm:$0xff] %v3641
        %4892 = vst [vmem:[%s187 + $0x250] sm:$0xff] %v3642
        %4893 = vst [vmem:[%s187 + $0x258] sm:$0xff] %v3643
        %4894 = vst [vmem:[%s187 + $0x260] sm:$0xff] %v3644
        %4895 = vst [vmem:[%s187 + $0x268] sm:$0xff] %v3645
        %4896 = vst [vmem:[%s187 + $0x270] sm:$0xff] %v3646
        %4897 = vst [vmem:[%s187 + $0x278] sm:$0xff] %v3647
        %4898 = vst [vmem:[%s187 + $0x280] sm:$0xff] %v3648
        %4899 = vst [vmem:[%s187 + $0x288] sm:$0xff] %v3649
        %4900 = vst [vmem:[%s187 + $0x290] sm:$0xff] %v3650
        %4901 = vst [vmem:[%s187 + $0x298] sm:$0xff] %v3651
        %4902 = vst [vmem:[%s187 + $0x2a0] sm:$0xff] %v3652
        %4903 = vst [vmem:[%s187 + $0x2a8] sm:$0xff] %v3653
        %4904 = vst [vmem:[%s187 + $0x2b0] sm:$0xff] %v3654
        %4905 = vst [vmem:[%s187 + $0x2b8] sm:$0xff] %v3655
        %4906 = vst [vmem:[%s187 + $0x2c0] sm:$0xff] %v3656
        %4907 = vst [vmem:[%s187 + $0x2c8] sm:$0xff] %v3657
        %4908 = vst [vmem:[%s187 + $0x2d0] sm:$0xff] %v3658
        %4909 = vst [vmem:[%s187 + $0x2d8] sm:$0xff] %v3659
        %4910 = vst [vmem:[%s187 + $0x2e0] sm:$0xff] %v3660
        %4911 = vst [vmem:[%s187 + $0x2e8] sm:$0xff] %v3661
        %4912 = vst [vmem:[%s187 + $0x2f0] sm:$0xff] %v3662
        %4913 = vst [vmem:[%s187 + $0x2f8] sm:$0xff] %v3663
        %4914 = vst [vmem:[%s187 + $0x300] sm:$0xff] %v3664
        %4915 = vst [vmem:[%s187 + $0x308] sm:$0xff] %v3665
        %4916 = vst [vmem:[%s187 + $0x310] sm:$0xff] %v3666
        %4917 = vst [vmem:[%s187 + $0x318] sm:$0xff] %v3667
        %4918 = vst [vmem:[%s187 + $0x320] sm:$0xff] %v3668
        %4919 = vst [vmem:[%s187 + $0x328] sm:$0xff] %v3669
        %4920 = vst [vmem:[%s187 + $0x330] sm:$0xff] %v3670
        %4921 = vst [vmem:[%s187 + $0x338] sm:$0xff] %v3671
        %4922 = vst [vmem:[%s187 + $0x340] sm:$0xff] %v3672
        %4923 = vst [vmem:[%s187 + $0x348] sm:$0xff] %v3673
        %4924 = vst [vmem:[%s187 + $0x350] sm:$0xff] %v3674
        %4925 = vst [vmem:[%s187 + $0x358] sm:$0xff] %v3675
        %4926 = vst [vmem:[%s187 + $0x360] sm:$0xff] %v3676
        %4927 = vst [vmem:[%s187 + $0x368] sm:$0xff] %v3677
        %4928 = vst [vmem:[%s187 + $0x370] sm:$0xff] %v3678
        %4929 = vst [vmem:[%s187 + $0x378] sm:$0xff] %v3679
        %4930 = vst [vmem:[%s187 + $0x380] sm:$0xff] %v3680
        %4931 = vst [vmem:[%s187 + $0x388] sm:$0xff] %v3681
        %4932 = vst [vmem:[%s187 + $0x390] sm:$0xff] %v3682
        %4933 = vst [vmem:[%s187 + $0x398] sm:$0xff] %v3683
        %4934 = vst [vmem:[%s187 + $0x3a0] sm:$0xff] %v3684
        %4935 = vst [vmem:[%s187 + $0x3a8] sm:$0xff] %v3685
        %4936 = vst [vmem:[%s187 + $0x3b0] sm:$0xff] %v3686
        %4937 = vst [vmem:[%s187 + $0x3b8] sm:$0xff] %v3687
        %4938 = vst [vmem:[%s187 + $0x3c0] sm:$0xff] %v3688
        %4939 = vst [vmem:[%s187 + $0x3c8] sm:$0xff] %v3689
        %4940 = vst [vmem:[%s187 + $0x3d0] sm:$0xff] %v3690
        %4941 = vst [vmem:[%s187 + $0x3d8] sm:$0xff] %v3691
        %4942 = vst [vmem:[%s187 + $0x3e0] sm:$0xff] %v3692
        %4943 = vst [vmem:[%s187 + $0x3e8] sm:$0xff] %v3693
        %4944 = vst [vmem:[%s187 + $0x3f0] sm:$0xff] %v3694
        %4945 = vst [vmem:[%s187 + $0x3f8] sm:$0xff] %v3695
        %4946 = vst [vmem:[%s187 + $0x400] sm:$0xff] %v3696
        %4947 = vst [vmem:[%s187 + $0x408] sm:$0xff] %v3697
        %4948 = vst [vmem:[%s187 + $0x410] sm:$0xff] %v3698
        %4949 = vst [vmem:[%s187 + $0x418] sm:$0xff] %v3699
        %4950 = vst [vmem:[%s187 + $0x420] sm:$0xff] %v3700
        %4951 = vst [vmem:[%s187 + $0x428] sm:$0xff] %v3701
        %4952 = vst [vmem:[%s187 + $0x430] sm:$0xff] %v3702
        %4953 = vst [vmem:[%s187 + $0x438] sm:$0xff] %v3703
        %4954 = vst [vmem:[%s187 + $0x440] sm:$0xff] %v3704
        %4955 = vst [vmem:[%s187 + $0x448] sm:$0xff] %v3705
        %4956 = vst [vmem:[%s187 + $0x450] sm:$0xff] %v3706
        %4957 = vst [vmem:[%s187 + $0x458] sm:$0xff] %v3707
        %4958 = vst [vmem:[%s187 + $0x460] sm:$0xff] %v3708
        %4959 = vst [vmem:[%s187 + $0x468] sm:$0xff] %v3709
        %4960 = vst [vmem:[%s187 + $0x470] sm:$0xff] %v3710
        %4961 = vst [vmem:[%s187 + $0x478] sm:$0xff] %v3711
        %4962 = vst [vmem:[%s187 + $0x480] sm:$0xff] %v3712
        %4963 = vst [vmem:[%s187 + $0x488] sm:$0xff] %v3713
        %4964 = vst [vmem:[%s187 + $0x490] sm:$0xff] %v3714
        %4965 = vst [vmem:[%s187 + $0x498] sm:$0xff] %v3715
        %4966 = vst [vmem:[%s187 + $0x4a0] sm:$0xff] %v3716
        %4967 = vst [vmem:[%s187 + $0x4a8] sm:$0xff] %v3717
        %4968 = vst [vmem:[%s187 + $0x4b0] sm:$0xff] %v3718
        %4969 = vst [vmem:[%s187 + $0x4b8] sm:$0xff] %v3719
        %4970 = vst [vmem:[%s187 + $0x4c0] sm:$0xff] %v3720
        %4971 = vst [vmem:[%s187 + $0x4c8] sm:$0xff] %v3721
        %4972 = vst [vmem:[%s187 + $0x4d0] sm:$0xff] %v3722
        %4973 = vst [vmem:[%s187 + $0x4d8] sm:$0xff] %v3723
        %4974 = vst [vmem:[%s187 + $0x4e0] sm:$0xff] %v3724
        %4975 = vst [vmem:[%s187 + $0x4e8] sm:$0xff] %v3725
        %4976 = vst [vmem:[%s187 + $0x4f0] sm:$0xff] %v3726
        %4977 = vst [vmem:[%s187 + $0x4f8] sm:$0xff] %v3727
        %4978 = vst [vmem:[%s187 + $0x500] sm:$0xff] %v3728
        %4979 = vst [vmem:[%s187 + $0x508] sm:$0xff] %v3729
        %4980 = vst [vmem:[%s187 + $0x510] sm:$0xff] %v3730
        %4981 = vst [vmem:[%s187 + $0x518] sm:$0xff] %v3731
        %4982 = vst [vmem:[%s187 + $0x520] sm:$0xff] %v3732
        %4983 = vst [vmem:[%s187 + $0x528] sm:$0xff] %v3733
        %4984 = vst [vmem:[%s187 + $0x530] sm:$0xff] %v3734
        %4985 = vst [vmem:[%s187 + $0x538] sm:$0xff] %v3735
        %4986 = vst [vmem:[%s187 + $0x540] sm:$0xff] %v3736
        %4987 = vst [vmem:[%s187 + $0x548] sm:$0xff] %v3737
        %4988 = vst [vmem:[%s187 + $0x550] sm:$0xff] %v3738
        %4989 = vst [vmem:[%s187 + $0x558] sm:$0xff] %v3739
        %4990 = vst [vmem:[%s187 + $0x560] sm:$0xff] %v3740
        %4991 = vst [vmem:[%s187 + $0x568] sm:$0xff] %v3741
        %4992 = vst [vmem:[%s187 + $0x570] sm:$0xff] %v3742
        %4993 = vst [vmem:[%s187 + $0x578] sm:$0xff] %v3743
        %4994 = vst [vmem:[%s187 + $0x580] sm:$0xff] %v3744
        %4995 = vst [vmem:[%s187 + $0x588] sm:$0xff] %v3745
        %4996 = vst [vmem:[%s187 + $0x590] sm:$0xff] %v3746
        %4997 = vst [vmem:[%s187 + $0x598] sm:$0xff] %v3747
        %4998 = vst [vmem:[%s187 + $0x5a0] sm:$0xff] %v3748
        %4999 = vst [vmem:[%s187 + $0x5a8] sm:$0xff] %v3749
        %5000 = vst [vmem:[%s187 + $0x5b0] sm:$0xff] %v3750
        %5001 = vst [vmem:[%s187 + $0x5b8] sm:$0xff] %v3751
        %5002 = vst [vmem:[%s187 + $0x5c0] sm:$0xff] %v3752
        %5003 = vst [vmem:[%s187 + $0x5c8] sm:$0xff] %v3753
        %5004 = vst [vmem:[%s187 + $0x5d0] sm:$0xff] %v3754
        %5005 = vst [vmem:[%s187 + $0x5d8] sm:$0xff] %v3755
        %5006 = vst [vmem:[%s187 + $0x5e0] sm:$0xff] %v3756
        %5007 = vst [vmem:[%s187 + $0x5e8] sm:$0xff] %v3757
        %5008 = vst [vmem:[%s187 + $0x5f0] sm:$0xff] %v3758
        %5009 = vst [vmem:[%s187 + $0x5f8] sm:$0xff] %v3759
        %5010 = vst [vmem:[%s187 + $0x600] sm:$0xff] %v3760
        %5011 = vst [vmem:[%s187 + $0x608] sm:$0xff] %v3761
        %5012 = vst [vmem:[%s187 + $0x610] sm:$0xff] %v3762
        %5013 = vst [vmem:[%s187 + $0x618] sm:$0xff] %v3763
        %5014 = vst [vmem:[%s187 + $0x620] sm:$0xff] %v3764
        %5015 = vst [vmem:[%s187 + $0x628] sm:$0xff] %v3765
        %5016 = vst [vmem:[%s187 + $0x630] sm:$0xff] %v3766
        %5017 = vst [vmem:[%s187 + $0x638] sm:$0xff] %v3767
        %5018 = vst [vmem:[%s187 + $0x640] sm:$0xff] %v3768
        %5019 = vst [vmem:[%s187 + $0x648] sm:$0xff] %v3769
        %5020 = vst [vmem:[%s187 + $0x650] sm:$0xff] %v3770
        %5021 = vst [vmem:[%s187 + $0x658] sm:$0xff] %v3771
        %5022 = vst [vmem:[%s187 + $0x660] sm:$0xff] %v3772
        %5023 = vst [vmem:[%s187 + $0x668] sm:$0xff] %v3773
        %5024 = vst [vmem:[%s187 + $0x670] sm:$0xff] %v3774
        %5025 = vst [vmem:[%s187 + $0x678] sm:$0xff] %v3775
        %5026 = vst [vmem:[%s187 + $0x680] sm:$0xff] %v3776
        %5027 = vst [vmem:[%s187 + $0x688] sm:$0xff] %v3777
        %5028 = vst [vmem:[%s187 + $0x690] sm:$0xff] %v3778
        %5029 = vst [vmem:[%s187 + $0x698] sm:$0xff] %v3779
        %5030 = vst [vmem:[%s187 + $0x6a0] sm:$0xff] %v3780
        %5031 = vst [vmem:[%s187 + $0x6a8] sm:$0xff] %v3781
        %5032 = vst [vmem:[%s187 + $0x6b0] sm:$0xff] %v3782
        %5033 = vst [vmem:[%s187 + $0x6b8] sm:$0xff] %v3783
        %5034 = vst [vmem:[%s187 + $0x6c0] sm:$0xff] %v3784
        %5035 = vst [vmem:[%s187 + $0x6c8] sm:$0xff] %v3785
        %5036 = vst [vmem:[%s187 + $0x6d0] sm:$0xff] %v3786
        %5037 = vst [vmem:[%s187 + $0x6d8] sm:$0xff] %v3787
        %5038 = vst [vmem:[%s187 + $0x6e0] sm:$0xff] %v3788
        %5039 = vst [vmem:[%s187 + $0x6e8] sm:$0xff] %v3789
        %5040 = vst [vmem:[%s187 + $0x6f0] sm:$0xff] %v3790
        %5041 = vst [vmem:[%s187 + $0x6f8] sm:$0xff] %v3791
        %5042 = vst [vmem:[%s187 + $0x700] sm:$0xff] %v3792
        %5043 = vst [vmem:[%s187 + $0x708] sm:$0xff] %v3793
        %5044 = vst [vmem:[%s187 + $0x710] sm:$0xff] %v3794
        %5045 = vst [vmem:[%s187 + $0x718] sm:$0xff] %v3795
        %5046 = vst [vmem:[%s187 + $0x720] sm:$0xff] %v3796
        %5047 = vst [vmem:[%s187 + $0x728] sm:$0xff] %v3797
        %5048 = vst [vmem:[%s187 + $0x730] sm:$0xff] %v3798
        %5049 = vst [vmem:[%s187 + $0x738] sm:$0xff] %v3799
        %5050 = vst [vmem:[%s187 + $0x740] sm:$0xff] %v3800
        %5051 = vst [vmem:[%s187 + $0x748] sm:$0xff] %v3801
        %5052 = vst [vmem:[%s187 + $0x750] sm:$0xff] %v3802
        %5053 = vst [vmem:[%s187 + $0x758] sm:$0xff] %v3803
        %5054 = vst [vmem:[%s187 + $0x760] sm:$0xff] %v3804
        %5055 = vst [vmem:[%s187 + $0x768] sm:$0xff] %v3805
        %5056 = vst [vmem:[%s187 + $0x770] sm:$0xff] %v3806
        %5057 = vst [vmem:[%s187 + $0x778] sm:$0xff] %v3807
        %5058 = vst [vmem:[%s187 + $0x780] sm:$0xff] %v3808
        %5059 = vst [vmem:[%s187 + $0x788] sm:$0xff] %v3809
        %5060 = vst [vmem:[%s187 + $0x790] sm:$0xff] %v3810
        %5061 = vst [vmem:[%s187 + $0x798] sm:$0xff] %v3811
        %5062 = vst [vmem:[%s187 + $0x7a0] sm:$0xff] %v3812
        %5063 = vst [vmem:[%s187 + $0x7a8] sm:$0xff] %v3813
        %5064 = vst [vmem:[%s187 + $0x7b0] sm:$0xff] %v3814
        %5065 = vst [vmem:[%s187 + $0x7b8] sm:$0xff] %v3815
        %5066 = vst [vmem:[%s187 + $0x7c0] sm:$0xff] %v3816
        %5067 = vst [vmem:[%s187 + $0x7c8] sm:$0xff] %v3817
        %5068 = vst [vmem:[%s187 + $0x7d0] sm:$0xff] %v3818
        %5069 = vst [vmem:[%s187 + $0x7d8] sm:$0xff] %v3819
        %5070 = vst [vmem:[%s187 + $0x7e0] sm:$0xff] %v3820
        %5071 = vst [vmem:[%s187 + $0x7e8] sm:$0xff] %v3821
        %5072 = vst [vmem:[%s187 + $0x7f0] sm:$0xff] %v3822
        %5073 = vst [vmem:[%s187 + $0x7f8] sm:$0xff] %v3823
        %5074 = vst [vmem:[%s187 + $0x800] sm:$0xff] %v3824
        %5075 = vst [vmem:[%s187 + $0x808] sm:$0xff] %v3825
        %5076 = vst [vmem:[%s187 + $0x810] sm:$0xff] %v3826
        %5077 = vst [vmem:[%s187 + $0x818] sm:$0xff] %v3827
        %5078 = vst [vmem:[%s187 + $0x820] sm:$0xff] %v3828
        %5079 = vst [vmem:[%s187 + $0x828] sm:$0xff] %v3829
        %5080 = vst [vmem:[%s187 + $0x830] sm:$0xff] %v3830
        %5081 = vst [vmem:[%s187 + $0x838] sm:$0xff] %v3831
        %5082 = vst [vmem:[%s187 + $0x840] sm:$0xff] %v3832
        %5083 = vst [vmem:[%s187 + $0x848] sm:$0xff] %v3833
        %5084 = vst [vmem:[%s187 + $0x850] sm:$0xff] %v3834
        %5085 = vst [vmem:[%s187 + $0x858] sm:$0xff] %v3835
        %5086 = vst [vmem:[%s187 + $0x860] sm:$0xff] %v3836
        %5087 = vst [vmem:[%s187 + $0x868] sm:$0xff] %v3837
        %5088 = vst [vmem:[%s187 + $0x870] sm:$0xff] %v3838
        %5089 = vst [vmem:[%s187 + $0x878] sm:$0xff] %v3839
        %5090 = vst [vmem:[%s187 + $0x880] sm:$0xff] %v3840
        %5091 = vst [vmem:[%s187 + $0x888] sm:$0xff] %v3841
        %5092 = vst [vmem:[%s187 + $0x890] sm:$0xff] %v3842
        %5093 = vst [vmem:[%s187 + $0x898] sm:$0xff] %v3843
        %5094 = vst [vmem:[%s187 + $0x8a0] sm:$0xff] %v3844
        %5095 = vst [vmem:[%s187 + $0x8a8] sm:$0xff] %v3845
        %5096 = vst [vmem:[%s187 + $0x8b0] sm:$0xff] %v3846
        %5097 = vst [vmem:[%s187 + $0x8b8] sm:$0xff] %v3847
        %5098 = vst [vmem:[%s187 + $0x8c0] sm:$0xff] %v3848
        %5099 = vst [vmem:[%s187 + $0x8c8] sm:$0xff] %v3849
        %5100 = vst [vmem:[%s187 + $0x8d0] sm:$0xff] %v3850
        %5101 = vst [vmem:[%s187 + $0x8d8] sm:$0xff] %v3851
        %5102 = vst [vmem:[%s187 + $0x8e0] sm:$0xff] %v3852
        %5103 = vst [vmem:[%s187 + $0x8e8] sm:$0xff] %v3853
        %5104 = vst [vmem:[%s187 + $0x8f0] sm:$0xff] %v3854
        %5105 = vst [vmem:[%s187 + $0x8f8] sm:$0xff] %v3855
        %5106 = vst [vmem:[%s187 + $0x900] sm:$0xff] %v3856
        %5107 = vst [vmem:[%s187 + $0x908] sm:$0xff] %v3857
        %5108 = vst [vmem:[%s187 + $0x910] sm:$0xff] %v3858
        %5109 = vst [vmem:[%s187 + $0x918] sm:$0xff] %v3859
        %5110 = vst [vmem:[%s187 + $0x920] sm:$0xff] %v3860
        %5111 = vst [vmem:[%s187 + $0x928] sm:$0xff] %v3861
        %5112 = vst [vmem:[%s187 + $0x930] sm:$0xff] %v3862
        %5113 = vst [vmem:[%s187 + $0x938] sm:$0xff] %v3863
        %5114 = vst [vmem:[%s187 + $0x940] sm:$0xff] %v3864
        %5115 = vst [vmem:[%s187 + $0x948] sm:$0xff] %v3865
        %5116 = vst [vmem:[%s187 + $0x950] sm:$0xff] %v3866
        %5117 = vst [vmem:[%s187 + $0x958] sm:$0xff] %v3867
        %5118 = vst [vmem:[%s187 + $0x960] sm:$0xff] %v3868
        %5119 = vst [vmem:[%s187 + $0x968] sm:$0xff] %v3869
        %5120 = vst [vmem:[%s187 + $0x970] sm:$0xff] %v3870
        %5121 = vst [vmem:[%s187 + $0x978] sm:$0xff] %v3871
        %5122 = vst [vmem:[%s187 + $0x980] sm:$0xff] %v3872
        %5123 = vst [vmem:[%s187 + $0x988] sm:$0xff] %v3873
        %5124 = vst [vmem:[%s187 + $0x990] sm:$0xff] %v3874
        %5125 = vst [vmem:[%s187 + $0x998] sm:$0xff] %v3875
        %5126 = vst [vmem:[%s187 + $0x9a0] sm:$0xff] %v3876
        %5127 = vst [vmem:[%s187 + $0x9a8] sm:$0xff] %v3877
        %5128 = vst [vmem:[%s187 + $0x9b0] sm:$0xff] %v3878
        %5129 = vst [vmem:[%s187 + $0x9b8] sm:$0xff] %v3879
        %5130 = vst [vmem:[%s187 + $0x9c0] sm:$0xff] %v3880
        %5131 = vst [vmem:[%s187 + $0x9c8] sm:$0xff] %v3881
        %5132 = vst [vmem:[%s187 + $0x9d0] sm:$0xff] %v3882
        %5133 = vst [vmem:[%s187 + $0x9d8] sm:$0xff] %v3883
        %5134 = vst [vmem:[%s187 + $0x9e0] sm:$0xff] %v3884
        %5135 = vst [vmem:[%s187 + $0x9e8] sm:$0xff] %v3885
        %5136 = vst [vmem:[%s187 + $0x9f0] sm:$0xff] %v3886
        %5137 = vst [vmem:[%s187 + $0x9f8] sm:$0xff] %v3887
        %5138 = vst [vmem:[%s187 + $0xa00] sm:$0xff] %v3888
        %5139 = vst [vmem:[%s187 + $0xa08] sm:$0xff] %v3889
        %5140 = vst [vmem:[%s187 + $0xa10] sm:$0xff] %v3890
        %5141 = vst [vmem:[%s187 + $0xa18] sm:$0xff] %v3891
        %5142 = vst [vmem:[%s187 + $0xa20] sm:$0xff] %v3892
        %5143 = vst [vmem:[%s187 + $0xa28] sm:$0xff] %v3893
        %5144 = vst [vmem:[%s187 + $0xa30] sm:$0xff] %v3894
        %5145 = vst [vmem:[%s187 + $0xa38] sm:$0xff] %v3895
        %5146 = vst [vmem:[%s187 + $0xa40] sm:$0xff] %v3896
        %5147 = vst [vmem:[%s187 + $0xa48] sm:$0xff] %v3897
        %5148 = vst [vmem:[%s187 + $0xa50] sm:$0xff] %v3898
        %5149 = vst [vmem:[%s187 + $0xa58] sm:$0xff] %v3899
        %5150 = vst [vmem:[%s187 + $0xa60] sm:$0xff] %v3900
        %5151 = vst [vmem:[%s187 + $0xa68] sm:$0xff] %v3901
        %5152 = vst [vmem:[%s187 + $0xa70] sm:$0xff] %v3902
        %5153 = vst [vmem:[%s187 + $0xa78] sm:$0xff] %v3903
        %5154 = vst [vmem:[%s187 + $0xa80] sm:$0xff] %v3904
        %5155 = vst [vmem:[%s187 + $0xa88] sm:$0xff] %v3905
        %5156 = vst [vmem:[%s187 + $0xa90] sm:$0xff] %v3906
        %5157 = vst [vmem:[%s187 + $0xa98] sm:$0xff] %v3907
        %5158 = vst [vmem:[%s187 + $0xaa0] sm:$0xff] %v3908
        %5159 = vst [vmem:[%s187 + $0xaa8] sm:$0xff] %v3909
        %5160 = vst [vmem:[%s187 + $0xab0] sm:$0xff] %v3910
        %5161 = vst [vmem:[%s187 + $0xab8] sm:$0xff] %v3911
        %5162 = vst [vmem:[%s187 + $0xac0] sm:$0xff] %v3912
        %5163 = vst [vmem:[%s187 + $0xac8] sm:$0xff] %v3913
        %5164 = vst [vmem:[%s187 + $0xad0] sm:$0xff] %v3914
        %5165 = vst [vmem:[%s187 + $0xad8] sm:$0xff] %v3915
        %5166 = vst [vmem:[%s187 + $0xae0] sm:$0xff] %v3916
        %5167 = vst [vmem:[%s187 + $0xae8] sm:$0xff] %v3917
        %5168 = vst [vmem:[%s187 + $0xaf0] sm:$0xff] %v3918
        %5169 = vst [vmem:[%s187 + $0xaf8] sm:$0xff] %v3919
        %5170 = vst [vmem:[%s187 + $0xb00] sm:$0xff] %v3920
        %5171 = vst [vmem:[%s187 + $0xb08] sm:$0xff] %v3921
        %5172 = vst [vmem:[%s187 + $0xb10] sm:$0xff] %v3922
        %5173 = vst [vmem:[%s187 + $0xb18] sm:$0xff] %v3923
        %5174 = vst [vmem:[%s187 + $0xb20] sm:$0xff] %v3924
        %5175 = vst [vmem:[%s187 + $0xb28] sm:$0xff] %v3925
        %5176 = vst [vmem:[%s187 + $0xb30] sm:$0xff] %v3926
        %5177 = vst [vmem:[%s187 + $0xb38] sm:$0xff] %v3927
        %5178 = vst [vmem:[%s187 + $0xb40] sm:$0xff] %v3928
        %5179 = vst [vmem:[%s187 + $0xb48] sm:$0xff] %v3929
        %5180 = vst [vmem:[%s187 + $0xb50] sm:$0xff] %v3930
        %5181 = vst [vmem:[%s187 + $0xb58] sm:$0xff] %v3931
        %5182 = vst [vmem:[%s187 + $0xb60] sm:$0xff] %v3932
        %5183 = vst [vmem:[%s187 + $0xb68] sm:$0xff] %v3933
        %5184 = vst [vmem:[%s187 + $0xb70] sm:$0xff] %v3934
        %5185 = vst [vmem:[%s187 + $0xb78] sm:$0xff] %v3935
        %5186 = vst [vmem:[%s187 + $0xb80] sm:$0xff] %v3936
        %5187 = vst [vmem:[%s187 + $0xb88] sm:$0xff] %v3937
        %5188 = vst [vmem:[%s187 + $0xb90] sm:$0xff] %v3938
        %5189 = vst [vmem:[%s187 + $0xb98] sm:$0xff] %v3939
        %5190 = vst [vmem:[%s187 + $0xba0] sm:$0xff] %v3940
        %5191 = vst [vmem:[%s187 + $0xba8] sm:$0xff] %v3941
        %5192 = vst [vmem:[%s187 + $0xbb0] sm:$0xff] %v3942
        %5193 = vst [vmem:[%s187 + $0xbb8] sm:$0xff] %v3943
        %5194 = vst [vmem:[%s187 + $0xbc0] sm:$0xff] %v3944
        %5195 = vst [vmem:[%s187 + $0xbc8] sm:$0xff] %v3945
        %5196 = vst [vmem:[%s187 + $0xbd0] sm:$0xff] %v3946
        %5197 = vst [vmem:[%s187 + $0xbd8] sm:$0xff] %v3947
        %5198 = vst [vmem:[%s187 + $0xbe0] sm:$0xff] %v3948
        %5199 = vst [vmem:[%s187 + $0xbe8] sm:$0xff] %v3949
        %5200 = vst [vmem:[%s187 + $0xbf0] sm:$0xff] %v3950
        %5201 = vst [vmem:[%s187 + $0xbf8] sm:$0xff] %v3951
        %5202 = vst [vmem:[%s187 + $0xc00] sm:$0xff] %v3952
        %5203 = vst [vmem:[%s187 + $0xc08] sm:$0xff] %v3953
        %5204 = vst [vmem:[%s187 + $0xc10] sm:$0xff] %v3954
        %5205 = vst [vmem:[%s187 + $0xc18] sm:$0xff] %v3955
        %5206 = vst [vmem:[%s187 + $0xc20] sm:$0xff] %v3956
        %5207 = vst [vmem:[%s187 + $0xc28] sm:$0xff] %v3957
        %5208 = vst [vmem:[%s187 + $0xc30] sm:$0xff] %v3958
        %5209 = vst [vmem:[%s187 + $0xc38] sm:$0xff] %v3959
        %5210 = vst [vmem:[%s187 + $0xc40] sm:$0xff] %v3960
        %5211 = vst [vmem:[%s187 + $0xc48] sm:$0xff] %v3961
        %5212 = vst [vmem:[%s187 + $0xc50] sm:$0xff] %v3962
        %5213 = vst [vmem:[%s187 + $0xc58] sm:$0xff] %v3963
        %5214 = vst [vmem:[%s187 + $0xc60] sm:$0xff] %v3964
        %5215 = vst [vmem:[%s187 + $0xc68] sm:$0xff] %v3965
        %5216 = vst [vmem:[%s187 + $0xc70] sm:$0xff] %v3966
        %5217 = vst [vmem:[%s187 + $0xc78] sm:$0xff] %v3967
        %5218 = vst [vmem:[%s187 + $0xc80] sm:$0xff] %v3968
        %5219 = vst [vmem:[%s187 + $0xc88] sm:$0xff] %v3969
        %5220 = vst [vmem:[%s187 + $0xc90] sm:$0xff] %v3970
        %5221 = vst [vmem:[%s187 + $0xc98] sm:$0xff] %v3971
        %5222 = vst [vmem:[%s187 + $0xca0] sm:$0xff] %v3972
        %5223 = vst [vmem:[%s187 + $0xca8] sm:$0xff] %v3973
        %5224 = vst [vmem:[%s187 + $0xcb0] sm:$0xff] %v3974
        %5225 = vst [vmem:[%s187 + $0xcb8] sm:$0xff] %v3975
        %5226 = vst [vmem:[%s187 + $0xcc0] sm:$0xff] %v3976
        %5227 = vst [vmem:[%s187 + $0xcc8] sm:$0xff] %v3977
        %5228 = vst [vmem:[%s187 + $0xcd0] sm:$0xff] %v3978
        %5229 = vst [vmem:[%s187 + $0xcd8] sm:$0xff] %v3979
        %5230 = vst [vmem:[%s187 + $0xce0] sm:$0xff] %v3980
        %5231 = vst [vmem:[%s187 + $0xce8] sm:$0xff] %v3981
        %5232 = vst [vmem:[%s187 + $0xcf0] sm:$0xff] %v3982
        %5233 = vst [vmem:[%s187 + $0xcf8] sm:$0xff] %v3983
        %5234 = vst [vmem:[%s187 + $0xd00] sm:$0xff] %v3984
        %5235 = vst [vmem:[%s187 + $0xd08] sm:$0xff] %v3985
        %5236 = vst [vmem:[%s187 + $0xd10] sm:$0xff] %v3986
        %5237 = vst [vmem:[%s187 + $0xd18] sm:$0xff] %v3987
        %5238 = vst [vmem:[%s187 + $0xd20] sm:$0xff] %v3988
        %5239 = vst [vmem:[%s187 + $0xd28] sm:$0xff] %v3989
        %5240 = vst [vmem:[%s187 + $0xd30] sm:$0xff] %v3990
        %5241 = vst [vmem:[%s187 + $0xd38] sm:$0xff] %v3991
        %5242 = vst [vmem:[%s187 + $0xd40] sm:$0xff] %v3992
        %5243 = vst [vmem:[%s187 + $0xd48] sm:$0xff] %v3993
        %5244 = vst [vmem:[%s187 + $0xd50] sm:$0xff] %v3994
        %5245 = vst [vmem:[%s187 + $0xd58] sm:$0xff] %v3995
        %5246 = vst [vmem:[%s187 + $0xd60] sm:$0xff] %v3996
        %5247 = vst [vmem:[%s187 + $0xd68] sm:$0xff] %v3997
        %5248 = vst [vmem:[%s187 + $0xd70] sm:$0xff] %v3998
        %5249 = vst [vmem:[%s187 + $0xd78] sm:$0xff] %v3999
        %5250 = vst [vmem:[%s187 + $0xd80] sm:$0xff] %v4000
        %5251 = vst [vmem:[%s187 + $0xd88] sm:$0xff] %v4001
        %5252 = vst [vmem:[%s187 + $0xd90] sm:$0xff] %v4002
        %5253 = vst [vmem:[%s187 + $0xd98] sm:$0xff] %v4003
        %5254 = vst [vmem:[%s187 + $0xda0] sm:$0xff] %v4004
        %5255 = vst [vmem:[%s187 + $0xda8] sm:$0xff] %v4005
        %5256 = vst [vmem:[%s187 + $0xdb0] sm:$0xff] %v4006
        %5257 = vst [vmem:[%s187 + $0xdb8] sm:$0xff] %v4007
        %5258 = vst [vmem:[%s187 + $0xdc0] sm:$0xff] %v4008
        %5259 = vst [vmem:[%s187 + $0xdc8] sm:$0xff] %v4009
        %5260 = vst [vmem:[%s187 + $0xdd0] sm:$0xff] %v4010
        %5261 = vst [vmem:[%s187 + $0xdd8] sm:$0xff] %v4011
        %5262 = vst [vmem:[%s187 + $0xde0] sm:$0xff] %v4012
        %5263 = vst [vmem:[%s187 + $0xde8] sm:$0xff] %v4013
        %5264 = vst [vmem:[%s187 + $0xdf0] sm:$0xff] %v4014
        %5265 = vst [vmem:[%s187 + $0xdf8] sm:$0xff] %v4015
        %5266 = vst [vmem:[%s187 + $0xe00] sm:$0xff] %v4016
        %5267 = vst [vmem:[%s187 + $0xe08] sm:$0xff] %v4017
        %5268 = vst [vmem:[%s187 + $0xe10] sm:$0xff] %v4018
        %5269 = vst [vmem:[%s187 + $0xe18] sm:$0xff] %v4019
        %5270 = vst [vmem:[%s187 + $0xe20] sm:$0xff] %v4020
        %5271 = vst [vmem:[%s187 + $0xe28] sm:$0xff] %v4021
        %5272 = vst [vmem:[%s187 + $0xe30] sm:$0xff] %v4022
        %5273 = vst [vmem:[%s187 + $0xe38] sm:$0xff] %v4023
        %5274 = vst [vmem:[%s187 + $0xe40] sm:$0xff] %v4024
        %5275 = vst [vmem:[%s187 + $0xe48] sm:$0xff] %v4025
        %5276 = vst [vmem:[%s187 + $0xe50] sm:$0xff] %v4026
        %5277 = vst [vmem:[%s187 + $0xe58] sm:$0xff] %v4027
        %5278 = vst [vmem:[%s187 + $0xe60] sm:$0xff] %v4028
        %5279 = vst [vmem:[%s187 + $0xe68] sm:$0xff] %v4029
        %5280 = vst [vmem:[%s187 + $0xe70] sm:$0xff] %v4030
        %5281 = vst [vmem:[%s187 + $0xe78] sm:$0xff] %v4031
        %5282 = vst [vmem:[%s187 + $0xe80] sm:$0xff] %v4032
        %5283 = vst [vmem:[%s187 + $0xe88] sm:$0xff] %v4033
        %5284 = vst [vmem:[%s187 + $0xe90] sm:$0xff] %v4034
        %5285 = vst [vmem:[%s187 + $0xe98] sm:$0xff] %v4035
        %5286 = vst [vmem:[%s187 + $0xea0] sm:$0xff] %v4036
        %5287 = vst [vmem:[%s187 + $0xea8] sm:$0xff] %v4037
        %5288 = vst [vmem:[%s187 + $0xeb0] sm:$0xff] %v4038
        %5289 = vst [vmem:[%s187 + $0xeb8] sm:$0xff] %v4039
        %5290 = vst [vmem:[%s187 + $0xec0] sm:$0xff] %v4040
        %5291 = vst [vmem:[%s187 + $0xec8] sm:$0xff] %v4041
        %5292 = vst [vmem:[%s187 + $0xed0] sm:$0xff] %v4042
        %5293 = vst [vmem:[%s187 + $0xed8] sm:$0xff] %v4043
        %5294 = vst [vmem:[%s187 + $0xee0] sm:$0xff] %v4044
        %5295 = vst [vmem:[%s187 + $0xee8] sm:$0xff] %v4045
        %5296 = vst [vmem:[%s187 + $0xef0] sm:$0xff] %v4046
        %5297 = vst [vmem:[%s187 + $0xef8] sm:$0xff] %v4047
        %5298 = vst [vmem:[%s187 + $0xf00] sm:$0xff] %v4048
        %5299 = vst [vmem:[%s187 + $0xf08] sm:$0xff] %v4049
        %5300 = vst [vmem:[%s187 + $0xf10] sm:$0xff] %v4050
        %5301 = vst [vmem:[%s187 + $0xf18] sm:$0xff] %v4051
        %5302 = vst [vmem:[%s187 + $0xf20] sm:$0xff] %v4052
        %5303 = vst [vmem:[%s187 + $0xf28] sm:$0xff] %v4053
        %5304 = vst [vmem:[%s187 + $0xf30] sm:$0xff] %v4054
        %5305 = vst [vmem:[%s187 + $0xf38] sm:$0xff] %v4055
        %5306 = vst [vmem:[%s187 + $0xf40] sm:$0xff] %v4056
        %5307 = vst [vmem:[%s187 + $0xf48] sm:$0xff] %v4057
        %5308 = vst [vmem:[%s187 + $0xf50] sm:$0xff] %v4058
        %5309 = vst [vmem:[%s187 + $0xf58] sm:$0xff] %v4059
        %5310 = vst [vmem:[%s187 + $0xf60] sm:$0xff] %v4060
        %5311 = vst [vmem:[%s187 + $0xf68] sm:$0xff] %v4061
        %5312 = vst [vmem:[%s187 + $0xf70] sm:$0xff] %v4062
        %5313 = vst [vmem:[%s187 + $0xf78] sm:$0xff] %v4063
        %5314 = vst [vmem:[%s187 + $0xf80] sm:$0xff] %v4064
        %5315 = vst [vmem:[%s187 + $0xf88] sm:$0xff] %v4065
        %5316 = vst [vmem:[%s187 + $0xf90] sm:$0xff] %v4066
        %5317 = vst [vmem:[%s187 + $0xf98] sm:$0xff] %v4067
        %5318 = vst [vmem:[%s187 + $0xfa0] sm:$0xff] %v4068
        %5319 = vst [vmem:[%s187 + $0xfa8] sm:$0xff] %v4069
        %5320 = vst [vmem:[%s187 + $0xfb0] sm:$0xff] %v4070
        %5321 = vst [vmem:[%s187 + $0xfb8] sm:$0xff] %v4071
        %5322 = vst [vmem:[%s187 + $0xfc0] sm:$0xff] %v4072
        %5323 = vst [vmem:[%s187 + $0xfc8] sm:$0xff] %v4073
        %5324 = vst [vmem:[%s187 + $0xfd0] sm:$0xff] %v4074
        %5325 = vst [vmem:[%s187 + $0xfd8] sm:$0xff] %v4075
        %5326 = vst [vmem:[%s187 + $0xfe0] sm:$0xff] %v4076
        %5327 = vst [vmem:[%s187 + $0xfe8] sm:$0xff] %v4077
        %5328 = vst [vmem:[%s187 + $0xff0] sm:$0xff] %v4078
        %5329 = vst [vmem:[%s187 + $0xff8] sm:$0xff] %v4079
        %5330 = vst [vmem:[%s187 + $0x1000] sm:$0xff] %v4080
        %5331 = vst [vmem:[%s187 + $0x1008] sm:$0xff] %v4081
        %5332 = vst [vmem:[%s187 + $0x1010] sm:$0xff] %v4082
        %5333 = vst [vmem:[%s187 + $0x1018] sm:$0xff] %v4083
        %5334 = vst [vmem:[%s187 + $0x1020] sm:$0xff] %v4084
        %5335 = vst [vmem:[%s187 + $0x1028] sm:$0xff] %v4085
        %5336 = vst [vmem:[%s187 + $0x1030] sm:$0xff] %v4086
        %5337 = vst [vmem:[%s187 + $0x1038] sm:$0xff] %v4087
        %5338 = vst [vmem:[%s187 + $0x1040] sm:$0xff] %v4088
        %5339 = vst [vmem:[%s187 + $0x1048] sm:$0xff] %v4089
        %5340 = vst [vmem:[%s187 + $0x1050] sm:$0xff] %v4090
        %5341 = vst [vmem:[%s187 + $0x1058] sm:$0xff] %v4091
        %5342 = vst [vmem:[%s187 + $0x1060] sm:$0xff] %v4092
        %5343 = vst [vmem:[%s187 + $0x1068] sm:$0xff] %v4093
        %5344 = vst [vmem:[%s187 + $0x1070] sm:$0xff] %v4094
        %5345 = vst [vmem:[%s187 + $0x1078] sm:$0xff] %v4095
        %5346 = vst [vmem:[%s187 + $0x1080] sm:$0xff] %v4096
        %5347 = vst [vmem:[%s187 + $0x1088] sm:$0xff] %v4097
        %5348 = vst [vmem:[%s187 + $0x1090] sm:$0xff] %v4098
        %5349 = vst [vmem:[%s187 + $0x1098] sm:$0xff] %v4099
        %5350 = vst [vmem:[%s187 + $0x10a0] sm:$0xff] %v4100
        %5351 = vst [vmem:[%s187 + $0x10a8] sm:$0xff] %v4101
        %5352 = vst [vmem:[%s187 + $0x10b0] sm:$0xff] %v4102
        %5353 = vst [vmem:[%s187 + $0x10b8] sm:$0xff] %v4103
        %5354 = vst [vmem:[%s187 + $0x10c0] sm:$0xff] %v4104
        %5355 = vst [vmem:[%s187 + $0x10c8] sm:$0xff] %v4105
        %5356 = vst [vmem:[%s187 + $0x10d0] sm:$0xff] %v4106
        %5357 = vst [vmem:[%s187 + $0x10d8] sm:$0xff] %v4107
        %5358 = vst [vmem:[%s187 + $0x10e0] sm:$0xff] %v4108
        %5359 = vst [vmem:[%s187 + $0x10e8] sm:$0xff] %v4109
        %5360 = vst [vmem:[%s187 + $0x10f0] sm:$0xff] %v4110
        %5361 = vst [vmem:[%s187 + $0x10f8] sm:$0xff] %v4111
        %5362 = vst [vmem:[%s187 + $0x1100] sm:$0xff] %v4112
        %5363 = vst [vmem:[%s187 + $0x1108] sm:$0xff] %v4113
        %5364 = vst [vmem:[%s187 + $0x1110] sm:$0xff] %v4114
        %5365 = vst [vmem:[%s187 + $0x1118] sm:$0xff] %v4115
        %5366 = vst [vmem:[%s187 + $0x1120] sm:$0xff] %v4116
        %5367 = vst [vmem:[%s187 + $0x1128] sm:$0xff] %v4117
        %5368 = vst [vmem:[%s187 + $0x1130] sm:$0xff] %v4118
        %5369 = vst [vmem:[%s187 + $0x1138] sm:$0xff] %v4119
        %5370 = vst [vmem:[%s187 + $0x1140] sm:$0xff] %v4120
        %5371 = vst [vmem:[%s187 + $0x1148] sm:$0xff] %v4121
        %5372 = vst [vmem:[%s187 + $0x1150] sm:$0xff] %v4122
        %5373 = vst [vmem:[%s187 + $0x1158] sm:$0xff] %v4123
        %5374 = vst [vmem:[%s187 + $0x1160] sm:$0xff] %v4124
        %5375 = vst [vmem:[%s187 + $0x1168] sm:$0xff] %v4125
        %5376 = vst [vmem:[%s187 + $0x1170] sm:$0xff] %v4126
        %5377 = vst [vmem:[%s187 + $0x1178] sm:$0xff] %v4127
        %5378 = vst [vmem:[%s187 + $0x1180] sm:$0xff] %v4128
        %5379 = vst [vmem:[%s187 + $0x1188] sm:$0xff] %v4129
        %5380 = vst [vmem:[%s187 + $0x1190] sm:$0xff] %v4130
        %5381 = vst [vmem:[%s187 + $0x1198] sm:$0xff] %v4131
        %5382 = vst [vmem:[%s187 + $0x11a0] sm:$0xff] %v4132
        %5383 = vst [vmem:[%s187 + $0x11a8] sm:$0xff] %v4133
        %5384 = vst [vmem:[%s187 + $0x11b0] sm:$0xff] %v4134
        %5385 = vst [vmem:[%s187 + $0x11b8] sm:$0xff] %v4135
        %5386 = vst [vmem:[%s187 + $0x11c0] sm:$0xff] %v4136
        %5387 = vst [vmem:[%s187 + $0x11c8] sm:$0xff] %v4137
        %5388 = vst [vmem:[%s187 + $0x11d0] sm:$0xff] %v4138
        %5389 = vst [vmem:[%s187 + $0x11d8] sm:$0xff] %v4139
        %5390 = vst [vmem:[%s187 + $0x11e0] sm:$0xff] %v4140
        %5391 = vst [vmem:[%s187 + $0x11e8] sm:$0xff] %v4141
        %5392 = vst [vmem:[%s187 + $0x11f0] sm:$0xff] %v4142
        %5393 = vst [vmem:[%s187 + $0x11f8] sm:$0xff] %v4143
        %5394 = vst [vmem:[%s187 + $0x1200] sm:$0xff] %v4144
        %5395 = vst [vmem:[%s187 + $0x1208] sm:$0xff] %v4145
        %5396 = vst [vmem:[%s187 + $0x1210] sm:$0xff] %v4146
        %5397 = vst [vmem:[%s187 + $0x1218] sm:$0xff] %v4147
        %5398 = vst [vmem:[%s187 + $0x1220] sm:$0xff] %v4148
        %5399 = vst [vmem:[%s187 + $0x1228] sm:$0xff] %v4149
        %5400 = vst [vmem:[%s187 + $0x1230] sm:$0xff] %v4150
        %5401 = vst [vmem:[%s187 + $0x1238] sm:$0xff] %v4151
        %5402 = vst [vmem:[%s187 + $0x1240] sm:$0xff] %v4152
        %5403 = vst [vmem:[%s187 + $0x1248] sm:$0xff] %v4153
        %5404 = vst [vmem:[%s187 + $0x1250] sm:$0xff] %v4154
        %5405 = vst [vmem:[%s187 + $0x1258] sm:$0xff] %v4155
        %5406 = vst [vmem:[%s187 + $0x1260] sm:$0xff] %v4156
        %5407 = vst [vmem:[%s187 + $0x1268] sm:$0xff] %v4157
        %5408 = vst [vmem:[%s187 + $0x1270] sm:$0xff] %v4158
        %5409 = vst [vmem:[%s187 + $0x1278] sm:$0xff] %v4159
        %5410 = vst [vmem:[%s187 + $0x1280] sm:$0xff] %v4160
        %5411 = vst [vmem:[%s187 + $0x1288] sm:$0xff] %v4161
        %5412 = vst [vmem:[%s187 + $0x1290] sm:$0xff] %v4162
        %5413 = vst [vmem:[%s187 + $0x1298] sm:$0xff] %v4163
        %5414 = vst [vmem:[%s187 + $0x12a0] sm:$0xff] %v4164
        %5415 = vst [vmem:[%s187 + $0x12a8] sm:$0xff] %v4165
        %5416 = vst [vmem:[%s187 + $0x12b0] sm:$0xff] %v4166
        %5417 = vst [vmem:[%s187 + $0x12b8] sm:$0xff] %v4167
        %5418 = vst [vmem:[%s187 + $0x12c0] sm:$0xff] %v4168
        %5419 = vst [vmem:[%s187 + $0x12c8] sm:$0xff] %v4169
        %5420 = vst [vmem:[%s187 + $0x12d0] sm:$0xff] %v4170
        %5421 = vst [vmem:[%s187 + $0x12d8] sm:$0xff] %v4171
        %5422 = vst [vmem:[%s187 + $0x12e0] sm:$0xff] %v4172
        %5423 = vst [vmem:[%s187 + $0x12e8] sm:$0xff] %v4173
        %5424 = vst [vmem:[%s187 + $0x12f0] sm:$0xff] %v4174
        %5425 = vst [vmem:[%s187 + $0x12f8] sm:$0xff] %v4175
        %5426 = vst [vmem:[%s187 + $0x1300] sm:$0xff] %v4176
        %5427 = vst [vmem:[%s187 + $0x1308] sm:$0xff] %v4177
        %5428 = vst [vmem:[%s187 + $0x1310] sm:$0xff] %v4178
        %5429 = vst [vmem:[%s187 + $0x1318] sm:$0xff] %v4179
        %5430 = vst [vmem:[%s187 + $0x1320] sm:$0xff] %v4180
        %5431 = vst [vmem:[%s187 + $0x1328] sm:$0xff] %v4181
        %5432 = vst [vmem:[%s187 + $0x1330] sm:$0xff] %v4182
        %5433 = vst [vmem:[%s187 + $0x1338] sm:$0xff] %v4183
        %5434 = vst [vmem:[%s187 + $0x1340] sm:$0xff] %v4184
        %5435 = vst [vmem:[%s187 + $0x1348] sm:$0xff] %v4185
        %5436 = vst [vmem:[%s187 + $0x1350] sm:$0xff] %v4186
        %5437 = vst [vmem:[%s187 + $0x1358] sm:$0xff] %v4187
        %5438 = vst [vmem:[%s187 + $0x1360] sm:$0xff] %v4188
        %5439 = vst [vmem:[%s187 + $0x1368] sm:$0xff] %v4189
        %5440 = vst [vmem:[%s187 + $0x1370] sm:$0xff] %v4190
        %5441 = vst [vmem:[%s187 + $0x1378] sm:$0xff] %v4191
        %5442 = vst [vmem:[%s187 + $0x1380] sm:$0xff] %v4192
        %5443 = vst [vmem:[%s187 + $0x1388] sm:$0xff] %v4193
        %5444 = vst [vmem:[%s187 + $0x1390] sm:$0xff] %v4194
        %5445 = vst [vmem:[%s187 + $0x1398] sm:$0xff] %v4195
        %5446 = vst [vmem:[%s187 + $0x13a0] sm:$0xff] %v4196
        %5447 = vst [vmem:[%s187 + $0x13a8] sm:$0xff] %v4197
        %5448 = vst [vmem:[%s187 + $0x13b0] sm:$0xff] %v4198
        %5449 = vst [vmem:[%s187 + $0x13b8] sm:$0xff] %v4199
        %5450 = vst [vmem:[%s187 + $0x13c0] sm:$0xff] %v4200
        %5451 = vst [vmem:[%s187 + $0x13c8] sm:$0xff] %v4201
        %5452 = vst [vmem:[%s187 + $0x13d0] sm:$0xff] %v4202
        %5453 = vst [vmem:[%s187 + $0x13d8] sm:$0xff] %v4203
        %5454 = vst [vmem:[%s187 + $0x13e0] sm:$0xff] %v4204
        %5455 = vst [vmem:[%s187 + $0x13e8] sm:$0xff] %v4205
        %5456 = vst [vmem:[%s187 + $0x13f0] sm:$0xff] %v4206
        %5457 = vst [vmem:[%s187 + $0x13f8] sm:$0xff] %v4207
        %5458 = vst [vmem:[%s187 + $0x1400] sm:$0xff] %v4208
        %5459 = vst [vmem:[%s187 + $0x1408] sm:$0xff] %v4209
        %5460 = vst [vmem:[%s187 + $0x1410] sm:$0xff] %v4210
        %5461 = vst [vmem:[%s187 + $0x1418] sm:$0xff] %v4211
        %5462 = vst [vmem:[%s187 + $0x1420] sm:$0xff] %v4212
        %5463 = vst [vmem:[%s187 + $0x1428] sm:$0xff] %v4213
        %5464 = vst [vmem:[%s187 + $0x1430] sm:$0xff] %v4214
        %5465 = vst [vmem:[%s187 + $0x1438] sm:$0xff] %v4215
        %5466 = vst [vmem:[%s187 + $0x1440] sm:$0xff] %v4216
        %5467 = vst [vmem:[%s187 + $0x1448] sm:$0xff] %v4217
        %5468 = vst [vmem:[%s187 + $0x1450] sm:$0xff] %v4218
        %5469 = vst [vmem:[%s187 + $0x1458] sm:$0xff] %v4219
        %5470 = vst [vmem:[%s187 + $0x1460] sm:$0xff] %v4220
        %5471 = vst [vmem:[%s187 + $0x1468] sm:$0xff] %v4221
        %5472 = vst [vmem:[%s187 + $0x1470] sm:$0xff] %v4222
        %5473 = vst [vmem:[%s187 + $0x1478] sm:$0xff] %v4223
        %5474 = vst [vmem:[%s187 + $0x1480] sm:$0xff] %v4224
        %5475 = vst [vmem:[%s187 + $0x1488] sm:$0xff] %v4225
        %5476 = vst [vmem:[%s187 + $0x1490] sm:$0xff] %v4226
        %5477 = vst [vmem:[%s187 + $0x1498] sm:$0xff] %v4227
        %5478 = vst [vmem:[%s187 + $0x14a0] sm:$0xff] %v4228
        %5479 = vst [vmem:[%s187 + $0x14a8] sm:$0xff] %v4229
        %5480 = vst [vmem:[%s187 + $0x14b0] sm:$0xff] %v4230
        %5481 = vst [vmem:[%s187 + $0x14b8] sm:$0xff] %v4231
        %5482 = vst [vmem:[%s187 + $0x14c0] sm:$0xff] %v4232
        %5483 = vst [vmem:[%s187 + $0x14c8] sm:$0xff] %v4233
        %5484 = vst [vmem:[%s187 + $0x14d0] sm:$0xff] %v4234
        %5485 = vst [vmem:[%s187 + $0x14d8] sm:$0xff] %v4235
        %5486 = vst [vmem:[%s187 + $0x14e0] sm:$0xff] %v4236
        %5487 = vst [vmem:[%s187 + $0x14e8] sm:$0xff] %v4237
        %5488 = vst [vmem:[%s187 + $0x14f0] sm:$0xff] %v4238
        %5489 = vst [vmem:[%s187 + $0x14f8] sm:$0xff] %v4239
        %5490 = vst [vmem:[%s187 + $0x1500] sm:$0xff] %v4240
        %5491 = vst [vmem:[%s187 + $0x1508] sm:$0xff] %v4241
        %5492 = vst [vmem:[%s187 + $0x1510] sm:$0xff] %v4242
        %5493 = vst [vmem:[%s187 + $0x1518] sm:$0xff] %v4243
        %5494 = vst [vmem:[%s187 + $0x1520] sm:$0xff] %v4244
        %5495 = vst [vmem:[%s187 + $0x1528] sm:$0xff] %v4245
        %5496 = vst [vmem:[%s187 + $0x1530] sm:$0xff] %v4246
        %5497 = vst [vmem:[%s187 + $0x1538] sm:$0xff] %v4247
        %5498 = vst [vmem:[%s187 + $0x1540] sm:$0xff] %v4248
        %5499 = vst [vmem:[%s187 + $0x1548] sm:$0xff] %v4249
        %5500 = vst [vmem:[%s187 + $0x1550] sm:$0xff] %v4250
        %5501 = vst [vmem:[%s187 + $0x1558] sm:$0xff] %v4251
        %5502 = vst [vmem:[%s187 + $0x1560] sm:$0xff] %v4252
        %5503 = vst [vmem:[%s187 + $0x1568] sm:$0xff] %v4253
        %5504 = vst [vmem:[%s187 + $0x1570] sm:$0xff] %v4254
        %5505 = vst [vmem:[%s187 + $0x1578] sm:$0xff] %v4255
        %5506 = vst [vmem:[%s187 + $0x1580] sm:$0xff] %v4256
        %5507 = vst [vmem:[%s187 + $0x1588] sm:$0xff] %v4257
        %5508 = vst [vmem:[%s187 + $0x1590] sm:$0xff] %v4258
        %5509 = vst [vmem:[%s187 + $0x1598] sm:$0xff] %v4259
        %5510 = vst [vmem:[%s187 + $0x15a0] sm:$0xff] %v4260
        %5511 = vst [vmem:[%s187 + $0x15a8] sm:$0xff] %v4261
        %5512 = vst [vmem:[%s187 + $0x15b0] sm:$0xff] %v4262
        %5513 = vst [vmem:[%s187 + $0x15b8] sm:$0xff] %v4263
        %5514 = vst [vmem:[%s187 + $0x15c0] sm:$0xff] %v4264
        %5515 = vst [vmem:[%s187 + $0x15c8] sm:$0xff] %v4265
        %5516 = vst [vmem:[%s187 + $0x15d0] sm:$0xff] %v4266
        %5517 = vst [vmem:[%s187 + $0x15d8] sm:$0xff] %v4267
        %5518 = vst [vmem:[%s187 + $0x15e0] sm:$0xff] %v4268
        %5519 = vst [vmem:[%s187 + $0x15e8] sm:$0xff] %v4269
        %5520 = vst [vmem:[%s187 + $0x15f0] sm:$0xff] %v4270
        %5521 = vst [vmem:[%s187 + $0x15f8] sm:$0xff] %v4271
        %5522 = vst [vmem:[%s187 + $0x1600] sm:$0xff] %v4272
        %5523 = vst [vmem:[%s187 + $0x1608] sm:$0xff] %v4273
        %5524 = vst [vmem:[%s187 + $0x1610] sm:$0xff] %v4274
        %5525 = vst [vmem:[%s187 + $0x1618] sm:$0xff] %v4275
        %5526 = vst [vmem:[%s187 + $0x1620] sm:$0xff] %v4276
        %5527 = vst [vmem:[%s187 + $0x1628] sm:$0xff] %v4277
        %5528 = vst [vmem:[%s187 + $0x1630] sm:$0xff] %v4278
        %5529 = vst [vmem:[%s187 + $0x1638] sm:$0xff] %v4279
        %5530 = vst [vmem:[%s187 + $0x1640] sm:$0xff] %v4280
        %5531 = vst [vmem:[%s187 + $0x1648] sm:$0xff] %v4281
        %5532 = vst [vmem:[%s187 + $0x1650] sm:$0xff] %v4282
        %5533 = vst [vmem:[%s187 + $0x1658] sm:$0xff] %v4283
        %5534 = vst [vmem:[%s187 + $0x1660] sm:$0xff] %v4284
        %5535 = vst [vmem:[%s187 + $0x1668] sm:$0xff] %v4285
        %5536 = vst [vmem:[%s187 + $0x1670] sm:$0xff] %v4286
        %5537 = vst [vmem:[%s187 + $0x1678] sm:$0xff] %v4287
        %5538 = vst [vmem:[%s187 + $0x1680] sm:$0xff] %v4288
        %5539 = vst [vmem:[%s187 + $0x1688] sm:$0xff] %v4289
        %5540 = vst [vmem:[%s187 + $0x1690] sm:$0xff] %v4290
        %5541 = vst [vmem:[%s187 + $0x1698] sm:$0xff] %v4291
        %5542 = vst [vmem:[%s187 + $0x16a0] sm:$0xff] %v4292
        %5543 = vst [vmem:[%s187 + $0x16a8] sm:$0xff] %v4293
        %5544 = vst [vmem:[%s187 + $0x16b0] sm:$0xff] %v4294
        %5545 = vst [vmem:[%s187 + $0x16b8] sm:$0xff] %v4295
        %5546 = vst [vmem:[%s187 + $0x16c0] sm:$0xff] %v4296
        %5547 = vst [vmem:[%s187 + $0x16c8] sm:$0xff] %v4297
        %5548 = vst [vmem:[%s187 + $0x16d0] sm:$0xff] %v4298
        %5549 = vst [vmem:[%s187 + $0x16d8] sm:$0xff] %v4299
        %5550 = vst [vmem:[%s187 + $0x16e0] sm:$0xff] %v4300
        %5551 = vst [vmem:[%s187 + $0x16e8] sm:$0xff] %v4301
        %5552 = vst [vmem:[%s187 + $0x16f0] sm:$0xff] %v4302
        %5553 = vst [vmem:[%s187 + $0x16f8] sm:$0xff] %v4303
        %5554 = vst [vmem:[%s187 + $0x1700] sm:$0xff] %v4304
        %5555 = vst [vmem:[%s187 + $0x1708] sm:$0xff] %v4305
        %5556 = vst [vmem:[%s187 + $0x1710] sm:$0xff] %v4306
        %5557 = vst [vmem:[%s187 + $0x1718] sm:$0xff] %v4307
        %5558 = vst [vmem:[%s187 + $0x1720] sm:$0xff] %v4308
        %5559 = vst [vmem:[%s187 + $0x1728] sm:$0xff] %v4309
        %5560 = vst [vmem:[%s187 + $0x1730] sm:$0xff] %v4310
        %5561 = vst [vmem:[%s187 + $0x1738] sm:$0xff] %v4311
        %5562 = vst [vmem:[%s187 + $0x1740] sm:$0xff] %v4312
        %5563 = vst [vmem:[%s187 + $0x1748] sm:$0xff] %v4313
        %5564 = vst [vmem:[%s187 + $0x1750] sm:$0xff] %v4314
        %5565 = vst [vmem:[%s187 + $0x1758] sm:$0xff] %v4315
        %5566 = vst [vmem:[%s187 + $0x1760] sm:$0xff] %v4316
        %5567 = vst [vmem:[%s187 + $0x1768] sm:$0xff] %v4317
        %5568 = vst [vmem:[%s187 + $0x1770] sm:$0xff] %v4318
        %5569 = vst [vmem:[%s187 + $0x1778] sm:$0xff] %v4319
        %5570 = vst [vmem:[%s187 + $0x1780] sm:$0xff] %v4320
        %5571 = vst [vmem:[%s187 + $0x1788] sm:$0xff] %v4321
        %5572 = vst [vmem:[%s187 + $0x1790] sm:$0xff] %v4322
        %5573 = vst [vmem:[%s187 + $0x1798] sm:$0xff] %v4323
        %5574 = vst [vmem:[%s187 + $0x17a0] sm:$0xff] %v4324
        %5575 = vst [vmem:[%s187 + $0x17a8] sm:$0xff] %v4325
        %5576 = vst [vmem:[%s187 + $0x17b0] sm:$0xff] %v4326
        %5577 = vst [vmem:[%s187 + $0x17b8] sm:$0xff] %v4327
        %5578 = vst [vmem:[%s187 + $0x17c0] sm:$0xff] %v4328
        %5579 = vst [vmem:[%s187 + $0x17c8] sm:$0xff] %v4329
        %5580 = vst [vmem:[%s187 + $0x17d0] sm:$0xff] %v4330
        %5581 = vst [vmem:[%s187 + $0x17d8] sm:$0xff] %v4331
        %5582 = vst [vmem:[%s187 + $0x17e0] sm:$0xff] %v4332
        %5583 = vst [vmem:[%s187 + $0x17e8] sm:$0xff] %v4333
        %5584 = vst [vmem:[%s187 + $0x17f0] sm:$0xff] %v4334
        %5585 = vst [vmem:[%s187 + $0x17f8] sm:$0xff] %v4335
        %5586 = vst [vmem:[%s187 + $0x1800] sm:$0xff] %v4336
        %5587 = vst [vmem:[%s187 + $0x1808] sm:$0xff] %v4337
        %5588 = vst [vmem:[%s187 + $0x1810] sm:$0xff] %v4338
        %5589 = vst [vmem:[%s187 + $0x1818] sm:$0xff] %v4339
        %5590 = vst [vmem:[%s187 + $0x1820] sm:$0xff] %v4340
        %5591 = vst [vmem:[%s187 + $0x1828] sm:$0xff] %v4341
        %5592 = vst [vmem:[%s187 + $0x1830] sm:$0xff] %v4342
        %5593 = vst [vmem:[%s187 + $0x1838] sm:$0xff] %v4343
        %5594 = vst [vmem:[%s187 + $0x1840] sm:$0xff] %v4344
        %5595 = vst [vmem:[%s187 + $0x1848] sm:$0xff] %v4345
        %5596 = vst [vmem:[%s187 + $0x1850] sm:$0xff] %v4346
        %5597 = vst [vmem:[%s187 + $0x1858] sm:$0xff] %v4347
        %5598 = vst [vmem:[%s187 + $0x1860] sm:$0xff] %v4348
        %5599 = vst [vmem:[%s187 + $0x1868] sm:$0xff] %v4349
        %5600 = vst [vmem:[%s187 + $0x1870] sm:$0xff] %v4350
        %5601 = vst [vmem:[%s187 + $0x1878] sm:$0xff] %v4351
        %5602 = vst [vmem:[%s187 + $0x1880] sm:$0xff] %v4352
        %5603 = vst [vmem:[%s187 + $0x1888] sm:$0xff] %v4353
        %5604 = vst [vmem:[%s187 + $0x1890] sm:$0xff] %v4354
        %5605 = vst [vmem:[%s187 + $0x1898] sm:$0xff] %v4355
        %5606 = vst [vmem:[%s187 + $0x18a0] sm:$0xff] %v4356
        %5607 = vst [vmem:[%s187 + $0x18a8] sm:$0xff] %v4357
        %5608 = vst [vmem:[%s187 + $0x18b0] sm:$0xff] %v4358
        %5609 = vst [vmem:[%s187 + $0x18b8] sm:$0xff] %v4359
        %5610 = vst [vmem:[%s187 + $0x18c0] sm:$0xff] %v4360
        %5611 = vst [vmem:[%s187 + $0x18c8] sm:$0xff] %v4361
        %5612 = vst [vmem:[%s187 + $0x18d0] sm:$0xff] %v4362
        %5613 = vst [vmem:[%s187 + $0x18d8] sm:$0xff] %v4363
        %5614 = vst [vmem:[%s187 + $0x18e0] sm:$0xff] %v4364
        %5615 = vst [vmem:[%s187 + $0x18e8] sm:$0xff] %v4365
        %5616 = vst [vmem:[%s187 + $0x18f0] sm:$0xff] %v4366
        %5617 = vst [vmem:[%s187 + $0x18f8] sm:$0xff] %v4367
        %5618 = vst [vmem:[%s187 + $0x1900] sm:$0xff] %v4368
        %5619 = vst [vmem:[%s187 + $0x1908] sm:$0xff] %v4369
        %5620 = vst [vmem:[%s187 + $0x1910] sm:$0xff] %v4370
        %5621 = vst [vmem:[%s187 + $0x1918] sm:$0xff] %v4371
        %5622 = vst [vmem:[%s187 + $0x1920] sm:$0xff] %v4372
        %5623 = vst [vmem:[%s187 + $0x1928] sm:$0xff] %v4373
        %5624 = vst [vmem:[%s187 + $0x1930] sm:$0xff] %v4374
        %5625 = vst [vmem:[%s187 + $0x1938] sm:$0xff] %v4375
        %5626 = vst [vmem:[%s187 + $0x1940] sm:$0xff] %v4376
        %5627 = vst [vmem:[%s187 + $0x1948] sm:$0xff] %v4377
        %5628 = vst [vmem:[%s187 + $0x1950] sm:$0xff] %v4378
        %5629 = vst [vmem:[%s187 + $0x1958] sm:$0xff] %v4379
        %5630 = vst [vmem:[%s187 + $0x1960] sm:$0xff] %v4380
        %5631 = vst [vmem:[%s187 + $0x1968] sm:$0xff] %v4381
        %5632 = vst [vmem:[%s187 + $0x1970] sm:$0xff] %v4382
        %5633 = vst [vmem:[%s187 + $0x1978] sm:$0xff] %v4383
        %5634 = vst [vmem:[%s187 + $0x1980] sm:$0xff] %v4384
        %5635 = vst [vmem:[%s187 + $0x1988] sm:$0xff] %v4385
        %5636 = vst [vmem:[%s187 + $0x1990] sm:$0xff] %v4386
        %5637 = vst [vmem:[%s187 + $0x1998] sm:$0xff] %v4387
        %5638 = vst [vmem:[%s187 + $0x19a0] sm:$0xff] %v4388
        %5639 = vst [vmem:[%s187 + $0x19a8] sm:$0xff] %v4389
        %5640 = vst [vmem:[%s187 + $0x19b0] sm:$0xff] %v4390
        %5641 = vst [vmem:[%s187 + $0x19b8] sm:$0xff] %v4391
        %5642 = vst [vmem:[%s187 + $0x19c0] sm:$0xff] %v4392
        %5643 = vst [vmem:[%s187 + $0x19c8] sm:$0xff] %v4393
        %5644 = vst [vmem:[%s187 + $0x19d0] sm:$0xff] %v4394
        %5645 = vst [vmem:[%s187 + $0x19d8] sm:$0xff] %v4395
        %5646 = vst [vmem:[%s187 + $0x19e0] sm:$0xff] %v4396
        %5647 = vst [vmem:[%s187 + $0x19e8] sm:$0xff] %v4397
        %5648 = vst [vmem:[%s187 + $0x19f0] sm:$0xff] %v4398
        %5649 = vst [vmem:[%s187 + $0x19f8] sm:$0xff] %v4399
        %5650 = vst [vmem:[%s187 + $0x1a00] sm:$0xff] %v4400
        %5651 = vst [vmem:[%s187 + $0x1a08] sm:$0xff] %v4401
        %5652 = vst [vmem:[%s187 + $0x1a10] sm:$0xff] %v4402
        %5653 = vst [vmem:[%s187 + $0x1a18] sm:$0xff] %v4403
        %5654 = vst [vmem:[%s187 + $0x1a20] sm:$0xff] %v4404
        %5655 = vst [vmem:[%s187 + $0x1a28] sm:$0xff] %v4405
        %5656 = vst [vmem:[%s187 + $0x1a30] sm:$0xff] %v4406
        %5657 = vst [vmem:[%s187 + $0x1a38] sm:$0xff] %v4407
        %5658 = vst [vmem:[%s187 + $0x1a40] sm:$0xff] %v4408
        %5659 = vst [vmem:[%s187 + $0x1a48] sm:$0xff] %v4409
        %5660 = vst [vmem:[%s187 + $0x1a50] sm:$0xff] %v4410
        %5661 = vst [vmem:[%s187 + $0x1a58] sm:$0xff] %v4411
        %5662 = vst [vmem:[%s187 + $0x1a60] sm:$0xff] %v4412
        %5663 = vst [vmem:[%s187 + $0x1a68] sm:$0xff] %v4413
        %5664 = vst [vmem:[%s187 + $0x1a70] sm:$0xff] %v4414
        %5665 = vst [vmem:[%s187 + $0x1a78] sm:$0xff] %v4415
        %5666 = vst [vmem:[%s187 + $0x1a80] sm:$0xff] %v4416
        %5667 = vst [vmem:[%s187 + $0x1a88] sm:$0xff] %v4417
        %5668 = vst [vmem:[%s187 + $0x1a90] sm:$0xff] %v4418
        %5669 = vst [vmem:[%s187 + $0x1a98] sm:$0xff] %v4419
        %5670 = vst [vmem:[%s187 + $0x1aa0] sm:$0xff] %v4420
        %5671 = vst [vmem:[%s187 + $0x1aa8] sm:$0xff] %v4421
        %5672 = vst [vmem:[%s187 + $0x1ab0] sm:$0xff] %v4422
        %5673 = vst [vmem:[%s187 + $0x1ab8] sm:$0xff] %v4423
        %5674 = vst [vmem:[%s187 + $0x1ac0] sm:$0xff] %v4424
        %5675 = vst [vmem:[%s187 + $0x1ac8] sm:$0xff] %v4425
        %5676 = vst [vmem:[%s187 + $0x1ad0] sm:$0xff] %v4426
        %5677 = vst [vmem:[%s187 + $0x1ad8] sm:$0xff] %v4427
        %5678 = vst [vmem:[%s187 + $0x1ae0] sm:$0xff] %v4428
        %5679 = vst [vmem:[%s187 + $0x1ae8] sm:$0xff] %v4429
        %5680 = vst [vmem:[%s187 + $0x1af0] sm:$0xff] %v4430
        %5681 = vst [vmem:[%s187 + $0x1af8] sm:$0xff] %v4431
        %5682 = vst [vmem:[%s187 + $0x1b00] sm:$0xff] %v4432
        %5683 = vst [vmem:[%s187 + $0x1b08] sm:$0xff] %v4433
        %5684 = vst [vmem:[%s187 + $0x1b10] sm:$0xff] %v4434
        %5685 = vst [vmem:[%s187 + $0x1b18] sm:$0xff] %v4435
        %5686 = vst [vmem:[%s187 + $0x1b20] sm:$0xff] %v4436
        %5687 = vst [vmem:[%s187 + $0x1b28] sm:$0xff] %v4437
        %5688 = vst [vmem:[%s187 + $0x1b30] sm:$0xff] %v4438
        %5689 = vst [vmem:[%s187 + $0x1b38] sm:$0xff] %v4439
        %5690 = vst [vmem:[%s187 + $0x1b40] sm:$0xff] %v4440
        %5691 = vst [vmem:[%s187 + $0x1b48] sm:$0xff] %v4441
        %5692 = vst [vmem:[%s187 + $0x1b50] sm:$0xff] %v4442
        %5693 = vst [vmem:[%s187 + $0x1b58] sm:$0xff] %v4443
        %5694 = vst [vmem:[%s187 + $0x1b60] sm:$0xff] %v4444
        %5695 = vst [vmem:[%s187 + $0x1b68] sm:$0xff] %v4445
        %5696 = vst [vmem:[%s187 + $0x1b70] sm:$0xff] %v4446
        %5697 = vst [vmem:[%s187 + $0x1b78] sm:$0xff] %v4447
        %5698 = vst [vmem:[%s187 + $0x1b80] sm:$0xff] %v4448
        %5699 = vst [vmem:[%s187 + $0x1b88] sm:$0xff] %v4449
        %5700 = vst [vmem:[%s187 + $0x1b90] sm:$0xff] %v4450
        %5701 = vst [vmem:[%s187 + $0x1b98] sm:$0xff] %v4451
        %5702 = vst [vmem:[%s187 + $0x1ba0] sm:$0xff] %v4452
        %5703 = vst [vmem:[%s187 + $0x1ba8] sm:$0xff] %v4453
        %5704 = vst [vmem:[%s187 + $0x1bb0] sm:$0xff] %v4454
        %5705 = vst [vmem:[%s187 + $0x1bb8] sm:$0xff] %v4455
        %5706 = vst [vmem:[%s187 + $0x1bc0] sm:$0xff] %v4456
        %5707 = vst [vmem:[%s187 + $0x1bc8] sm:$0xff] %v4457
        %5708 = vst [vmem:[%s187 + $0x1bd0] sm:$0xff] %v4458
        %5709 = vst [vmem:[%s187 + $0x1bd8] sm:$0xff] %v4459
        %5710 = vst [vmem:[%s187 + $0x1be0] sm:$0xff] %v4460
        %5711 = vst [vmem:[%s187 + $0x1be8] sm:$0xff] %v4461
        %5712 = vst [vmem:[%s187 + $0x1bf0] sm:$0xff] %v4462
        %5713 = vst [vmem:[%s187 + $0x1bf8] sm:$0xff] %v4463
        %5714 = vst [vmem:[%s187 + $0x1c00] sm:$0xff] %v4464
        %5715 = vst [vmem:[%s187 + $0x1c08] sm:$0xff] %v4465
        %5716 = vst [vmem:[%s187 + $0x1c10] sm:$0xff] %v4466
        %5717 = vst [vmem:[%s187 + $0x1c18] sm:$0xff] %v4467
        %5718 = vst [vmem:[%s187 + $0x1c20] sm:$0xff] %v4468
        %5719 = vst [vmem:[%s187 + $0x1c28] sm:$0xff] %v4469
        %5720 = vst [vmem:[%s187 + $0x1c30] sm:$0xff] %v4470
        %5721 = vst [vmem:[%s187 + $0x1c38] sm:$0xff] %v4471
        %5722 = vst [vmem:[%s187 + $0x1c40] sm:$0xff] %v4472
        %5723 = vst [vmem:[%s187 + $0x1c48] sm:$0xff] %v4473
        %5724 = vst [vmem:[%s187 + $0x1c50] sm:$0xff] %v4474
        %5725 = vst [vmem:[%s187 + $0x1c58] sm:$0xff] %v4475
        %5726 = vst [vmem:[%s187 + $0x1c60] sm:$0xff] %v4476
        %5727 = vst [vmem:[%s187 + $0x1c68] sm:$0xff] %v4477
        %5728 = vst [vmem:[%s187 + $0x1c70] sm:$0xff] %v4478
        %5729 = vst [vmem:[%s187 + $0x1c78] sm:$0xff] %v4479
        %5730 = vst [vmem:[%s187 + $0x1c80] sm:$0xff] %v4480
        %5731 = vst [vmem:[%s187 + $0x1c88] sm:$0xff] %v4481
        %5732 = vst [vmem:[%s187 + $0x1c90] sm:$0xff] %v4482
        %5733 = vst [vmem:[%s187 + $0x1c98] sm:$0xff] %v4483
        %5734 = vst [vmem:[%s187 + $0x1ca0] sm:$0xff] %v4484
        %5735 = vst [vmem:[%s187 + $0x1ca8] sm:$0xff] %v4485
        %5736 = vst [vmem:[%s187 + $0x1cb0] sm:$0xff] %v4486
        %5737 = vst [vmem:[%s187 + $0x1cb8] sm:$0xff] %v4487
        %5738 = vst [vmem:[%s187 + $0x1cc0] sm:$0xff] %v4488
        %5739 = vst [vmem:[%s187 + $0x1cc8] sm:$0xff] %v4489
        %5740 = vst [vmem:[%s187 + $0x1cd0] sm:$0xff] %v4490
        %5741 = vst [vmem:[%s187 + $0x1cd8] sm:$0xff] %v4491
        %5742 = vst [vmem:[%s187 + $0x1ce0] sm:$0xff] %v4492
        %5743 = vst [vmem:[%s187 + $0x1ce8] sm:$0xff] %v4493
        %5744 = vst [vmem:[%s187 + $0x1cf0] sm:$0xff] %v4494
        %5745 = vst [vmem:[%s187 + $0x1cf8] sm:$0xff] %v4495
        %5746 = vst [vmem:[%s187 + $0x1d00] sm:$0xff] %v4496
        %5747 = vst [vmem:[%s187 + $0x1d08] sm:$0xff] %v4497
        %5748 = vst [vmem:[%s187 + $0x1d10] sm:$0xff] %v4498
        %5749 = vst [vmem:[%s187 + $0x1d18] sm:$0xff] %v4499
        %5750 = vst [vmem:[%s187 + $0x1d20] sm:$0xff] %v4500
        %5751 = vst [vmem:[%s187 + $0x1d28] sm:$0xff] %v4501
        %5752 = vst [vmem:[%s187 + $0x1d30] sm:$0xff] %v4502
        %5753 = vst [vmem:[%s187 + $0x1d38] sm:$0xff] %v4503
        %5754 = vst [vmem:[%s187 + $0x1d40] sm:$0xff] %v4504
        %5755 = vst [vmem:[%s187 + $0x1d48] sm:$0xff] %v4505
        %5756 = vst [vmem:[%s187 + $0x1d50] sm:$0xff] %v4506
        %5757 = vst [vmem:[%s187 + $0x1d58] sm:$0xff] %v4507
        %5758 = vst [vmem:[%s187 + $0x1d60] sm:$0xff] %v4508
        %5759 = vst [vmem:[%s187 + $0x1d68] sm:$0xff] %v4509
        %5760 = vst [vmem:[%s187 + $0x1d70] sm:$0xff] %v4510
        %5761 = vst [vmem:[%s187 + $0x1d78] sm:$0xff] %v4511
        %5762 = vst [vmem:[%s187 + $0x1d80] sm:$0xff] %v4512
        %5763 = vst [vmem:[%s187 + $0x1d88] sm:$0xff] %v4513
        %5764 = vst [vmem:[%s187 + $0x1d90] sm:$0xff] %v4514
        %5765 = vst [vmem:[%s187 + $0x1d98] sm:$0xff] %v4515
        %5766 = vst [vmem:[%s187 + $0x1da0] sm:$0xff] %v4516
        %5767 = vst [vmem:[%s187 + $0x1da8] sm:$0xff] %v4517
        %5768 = vst [vmem:[%s187 + $0x1db0] sm:$0xff] %v4518
        %5769 = vst [vmem:[%s187 + $0x1db8] sm:$0xff] %v4519
        %5770 = vst [vmem:[%s187 + $0x1dc0] sm:$0xff] %v4520
        %5771 = vst [vmem:[%s187 + $0x1dc8] sm:$0xff] %v4521
        %5772 = vst [vmem:[%s187 + $0x1dd0] sm:$0xff] %v4522
        %5773 = vst [vmem:[%s187 + $0x1dd8] sm:$0xff] %v4523
        %5774 = vst [vmem:[%s187 + $0x1de0] sm:$0xff] %v4524
        %5775 = vst [vmem:[%s187 + $0x1de8] sm:$0xff] %v4525
        %5776 = vst [vmem:[%s187 + $0x1df0] sm:$0xff] %v4526
        %5777 = vst [vmem:[%s187 + $0x1df8] sm:$0xff] %v4527
        %5778 = vst [vmem:[%s187 + $0x1e00] sm:$0xff] %v4528
        %5779 = vst [vmem:[%s187 + $0x1e08] sm:$0xff] %v4529
        %5780 = vst [vmem:[%s187 + $0x1e10] sm:$0xff] %v4530
        %5781 = vst [vmem:[%s187 + $0x1e18] sm:$0xff] %v4531
        %5782 = vst [vmem:[%s187 + $0x1e20] sm:$0xff] %v4532
        %5783 = vst [vmem:[%s187 + $0x1e28] sm:$0xff] %v4533
        %5784 = vst [vmem:[%s187 + $0x1e30] sm:$0xff] %v4534
        %5785 = vst [vmem:[%s187 + $0x1e38] sm:$0xff] %v4535
        %5786 = vst [vmem:[%s187 + $0x1e40] sm:$0xff] %v4536
        %5787 = vst [vmem:[%s187 + $0x1e48] sm:$0xff] %v4537
        %5788 = vst [vmem:[%s187 + $0x1e50] sm:$0xff] %v4538
        %5789 = vst [vmem:[%s187 + $0x1e58] sm:$0xff] %v4539
        %5790 = vst [vmem:[%s187 + $0x1e60] sm:$0xff] %v4540
        %5791 = vst [vmem:[%s187 + $0x1e68] sm:$0xff] %v4541
        %5792 = vst [vmem:[%s187 + $0x1e70] sm:$0xff] %v4542
        %5793 = vst [vmem:[%s187 + $0x1e78] sm:$0xff] %v4543
        %5794 = vst [vmem:[%s187 + $0x1e80] sm:$0xff] %v4544
        %5795 = vst [vmem:[%s187 + $0x1e88] sm:$0xff] %v4545
        %5796 = vst [vmem:[%s187 + $0x1e90] sm:$0xff] %v4546
        %5797 = vst [vmem:[%s187 + $0x1e98] sm:$0xff] %v4547
        %5798 = vst [vmem:[%s187 + $0x1ea0] sm:$0xff] %v4548
        %5799 = vst [vmem:[%s187 + $0x1ea8] sm:$0xff] %v4549
        %5800 = vst [vmem:[%s187 + $0x1eb0] sm:$0xff] %v4550
        %5801 = vst [vmem:[%s187 + $0x1eb8] sm:$0xff] %v4551
        %5802 = vst [vmem:[%s187 + $0x1ec0] sm:$0xff] %v4552
        %5803 = vst [vmem:[%s187 + $0x1ec8] sm:$0xff] %v4553
        %5804 = vst [vmem:[%s187 + $0x1ed0] sm:$0xff] %v4554
        %5805 = vst [vmem:[%s187 + $0x1ed8] sm:$0xff] %v4555
        %5806 = vst [vmem:[%s187 + $0x1ee0] sm:$0xff] %v4556
        %5807 = vst [vmem:[%s187 + $0x1ee8] sm:$0xff] %v4557
        %5808 = vst [vmem:[%s187 + $0x1ef0] sm:$0xff] %v4558
        %5809 = vst [vmem:[%s187 + $0x1ef8] sm:$0xff] %v4559
        %5810 = vst [vmem:[%s187 + $0x1f00] sm:$0xff] %v4560
        %5811 = vst [vmem:[%s187 + $0x1f08] sm:$0xff] %v4561
        %5812 = vst [vmem:[%s187 + $0x1f10] sm:$0xff] %v4562
        %5813 = vst [vmem:[%s187 + $0x1f18] sm:$0xff] %v4563
        %5814 = vst [vmem:[%s187 + $0x1f20] sm:$0xff] %v4564
        %5815 = vst [vmem:[%s187 + $0x1f28] sm:$0xff] %v4565
        %5816 = vst [vmem:[%s187 + $0x1f30] sm:$0xff] %v4566
        %5817 = vst [vmem:[%s187 + $0x1f38] sm:$0xff] %v4567
        %5818 = vst [vmem:[%s187 + $0x1f40] sm:$0xff] %v4568
        %5819 = vst [vmem:[%s187 + $0x1f48] sm:$0xff] %v4569
        %5820 = vst [vmem:[%s187 + $0x1f50] sm:$0xff] %v4570
        %5821 = vst [vmem:[%s187 + $0x1f58] sm:$0xff] %v4571
        %5822 = vst [vmem:[%s187 + $0x1f60] sm:$0xff] %v4572
        %5823 = vst [vmem:[%s187 + $0x1f68] sm:$0xff] %v4573
        %5824 = vst [vmem:[%s187 + $0x1f70] sm:$0xff] %v4574
        %5825 = vst [vmem:[%s187 + $0x1f78] sm:$0xff] %v4575
        %5826 = vst [vmem:[%s187 + $0x1f80] sm:$0xff] %v4576
        %5827 = vst [vmem:[%s187 + $0x1f88] sm:$0xff] %v4577
        %5828 = vst [vmem:[%s187 + $0x1f90] sm:$0xff] %v4578
        %5829 = vst [vmem:[%s187 + $0x1f98] sm:$0xff] %v4579
        %5830 = vst [vmem:[%s187 + $0x1fa0] sm:$0xff] %v4580
        %5831 = vst [vmem:[%s187 + $0x1fa8] sm:$0xff] %v4581
        %5832 = vst [vmem:[%s187 + $0x1fb0] sm:$0xff] %v4582
        %5833 = vst [vmem:[%s187 + $0x1fb8] sm:$0xff] %v4583
        %5834 = vst [vmem:[%s187 + $0x1fc0] sm:$0xff] %v4584
        %5835 = vst [vmem:[%s187 + $0x1fc8] sm:$0xff] %v4585
        %5836 = vst [vmem:[%s187 + $0x1fd0] sm:$0xff] %v4586
        %5837 = vst [vmem:[%s187 + $0x1fd8] sm:$0xff] %v4587
        %5838 = vst [vmem:[%s187 + $0x1fe0] sm:$0xff] %v4588
        %5839 = vst [vmem:[%s187 + $0x1fe8] sm:$0xff] %v4589
        %5840 = vst [vmem:[%s187 + $0x1ff0] sm:$0xff] %v4590
        %5841 = vst [vmem:[%s187 + $0x1ff8] sm:$0xff] %v4591
        %5842 = vst [vmem:[%s187 + $0x2000] sm:$0xff] %v4592
        %5843 = vst [vmem:[%s187 + $0x2008] sm:$0xff] %v4593
        %5844 = vst [vmem:[%s187 + $0x2010] sm:$0xff] %v4594
        %5845 = vst [vmem:[%s187 + $0x2018] sm:$0xff] %v4595
        %5846 = vst [vmem:[%s187 + $0x2020] sm:$0xff] %v4596
        %5847 = vst [vmem:[%s187 + $0x2028] sm:$0xff] %v4597
        %5848 = vst [vmem:[%s187 + $0x2030] sm:$0xff] %v4598
        %5849 = vst [vmem:[%s187 + $0x2038] sm:$0xff] %v4599
        %5850 = vst [vmem:[%s187 + $0x2040] sm:$0xff] %v4600
        %5851 = vst [vmem:[%s187 + $0x2048] sm:$0xff] %v4601
        %5852 = vst [vmem:[%s187 + $0x2050] sm:$0xff] %v4602
        %5853 = vst [vmem:[%s187 + $0x2058] sm:$0xff] %v4603
        %5854 = vst [vmem:[%s187 + $0x2060] sm:$0xff] %v4604
        %5855 = vst [vmem:[%s187 + $0x2068] sm:$0xff] %v4605
        %5856 = vst [vmem:[%s187 + $0x2070] sm:$0xff] %v4606
        %5857 = vst [vmem:[%s187 + $0x2078] sm:$0xff] %v4607
        %5858 = vst [vmem:[%s187 + $0x2080] sm:$0xff] %v4608
        %5859 = vst [vmem:[%s187 + $0x2088] sm:$0xff] %v4609
        %5860 = vst [vmem:[%s187 + $0x2090] sm:$0xff] %v4610
        %5861 = vst [vmem:[%s187 + $0x2098] sm:$0xff] %v4611
        %5862 = vst [vmem:[%s187 + $0x20a0] sm:$0xff] %v4612
        %5863 = vst [vmem:[%s187 + $0x20a8] sm:$0xff] %v4613
        %5864 = vst [vmem:[%s187 + $0x20b0] sm:$0xff] %v4614
        %5865 = vst [vmem:[%s187 + $0x20b8] sm:$0xff] %v4615
        %5866 = vst [vmem:[%s187 + $0x20c0] sm:$0xff] %v4616
        %5867 = vst [vmem:[%s187 + $0x20c8] sm:$0xff] %v4617
        %5868 = vst [vmem:[%s187 + $0x20d0] sm:$0xff] %v4618
        %5869 = vst [vmem:[%s187 + $0x20d8] sm:$0xff] %v4619
        %5870 = vst [vmem:[%s187 + $0x20e0] sm:$0xff] %v4620
        %5871 = vst [vmem:[%s187 + $0x20e8] sm:$0xff] %v4621
        %5872 = vst [vmem:[%s187 + $0x20f0] sm:$0xff] %v4622
        %5873 = vst [vmem:[%s187 + $0x20f8] sm:$0xff] %v4623
        %5874 = vst [vmem:[%s187 + $0x2100] sm:$0xff] %v4624
        %5875 = vst [vmem:[%s187 + $0x2108] sm:$0xff] %v4625
        %5876 = vst [vmem:[%s187 + $0x2110] sm:$0xff] %v4626
        %5877 = vst [vmem:[%s187 + $0x2118] sm:$0xff] %v4627
        %5878 = vst [vmem:[%s187 + $0x2120] sm:$0xff] %v4628
        %5879 = vst [vmem:[%s187 + $0x2128] sm:$0xff] %v4629
        %5880 = vst [vmem:[%s187 + $0x2130] sm:$0xff] %v4630
        %5881 = vst [vmem:[%s187 + $0x2138] sm:$0xff] %v4631
        %5882 = vst [vmem:[%s187 + $0x2140] sm:$0xff] %v4632
        %5883 = vst [vmem:[%s187 + $0x2148] sm:$0xff] %v4633
        %5884 = vst [vmem:[%s187 + $0x2150] sm:$0xff] %v4634
        %5885 = vst [vmem:[%s187 + $0x2158] sm:$0xff] %v4635
        %5886 = vst [vmem:[%s187 + $0x2160] sm:$0xff] %v4636
        %5887 = vst [vmem:[%s187 + $0x2168] sm:$0xff] %v4637
        %5888 = vst [vmem:[%s187 + $0x2170] sm:$0xff] %v4638
        %5889 = vst [vmem:[%s187 + $0x2178] sm:$0xff] %v4639
        %5890 = vst [vmem:[%s187 + $0x2180] sm:$0xff] %v4640
        %5891 = vst [vmem:[%s187 + $0x2188] sm:$0xff] %v4641
        %5892 = vst [vmem:[%s187 + $0x2190] sm:$0xff] %v4642
        %5893 = vst [vmem:[%s187 + $0x2198] sm:$0xff] %v4643
        %5894 = vst [vmem:[%s187 + $0x21a0] sm:$0xff] %v4644
        %5895 = vst [vmem:[%s187 + $0x21a8] sm:$0xff] %v4645
        %5896 = vst [vmem:[%s187 + $0x21b0] sm:$0xff] %v4646
        %5897 = vst [vmem:[%s187 + $0x21b8] sm:$0xff] %v4647
        %5898 = vst [vmem:[%s187 + $0x21c0] sm:$0xff] %v4648
        %5899 = vst [vmem:[%s187 + $0x21c8] sm:$0xff] %v4649
        %5900 = vst [vmem:[%s187 + $0x21d0] sm:$0xff] %v4650
        %5901 = vst [vmem:[%s187 + $0x21d8] sm:$0xff] %v4651
        %5902 = vst [vmem:[%s187 + $0x21e0] sm:$0xff] %v4652
        %5903 = vst [vmem:[%s187 + $0x21e8] sm:$0xff] %v4653
        %5904 = vst [vmem:[%s187 + $0x21f0] sm:$0xff] %v4654
        %5905 = vst [vmem:[%s187 + $0x21f8] sm:$0xff] %v4655
        %5906 = vst [vmem:[%s187 + $0x2200] sm:$0xff] %v4656
        %5907 = vst [vmem:[%s187 + $0x2208] sm:$0xff] %v4657
        %5908 = vst [vmem:[%s187 + $0x2210] sm:$0xff] %v4658
        %5909 = vst [vmem:[%s187 + $0x2218] sm:$0xff] %v4659
        %5910 = vst [vmem:[%s187 + $0x2220] sm:$0xff] %v4660
        %5911 = vst [vmem:[%s187 + $0x2228] sm:$0xff] %v4661
        %5912 = vst [vmem:[%s187 + $0x2230] sm:$0xff] %v4662
        %5913 = vst [vmem:[%s187 + $0x2238] sm:$0xff] %v4663
        %5914 = vst [vmem:[%s187 + $0x2240] sm:$0xff] %v4664
        %5915 = vst [vmem:[%s187 + $0x2248] sm:$0xff] %v4665
        %5916 = vst [vmem:[%s187 + $0x2250] sm:$0xff] %v4666
        %5917 = vst [vmem:[%s187 + $0x2258] sm:$0xff] %v4667
        %5918 = vst [vmem:[%s187 + $0x2260] sm:$0xff] %v4668
        %5919 = vst [vmem:[%s187 + $0x2268] sm:$0xff] %v4669
        %5920 = vst [vmem:[%s187 + $0x2270] sm:$0xff] %v4670
        %5921 = vst [vmem:[%s187 + $0x2278] sm:$0xff] %v4671
        %5922 = vst [vmem:[%s187 + $0x2280] sm:$0xff] %v4672
        %5923 = vst [vmem:[%s187 + $0x2288] sm:$0xff] %v4673
        %5924 = vst [vmem:[%s187 + $0x2290] sm:$0xff] %v4674
        %5925 = vst [vmem:[%s187 + $0x2298] sm:$0xff] %v4675
        %5926 = vst [vmem:[%s187 + $0x22a0] sm:$0xff] %v4676
        %5927 = vst [vmem:[%s187 + $0x22a8] sm:$0xff] %v4677
        %5928 = vst [vmem:[%s187 + $0x22b0] sm:$0xff] %v4678
        %5929 = vst [vmem:[%s187 + $0x22b8] sm:$0xff] %v4679
        %5930 = vst [vmem:[%s187 + $0x22c0] sm:$0xff] %v4680
        %5931 = vst [vmem:[%s187 + $0x22c8] sm:$0xff] %v4681
        %5932 = vst [vmem:[%s187 + $0x22d0] sm:$0xff] %v4682
        %5933 = vst [vmem:[%s187 + $0x22d8] sm:$0xff] %v4683
        %5934 = vst [vmem:[%s187 + $0x22e0] sm:$0xff] %v4684
        %5935 = vst [vmem:[%s187 + $0x22e8] sm:$0xff] %v4685
        %5936 = vst [vmem:[%s187 + $0x22f0] sm:$0xff] %v4686
        %5937 = vst [vmem:[%s187 + $0x22f8] sm:$0xff] %v4687
        %5938 = vst [vmem:[%s187 + $0x2300] sm:$0xff] %v4688
        %5939 = vst [vmem:[%s187 + $0x2308] sm:$0xff] %v4689
        %5940 = vst [vmem:[%s187 + $0x2310] sm:$0xff] %v4690
        %5941 = vst [vmem:[%s187 + $0x2318] sm:$0xff] %v4691
        %5942 = vst [vmem:[%s187 + $0x2320] sm:$0xff] %v4692
        %5943 = vst [vmem:[%s187 + $0x2328] sm:$0xff] %v4693
        %5944 = vst [vmem:[%s187 + $0x2330] sm:$0xff] %v4694
        %5945 = vst [vmem:[%s187 + $0x2338] sm:$0xff] %v4695
        %5946 = vst [vmem:[%s187 + $0x2340] sm:$0xff] %v4696
        %5947 = vst [vmem:[%s187 + $0x2348] sm:$0xff] %v4697
        %5948 = vst [vmem:[%s187 + $0x2350] sm:$0xff] %v4698
        %5949 = vst [vmem:[%s187 + $0x2358] sm:$0xff] %v4699
        %5950 = vst [vmem:[%s187 + $0x2360] sm:$0xff] %v4700
        %5951 = vst [vmem:[%s187 + $0x2368] sm:$0xff] %v4701
        %5952 = vst [vmem:[%s187 + $0x2370] sm:$0xff] %v4702
        %5953 = vst [vmem:[%s187 + $0x2378] sm:$0xff] %v4703
        %5954 = vst [vmem:[%s187 + $0x2380] sm:$0xff] %v4704
        %5955 = vst [vmem:[%s187 + $0x2388] sm:$0xff] %v4705
        %5956 = vst [vmem:[%s187 + $0x2390] sm:$0xff] %v4706
        %5957 = vst [vmem:[%s187 + $0x2398] sm:$0xff] %v4707
        %5958 = vst [vmem:[%s187 + $0x23a0] sm:$0xff] %v4708
        %5959 = vst [vmem:[%s187 + $0x23a8] sm:$0xff] %v4709
        %5960 = vst [vmem:[%s187 + $0x23b0] sm:$0xff] %v4710
        %5961 = vst [vmem:[%s187 + $0x23b8] sm:$0xff] %v4711
        %5962 = vst [vmem:[%s187 + $0x23c0] sm:$0xff] %v4712
        %5963 = vst [vmem:[%s187 + $0x23c8] sm:$0xff] %v4713
        %5964 = vst [vmem:[%s187 + $0x23d0] sm:$0xff] %v4714
        %5965 = vst [vmem:[%s187 + $0x23d8] sm:$0xff] %v4715
        %5966 = vst [vmem:[%s187 + $0x23e0] sm:$0xff] %v4716
        %5967 = vst [vmem:[%s187 + $0x23e8] sm:$0xff] %v4717
        %5968 = vst [vmem:[%s187 + $0x23f0] sm:$0xff] %v4718
        %5969 = vst [vmem:[%s187 + $0x23f8] sm:$0xff] %v4719
        %5970 = vst [vmem:[%s187 + $0x2400] sm:$0xff] %v4720
        %5971 = vst [vmem:[%s187 + $0x2408] sm:$0xff] %v4721
        %5972 = vst [vmem:[%s187 + $0x2410] sm:$0xff] %v4722
        %5973 = vst [vmem:[%s187 + $0x2418] sm:$0xff] %v4723
        %5974 = vst [vmem:[%s187 + $0x2420] sm:$0xff] %v4724
        %5975 = vst [vmem:[%s187 + $0x2428] sm:$0xff] %v4725
        %5976 = vst [vmem:[%s187 + $0x2430] sm:$0xff] %v4726
        %5977 = vst [vmem:[%s187 + $0x2438] sm:$0xff] %v4727
        %5978 = vst [vmem:[%s187 + $0x2440] sm:$0xff] %v4728
        %5979 = vst [vmem:[%s187 + $0x2448] sm:$0xff] %v4729
        %5980 = vst [vmem:[%s187 + $0x2450] sm:$0xff] %v4730
        %5981 = vst [vmem:[%s187 + $0x2458] sm:$0xff] %v4731
        %5982 = vst [vmem:[%s187 + $0x2460] sm:$0xff] %v4732
        %5983 = vst [vmem:[%s187 + $0x2468] sm:$0xff] %v4733
        %5984 = vst [vmem:[%s187 + $0x2470] sm:$0xff] %v4734
        %5985 = vst [vmem:[%s187 + $0x2478] sm:$0xff] %v4735
        %5986 = vst [vmem:[%s187 + $0x2480] sm:$0xff] %v4736
        %5987 = vst [vmem:[%s187 + $0x2488] sm:$0xff] %v4737
        %5988 = vst [vmem:[%s187 + $0x2490] sm:$0xff] %v4738
        %5989 = vst [vmem:[%s187 + $0x2498] sm:$0xff] %v4739
        %5990 = vst [vmem:[%s187 + $0x24a0] sm:$0xff] %v4740
        %5991 = vst [vmem:[%s187 + $0x24a8] sm:$0xff] %v4741
        %5992 = vst [vmem:[%s187 + $0x24b0] sm:$0xff] %v4742
        %5993 = vst [vmem:[%s187 + $0x24b8] sm:$0xff] %v4743
        %5994 = vst [vmem:[%s187 + $0x24c0] sm:$0xff] %v4744
        %5995 = vst [vmem:[%s187 + $0x24c8] sm:$0xff] %v4745
        %5996 = vst [vmem:[%s187 + $0x24d0] sm:$0xff] %v4746
        %5997 = vst [vmem:[%s187 + $0x24d8] sm:$0xff] %v4747
        %5998 = vst [vmem:[%s187 + $0x24e0] sm:$0xff] %v4748
        %5999 = vst [vmem:[%s187 + $0x24e8] sm:$0xff] %v4749
        %6000 = vst [vmem:[%s187 + $0x24f0] sm:$0xff] %v4750
        %6001 = vst [vmem:[%s187 + $0x24f8] sm:$0xff] %v4751
        %6002 = vst [vmem:[%s187 + $0x2500] sm:$0xff] %v4752
        %6003 = vst [vmem:[%s187 + $0x2508] sm:$0xff] %v4753
        %6004 = vst [vmem:[%s187 + $0x2510] sm:$0xff] %v4754
        %6005 = vst [vmem:[%s187 + $0x2518] sm:$0xff] %v4755
        %6006 = vst [vmem:[%s187 + $0x2520] sm:$0xff] %v4756
        %6007 = vst [vmem:[%s187 + $0x2528] sm:$0xff] %v4757
        %6008 = vst [vmem:[%s187 + $0x2530] sm:$0xff] %v4758
        %6009 = vst [vmem:[%s187 + $0x2538] sm:$0xff] %v4759
        %6010 = vst [vmem:[%s187 + $0x2540] sm:$0xff] %v4760
        %6011 = vst [vmem:[%s187 + $0x2548] sm:$0xff] %v4761
        %6012 = vst [vmem:[%s187 + $0x2550] sm:$0xff] %v4762
        %6013 = vst [vmem:[%s187 + $0x2558] sm:$0xff] %v4763
        %6014 = vst [vmem:[%s187 + $0x2560] sm:$0xff] %v4764
        %6015 = vst [vmem:[%s187 + $0x2568] sm:$0xff] %v4765
        %6016 = vst [vmem:[%s187 + $0x2570] sm:$0xff] %v4766
        %6017 = vst [vmem:[%s187 + $0x2578] sm:$0xff] %v4767
        %6018 = vst [vmem:[%s187 + $0x2580] sm:$0xff] %v4768
        %6019 = vst [vmem:[%s187 + $0x2588] sm:$0xff] %v4769
        %6020 = vst [vmem:[%s187 + $0x2590] sm:$0xff] %v4770
        %6021 = vst [vmem:[%s187 + $0x2598] sm:$0xff] %v4771
        %6022 = vst [vmem:[%s187 + $0x25a0] sm:$0xff] %v4772
        %6023 = vst [vmem:[%s187 + $0x25a8] sm:$0xff] %v4773
        %6024 = vst [vmem:[%s187 + $0x25b0] sm:$0xff] %v4774
        %6025 = vst [vmem:[%s187 + $0x25b8] sm:$0xff] %v4775
        %6026 = vst [vmem:[%s187 + $0x25c0] sm:$0xff] %v4776
        %6027 = vst [vmem:[%s187 + $0x25c8] sm:$0xff] %v4777
        %6028 = vst [vmem:[%s187 + $0x25d0] sm:$0xff] %v4778
        %6029 = vst [vmem:[%s187 + $0x25d8] sm:$0xff] %v4779
        %6030 = vst [vmem:[%s187 + $0x25e0] sm:$0xff] %v4780
        %6031 = vst [vmem:[%s187 + $0x25e8] sm:$0xff] %v4781
        %6032 = vst [vmem:[%s187 + $0x25f0] sm:$0xff] %v4782
        %6033 = vst [vmem:[%s187 + $0x25f8] sm:$0xff] %v4783
        %6034 = vst [vmem:[%s187 + $0x2600] sm:$0xff] %v4784
        %6035 = vst [vmem:[%s187 + $0x2608] sm:$0xff] %v4785
        %6036 = vst [vmem:[%s187 + $0x2610] sm:$0xff] %v4786
        %6037 = vst [vmem:[%s187 + $0x2618] sm:$0xff] %v4787
        %6038 = vst [vmem:[%s187 + $0x2620] sm:$0xff] %v4788
        %6039 = vst [vmem:[%s187 + $0x2628] sm:$0xff] %v4789
        %6040 = vst [vmem:[%s187 + $0x2630] sm:$0xff] %v4790
        %6041 = vst [vmem:[%s187 + $0x2638] sm:$0xff] %v4791
        %6042 = vst [vmem:[%s187 + $0x2640] sm:$0xff] %v4792
        %6043 = vst [vmem:[%s187 + $0x2648] sm:$0xff] %v4793
        %6044 = vst [vmem:[%s187 + $0x2650] sm:$0xff] %v4794
        %6045 = vst [vmem:[%s187 + $0x2658] sm:$0xff] %v4795
        %6046 = vst [vmem:[%s187 + $0x2660] sm:$0xff] %v4796
        %6047 = vst [vmem:[%s187 + $0x2668] sm:$0xff] %v4797
        %6048 = vst [vmem:[%s187 + $0x2670] sm:$0xff] %v4798
        %6049 = vst [vmem:[%s187 + $0x2678] sm:$0xff] %v4799
        %6050 = vst [vmem:[%s187 + $0x2680] sm:$0xff] %v4800
        %6051 = vst [vmem:[%s187 + $0x2688] sm:$0xff] %v4801
        %6052 = vst [vmem:[%s187 + $0x2690] sm:$0xff] %v4802
        %6053 = vst [vmem:[%s187 + $0x2698] sm:$0xff] %v4803
        %6054 = vst [vmem:[%s187 + $0x26a0] sm:$0xff] %v4804
        %6055 = vst [vmem:[%s187 + $0x26a8] sm:$0xff] %v4805
        %6056 = vst [vmem:[%s187 + $0x26b0] sm:$0xff] %v4806
        %6057 = vst [vmem:[%s187 + $0x26b8] sm:$0xff] %v4807
        %6058 = vst [vmem:[%s187 + $0x26c0] sm:$0xff] %v4808
        %6059 = vst [vmem:[%s187 + $0x26c8] sm:$0xff] %v4809
        %6060 = vst [vmem:[%s187 + $0x26d0] sm:$0xff] %v4810
        %6061 = vst [vmem:[%s187 + $0x26d8] sm:$0xff] %v4811
        %6062 = vst [vmem:[%s187 + $0x26e0] sm:$0xff] %v4812
        %6063 = vst [vmem:[%s187 + $0x26e8] sm:$0xff] %v4813
        %6064 = vst [vmem:[%s187 + $0x26f0] sm:$0xff] %v4814
        %6065 = vst [vmem:[%s187 + $0x26f8] sm:$0xff] %v4815
        %6066 = vst [vmem:[%s187 + $0x2700] sm:$0xff] %v4816
        %6067 = vst [vmem:[%s187 + $0x2708] sm:$0xff] %v4817
        %s6068 = sand.u32 %s97, 1
        %s6069 = scalar_lea.sflag [#allocation5], %s6068
        %s6070 = sand.u32 %s97, 1
        %s6071 = smul.addr %s6070, 10000
        %s6072 = scalar_lea.vmem [#allocation6], %s6071
        // Predicated region
        $region37: #{tpu_custom_call.1} parent=31 // pred_check
          %p6073 = pneg %p107
        $region38: #{tpu_custom_call.1} parent=31 // pred_check_branch
          %6075 = sbr.rel (%p6073) target = $region40
        $region39: #{tpu_custom_call.1} parent=31 // pred_region
          %s6076 = smul.u32 625, %s21
          %s6078 = ssub.s32 160000, 160000
          %6079 = vsyncadd %s6069, %s6078
          %s6080 = smul.addr %s6076, 128
          %s6081 = scalar_lea.hbm %s3, %s6080
          %s6082 = sshll.u32 %s6072, 4
          %s6083 = int_to_ptr.vmem [resolvable:$true] %s6082
          %6088 = dma.vmem_to_hbm [thread:$0]  %s6083, 160000, %s6081, %s6069, 80000, 160000, 5000
        $region40: #{tpu_custom_call.1} parent=31 // pred_fallthru
          _
      $region32: #{tpu_custom_call.1} parent=5 // pred_fallthru
        _
      %p6089 = scmp.le.s32.totalorder 2, %s16
      // Predicated region
      $region41: #{tpu_custom_call.1} parent=5 // pred_check
        %p6090 = pneg %p6089
      $region42: #{tpu_custom_call.1} parent=5 // pred_check_branch
        %6092 = sbr.rel (%p6090) target = $region44
      $region43: #{tpu_custom_call.1} parent=5 // pred_region
        %s6093 = ssub.s32 %s16, 2
        // Predicated region
        $region45: #{tpu_custom_call.1} parent=43 // pred_check
          %p6094 = pneg %p113
        $region46: #{tpu_custom_call.1} parent=43 // pred_check_branch
          %6096 = sbr.rel (%p6094) target = $region48
        $region47: #{tpu_custom_call.1} parent=43 // pred_region
          %s6097 = sand.u32 %s98, 1
          %s6098 = scalar_lea.sflag [#allocation5], %s6097
          %s6099 = sand.u32 %s98, 1
          %s6100 = smul.addr %s6099, 10000
          %s6101 = scalar_lea.vmem [#allocation6], %s6100
          %6102 = dma.done %s6098, 160000
        $region48: #{tpu_custom_call.1} parent=43 // pred_fallthru
          _
      $region44: #{tpu_custom_call.1} parent=5 // pred_fallthru
        _
    $region6: #{tpu_custom_call.1} parent=1 // loop_footer
      %s20 = sadd.s32 1, %s16
    $region7: #{tpu_custom_call.1} parent=1 // loop_footer_branch
      %15 = sbr.rel target = $region3
    $region8: #{tpu_custom_call.1} parent=1 // loop_exit
      _
    %6103 = vsyncpa [#allocation4], 1
    %s6104 = scalar_lea.sflag [#allocation4], 1
    %6105 = vsyncpa %s6104, 1
    %6106 = vsyncpa [#allocation5], 1
    %s6107 = scalar_lea.sflag [#allocation5], 1
    %6108 = vsyncpa %s6107, 1

</llo_original>
